<compile_context>
chip_gen: v5e
topology: v5e:2x2
jax: 0.10.0
libtpu: 0.0.40
codegen_flags: <defaults>
</compile_context>

<pallas_src>
import functools

import jax
import jax.numpy as jnp
from jax.experimental import pallas as pl
from jax.experimental.pallas import tpu as pltpu


def _round_up(x, m):
    return ((x + m - 1) // m) * m


# ---------------------------------------------------------------------------
# One-time, import-time capability probes (no execute-to-detect in hot path).
# ---------------------------------------------------------------------------
_HAS_BUFFERED = hasattr(pl, "Buffered")


def _vmem_cap_bytes():
    try:
        return int(pltpu.get_tpu_info().vmem_capacity_bytes)
    except Exception:
        return 64 * 1024 * 1024  # conservative fallback (v7x per-TC VMEM)


def _num_tensorcores():
    try:
        d = jax.devices()[0]
        kind = (getattr(d, "device_kind", "") or "").lower()
        if "v7" in kind:
            return 2  # v7x: 2 TensorCores per chip
        nc = getattr(d, "num_cores", None)
        return int(nc) if nc else 1
    except Exception:
        return 1


_VMEM_CAP = _vmem_cap_bytes()
_NUM_CORES = _num_tensorcores()


# ---------------------------------------------------------------------------
# Kernel
# ---------------------------------------------------------------------------
def linear_net_kernel(x_ref, w1_ref, b1_ref, w2_ref, b2_ref, o_ref):
    # fc1: cast x to bf16 in-kernel (cheap VPU op, hides under MXU); f32 accumulate.
    x = x_ref[...].astype(jnp.bfloat16)
    h = jnp.dot(x, w1_ref[...], preferred_element_type=jnp.float32) + b1_ref[...]
    # Sigmoid via tanh -> EUP slot; no f32 divide on the VALU.
    h = 0.5 * jnp.tanh(0.5 * h) + 0.5
    # fc2: bf16 operands, f32 accumulate; padded output columns carry a -1e30 bias.
    logits = jnp.dot(h.astype(jnp.bfloat16), w2_ref[...],
                     preferred_element_type=jnp.float32) + b2_ref[...]
    # Softmax over the lane-dense (256-wide) last axis; padded cols exp() to 0.
    m = jnp.max(logits, axis=-1, keepdims=True)
    e = jnp.exp(logits - m)
    # Exact reciprocal so each row sums to 1 (approx=True would break that).
    inv = pl.reciprocal(jnp.sum(e, axis=-1, keepdims=True), approx=False)
    o_ref[...] = (e * inv).astype(o_ref.dtype)


# ---------------------------------------------------------------------------
# One-time parameter preparation (hoisted out of the per-call path).
# ---------------------------------------------------------------------------
def prepare_params(w1, b1, w2, b2):
    """bf16 weight casts + lane padding of the output projection, done once."""
    size, hidden = w1.shape
    out_dim = w2.shape[1]
    out_pad = _round_up(out_dim, 128)  # 200 -> 256: lane-dense stores

    w1b = jnp.asarray(w1, jnp.bfloat16)
    b1f = jnp.asarray(b1, jnp.float32).reshape(1, hidden)
    w2b = jnp.zeros((hidden, out_pad), jnp.bfloat16).at[:, :out_dim].set(
        jnp.asarray(w2, jnp.bfloat16))
    b2p = jnp.full((1, out_pad), -1e30, jnp.float32).at[:, :out_dim].set(
        jnp.asarray(b2, jnp.float32).reshape(1, out_dim))
    params = (w1b, b1f, w2b, b2p)
    return jax.tree_util.tree_map(jax.device_put, params), out_dim


# ---------------------------------------------------------------------------
# Tile selection: grid length is a multiple of the TC count (even >= 2 on v7x);
# bm is a multiple of 16, capped at max_bm, and B is padded only to bm*grid_n.
# ---------------------------------------------------------------------------
def _pick_bm(B, cores, max_bm):
    B16 = _round_up(max(B, 1), 16)
    step = max(cores, 1)
    n = step
    while _round_up(-(-B16 // n), 16) > max_bm:
        n += step
    bm = _round_up(-(-B16 // n), 16)
    return bm, n


def _vmem_limit_bytes(bm, size, hidden, out_pad, weight_bufs):
    est = (2 * bm * size * 4                      # x tiles (f32, double-buffered)
           + weight_bufs * size * hidden * 2      # W1 (bf16, resident)
           + weight_bufs * hidden * out_pad * 2   # W2 (bf16, resident)
           + weight_bufs * (hidden + out_pad) * 4 # biases (f32)
           + 2 * bm * out_pad * 2                 # out tiles (bf16, double-buffered)
           + bm * hidden * 4                      # fc1 activations (f32)
           + 2 * bm * out_pad * 4)                # logits / exp intermediates (f32)
    limit = max(est + (4 << 20), 16 << 20)        # modest headroom, 16 MiB floor
    return int(min(limit, int(0.9 * _VMEM_CAP)))


# ---------------------------------------------------------------------------
# Jitted forward: pad rows -> fused kernel -> slice padding off.
# ---------------------------------------------------------------------------
@functools.partial(jax.jit,
                   static_argnames=("out_dim", "bm", "grid_n", "vmem_limit"))
def _forward(x, w1b, b1f, w2b, b2p, *, out_dim, bm, grid_n, vmem_limit):
    B, size = x.shape
    hidden = w1b.shape[1]
    out_pad = w2b.shape[1]
    B_pad = bm * grid_n

    xp = x if B_pad == B else jnp.zeros((B_pad, size), x.dtype).at[:B].set(x)

    def wspec(shape):
        # Constant index_map -> fetched once, stays resident across grid steps;
        # single-buffer it when supported so it doesn't burn 2x VMEM.
        if _HAS_BUFFERED:
            return pl.BlockSpec(shape, lambda i: (0, 0),
                                pipeline_mode=pl.Buffered(1))
        return pl.BlockSpec(shape, lambda i: (0, 0))

    cost = pl.CostEstimate(
        flops=2 * B_pad * size * hidden + 2 * B_pad * hidden * out_pad,
        transcendentals=B_pad * (hidden + out_pad),
        bytes_accessed=(B_pad * size * 4          # x (f32)
                        + size * hidden * 2       # W1 (bf16)
                        + hidden * out_pad * 2    # W2 (bf16)
                        + (hidden + out_pad) * 4  # biases
                        + B_pad * out_pad * 2),   # out (bf16)
    )

    out_p = pl.pallas_call(
        linear_net_kernel,
        out_shape=jax.ShapeDtypeStruct((B_pad, out_pad), jnp.bfloat16),
        grid_spec=pltpu.PrefetchScalarGridSpec(
            num_scalar_prefetch=0,
            grid=(grid_n,),
            in_specs=[
                pl.BlockSpec((bm, size), lambda i: (i, 0)),  # x row tile (pipelined)
                wspec((size, hidden)),                       # W1 (resident)
                wspec((1, hidden)),                          # b1 (resident)
                wspec((hidden, out_pad)),                    # W2 (resident)
                wspec((1, out_pad)),                         # b2 (resident, -1e30 pads)
            ],
            out_specs=pl.BlockSpec((bm, out_pad), lambda i: (i, 0)),
        ),
        compiler_params=pltpu.CompilerParams(
            dimension_semantics=("parallel",),  # row tiles split across v7x's 2 TCs
            vmem_limit_bytes=vmem_limit,
        ),
        cost_estimate=cost,
    )(xp, w1b, b1f, w2b, b2p)

    return out_p[:B, :out_dim]


def linear_net(x, params, out_dim, *, max_bm=512):
    """x: [B, size] f32; params from prepare_params(); returns [B, out_dim] bf16."""
    w1b, b1f, w2b, b2p = params
    B = x.shape[0]
    size, hidden = w1b.shape
    out_pad = w2b.shape[1]

    bm, grid_n = _pick_bm(B, _NUM_CORES, max_bm)
    weight_bufs = 1 if _HAS_BUFFERED else 2
    vmem_limit = _vmem_limit_bytes(bm, size, hidden, out_pad, weight_bufs)

    return _forward(x, w1b, b1f, w2b, b2p,
                    out_dim=out_dim, bm=bm, grid_n=grid_n, vmem_limit=vmem_limit)


# ---------------------------------------------------------------------------
# Deterministic init mimicking nn.Linear's U(-1/sqrt(fan_in), 1/sqrt(fan_in)).
# Weights stored transposed vs PyTorch so the kernel computes x @ W + b.
# ---------------------------------------------------------------------------
def init_params(key, size, hidden, out_dim=200):
    k1, k2, k3, k4 = jax.random.split(key, 4)
    lim1 = 1.0 / jnp.sqrt(size)
    lim2 = 1.0 / jnp.sqrt(hidden)
    w1 = jax.random.uniform(k1, (size, hidden), jnp.float32, -lim1, lim1)
    b1 = jax.random.uniform(k2, (1, hidden), jnp.float32, -lim1, lim1)
    w2 = jax.random.uniform(k3, (hidden, out_dim), jnp.float32, -lim2, lim2)
    b2 = jax.random.uniform(k4, (1, out_dim), jnp.float32, -lim2, lim2)
    return w1, b1, w2, b2


if __name__ == "__main__":
    key = jax.random.PRNGKey(0)
    kx, kp = jax.random.split(key)

    # Small shapes consistent with the module (hidden default 2048 scaled down,
    # out_dim fixed at 200 by the module).  B=500 exercises the row padding path.
    B, size, hidden, out_dim = 500, 256, 512, 200
    x = jax.random.normal(kx, (B, size), jnp.float32)
    w1, b1, w2, b2 = init_params(kp, size, hidden, out_dim)

    # One-time weight prep (bf16 cast + lane padding), outside the hot path.
    params, out_dim = prepare_params(w1, b1, w2, b2)

    out = linear_net(x, params, out_dim)
    out = jax.block_until_ready(out)
    assert out.shape == (B, out_dim)

    out_f32 = out.astype(jnp.float32)

    # Reference 1: pure JAX with the same bf16-operand / f32-accumulate recipe.
    h_bf = jax.nn.sigmoid(
        jnp.dot(x.astype(jnp.bfloat16), w1.astype(jnp.bfloat16),
                preferred_element_type=jnp.float32) + b1)
    ref_bf16 = jax.nn.softmax(
        jnp.dot(h_bf.astype(jnp.bfloat16), w2.astype(jnp.bfloat16),
                preferred_element_type=jnp.float32) + b2, axis=-1)
    # Reference 2: full f32 reference (looser tolerance for bf16 matmuls + output).
    ref_f32 = jax.nn.softmax(jax.nn.sigmoid(x @ w1 + b1) @ w2 + b2, axis=-1)

    assert jnp.allclose(out_f32, ref_bf16, atol=5e-3, rtol=5e-2)
    assert jnp.allclose(out_f32, ref_f32, atol=6e-3, rtol=6e-2)
    assert jnp.allclose(jnp.sum(out_f32, axis=-1), 1.0, atol=5e-3)

    print("KERNEL_OK")
</pallas_src>

<mosaic_0001>
module attributes {stable_mosaic.version = 11 : i64} {
  func.func @linear_net_kernel(%arg0: i32, %arg1: memref<512x256xf32, #tpu.memory_space<vmem>>, %arg2: memref<256x512xbf16, #tpu.memory_space<vmem>>, %arg3: memref<1x512xf32, #tpu.memory_space<vmem>>, %arg4: memref<512x256xbf16, #tpu.memory_space<vmem>>, %arg5: memref<1x256xf32, #tpu.memory_space<vmem>>, %arg6: memref<512x256xbf16, #tpu.memory_space<vmem>>) attributes {dimension_semantics = [#tpu.dimension_semantics<parallel>], iteration_bounds = array<i64: 1>, scalar_prefetch = 0 : i64, scratch_operands = 0 : i64, tpu.core_type = #tpu.core_type<tc>, window_params = [{transform_indices = @transform_0, window_bounds = array<i64: 512, 256>}, {pipeline_mode = #tpu.pipeline_mode<synchronous>, transform_indices = @transform_1, window_bounds = array<i64: 256, 512>}, {pipeline_mode = #tpu.pipeline_mode<synchronous>, transform_indices = @transform_2, window_bounds = array<i64: 1, 512>}, {pipeline_mode = #tpu.pipeline_mode<synchronous>, transform_indices = @transform_3, window_bounds = array<i64: 512, 256>}, {pipeline_mode = #tpu.pipeline_mode<synchronous>, transform_indices = @transform_4, window_bounds = array<i64: 1, 256>}, {transform_indices = @transform_5, window_bounds = array<i64: 512, 256>}]} {
    %c0 = arith.constant 0 : index
    %c0_0 = arith.constant 0 : index
    %0 = vector.load %arg1[%c0, %c0_0] : memref<512x256xf32, #tpu.memory_space<vmem>>, vector<512x256xf32>
    %1 = arith.truncf %0 : vector<512x256xf32> to vector<512x256xbf16>
    %c0_1 = arith.constant 0 : index
    %c0_2 = arith.constant 0 : index
    %2 = vector.load %arg2[%c0_1, %c0_2] : memref<256x512xbf16, #tpu.memory_space<vmem>>, vector<256x512xbf16>
    %cst = arith.constant dense<0.000000e+00> : vector<512x512xf32>
    %3 = tpu.matmul %1, %2, %cst {dimension_numbers = #tpu.dot_dimension_numbers<[1], [0], [0], [1], [0, 0, 1, 1], [], []>} : vector<512x256xbf16>, vector<256x512xbf16>, vector<512x512xf32> -> vector<512x512xf32>
    %c0_3 = arith.constant 0 : index
    %c0_4 = arith.constant 0 : index
    %4 = vector.load %arg3[%c0_3, %c0_4] : memref<1x512xf32, #tpu.memory_space<vmem>>, vector<1x512xf32>
    %5 = vector.broadcast %4 : vector<1x512xf32> to vector<512x512xf32>
    %6 = arith.addf %3, %5 : vector<512x512xf32>
    %cst_5 = arith.constant 5.000000e-01 : f32
    %7 = vector.broadcast %cst_5 : f32 to vector<512x512xf32>
    %8 = arith.mulf %7, %6 : vector<512x512xf32>
    %9 = math.tanh %8 : vector<512x512xf32>
    %cst_6 = arith.constant 5.000000e-01 : f32
    %10 = vector.broadcast %cst_6 : f32 to vector<512x512xf32>
    %11 = arith.mulf %10, %9 : vector<512x512xf32>
    %cst_7 = arith.constant 5.000000e-01 : f32
    %12 = vector.broadcast %cst_7 : f32 to vector<512x512xf32>
    %13 = arith.addf %11, %12 : vector<512x512xf32>
    %14 = arith.truncf %13 : vector<512x512xf32> to vector<512x512xbf16>
    %c0_8 = arith.constant 0 : index
    %c0_9 = arith.constant 0 : index
    %15 = vector.load %arg4[%c0_8, %c0_9] : memref<512x256xbf16, #tpu.memory_space<vmem>>, vector<512x256xbf16>
    %cst_10 = arith.constant dense<0.000000e+00> : vector<512x256xf32>
    %16 = tpu.matmul %14, %15, %cst_10 {dimension_numbers = #tpu.dot_dimension_numbers<[1], [0], [0], [1], [0, 0, 1, 1], [], []>} : vector<512x512xbf16>, vector<512x256xbf16>, vector<512x256xf32> -> vector<512x256xf32>
    %c0_11 = arith.constant 0 : index
    %c0_12 = arith.constant 0 : index
    %17 = vector.load %arg5[%c0_11, %c0_12] : memref<1x256xf32, #tpu.memory_space<vmem>>, vector<1x256xf32>
    %18 = vector.broadcast %17 : vector<1x256xf32> to vector<512x256xf32>
    %19 = arith.addf %16, %18 : vector<512x256xf32>
    %cst_13 = arith.constant dense<0xFF800000> : vector<512xf32>
    %20 = vector.multi_reduction <maximumf>, %19, %cst_13 [1] : vector<512x256xf32> to vector<512xf32>
    %21 = vector.shape_cast %20 : vector<512xf32> to vector<512x1xf32>
    %22 = vector.broadcast %21 : vector<512x1xf32> to vector<512x256xf32>
    %23 = arith.subf %19, %22 : vector<512x256xf32>
    %24 = math.exp %23 : vector<512x256xf32>
    %cst_14 = arith.constant dense<0.000000e+00> : vector<512xf32>
    %25 = vector.multi_reduction <add>, %24, %cst_14 [1] : vector<512x256xf32> to vector<512xf32>
    %26 = vector.shape_cast %25 : vector<512xf32> to vector<512x1xf32>
    %27 = tpu.reciprocal %26 : vector<512x1xf32> -> vector<512x1xf32>
    %28 = vector.broadcast %27 : vector<512x1xf32> to vector<512x256xf32>
    %29 = arith.mulf %24, %28 : vector<512x256xf32>
    %30 = arith.truncf %29 : vector<512x256xf32> to vector<512x256xbf16>
    %c0_15 = arith.constant 0 : index
    %c0_16 = arith.constant 0 : index
    %31 = vector.load %arg6[%c0_15, %c0_16] : memref<512x256xbf16, #tpu.memory_space<vmem>>, vector<512x256xbf16>
    tpu.vector_store %arg6[%c0_15, %c0_16], %30 {strides = array<i32>} : memref<512x256xbf16, #tpu.memory_space<vmem>>, vector<512x256xbf16>,
    return
  }
  func.func @transform_0(%arg0: i32) -> (i32, i32) {
    %c0_i32 = arith.constant 0 : i32
    %c0_i32_0 = arith.constant 0 : i32
    return %arg0, %c0_i32 : i32, i32
  }
  func.func @transform_1(%arg0: i32) -> (i32, i32) {
    %c0_i32 = arith.constant 0 : i32
    %c0_i32_0 = arith.constant 0 : i32
    %c0_i32_1 = arith.constant 0 : i32
    return %c0_i32, %c0_i32_0 : i32, i32
  }
  func.func @transform_2(%arg0: i32) -> (i32, i32) {
    %c0_i32 = arith.constant 0 : i32
    %c0_i32_0 = arith.constant 0 : i32
    %c0_i32_1 = arith.constant 0 : i32
    return %c0_i32, %c0_i32_0 : i32, i32
  }
  func.func @transform_3(%arg0: i32) -> (i32, i32) {
    %c0_i32 = arith.constant 0 : i32
    %c0_i32_0 = arith.constant 0 : i32
    %c0_i32_1 = arith.constant 0 : i32
    return %c0_i32, %c0_i32_0 : i32, i32
  }
  func.func @transform_4(%arg0: i32) -> (i32, i32) {
    %c0_i32 = arith.constant 0 : i32
    %c0_i32_0 = arith.constant 0 : i32
    %c0_i32_1 = arith.constant 0 : i32
    return %c0_i32, %c0_i32_0 : i32, i32
  }
  func.func @transform_5(%arg0: i32) -> (i32, i32) {
    %c0_i32 = arith.constant 0 : i32
    %c0_i32_0 = arith.constant 0 : i32
    return %arg0, %c0_i32 : i32, i32
  }
}

</mosaic_0001>

<llo_original>
// kernel: _forward.1
$region0: #{_forward.1}
  #allocation0 [shape = 'u32[]', space=smem, size = 0x4, offset = 0x4, fixed_abs, tag = 'smem constant byte address 0x4 - core index']
  #allocation1 [shape = 'u32[72,128]{1,0:T(1,128)}', space=vmem, size = 0x9000, scoped, tag = 'internal scratch']
  %s0 = inlined_call_operand.vmem [shape: f32[512,256], index: 0, kind: input, shape index: {}]
  %s1 = inlined_call_operand.vmem [shape: bf16[256,512], index: 1, kind: input, shape index: {}]
  %s2 = inlined_call_operand.vmem [shape: f32[1,512], index: 2, kind: input, shape index: {}]
  %s3 = inlined_call_operand.vmem [shape: bf16[512,256], index: 3, kind: input, shape index: {}]
  %s4 = inlined_call_operand.vmem [shape: f32[1,256], index: 4, kind: input, shape index: {}]
  %s5 = inlined_call_operand.vmem [shape: bf16[512,256], index: 5, kind: output, shape index: {}]
  %s6 = sld [smem:[#allocation0]]
  $region30: #{_forward.1} parent=0
    _
  %s8 = ssub.s32 1, %s6
  %s9 = scalar_select 0, %s8, %s6
  // Predicated region
  $region2: #{_forward.1} parent=0 // pred_check
    _
  $region3: #{_forward.1} parent=0 // pred_check_branch
    %11 = sbr.rel (0) target = $region5
  $region4: #{_forward.1} parent=0 // pred_region
    _
  $region5: #{_forward.1} parent=0 // pred_fallthru
    _
  // Predicated region
  $region6: #{_forward.1} parent=0 // pred_check
    _
  $region7: #{_forward.1} parent=0 // pred_check_branch
    %13 = sbr.rel (0) target = $region9
  $region8: #{_forward.1} parent=0 // pred_region
    _
  $region9: #{_forward.1} parent=0 // pred_fallthru
    _
  // Predicated region
  $region10: #{_forward.1} parent=0 // pred_check
    _
  $region11: #{_forward.1} parent=0 // pred_check_branch
    %15 = sbr.rel (0) target = $region13
  $region12: #{_forward.1} parent=0 // pred_region
    _
  $region13: #{_forward.1} parent=0 // pred_fallthru
    _
  // Predicated region
  $region14: #{_forward.1} parent=0 // pred_check
    _
  $region15: #{_forward.1} parent=0 // pred_check_branch
    %17 = sbr.rel (0) target = $region17
  $region16: #{_forward.1} parent=0 // pred_region
    _
  $region17: #{_forward.1} parent=0 // pred_fallthru
    _
  // Predicated region
  $region18: #{_forward.1} parent=0 // pred_check
    _
  $region19: #{_forward.1} parent=0 // pred_check_branch
    %19 = sbr.rel (0) target = $region21
  $region20: #{_forward.1} parent=0 // pred_region
    _
  $region21: #{_forward.1} parent=0 // pred_fallthru
    _
  %v20 = vld [vmem:[%s0] sm:$0xff]
  %v21 = vld [vmem:[%s0 + $0x8] sm:$0xff]
  %v22 = vld [vmem:[%s0 + $0x10] sm:$0xff]
  %v23 = vld [vmem:[%s0 + $0x18] sm:$0xff]
  %v24 = vld [vmem:[%s0 + $0x20] sm:$0xff]
  %v25 = vld [vmem:[%s0 + $0x28] sm:$0xff]
  %v26 = vld [vmem:[%s0 + $0x30] sm:$0xff]
  %v27 = vld [vmem:[%s0 + $0x38] sm:$0xff]
  %v28 = vld [vmem:[%s0 + $0x40] sm:$0xff]
  %v29 = vld [vmem:[%s0 + $0x48] sm:$0xff]
  %v30 = vld [vmem:[%s0 + $0x50] sm:$0xff]
  %v31 = vld [vmem:[%s0 + $0x58] sm:$0xff]
  %v32 = vld [vmem:[%s0 + $0x60] sm:$0xff]
  %v33 = vld [vmem:[%s0 + $0x68] sm:$0xff]
  %v34 = vld [vmem:[%s0 + $0x70] sm:$0xff]
  %v35 = vld [vmem:[%s0 + $0x78] sm:$0xff]
  %v36 = vld [vmem:[%s0 + $0x80] sm:$0xff]
  %v37 = vld [vmem:[%s0 + $0x88] sm:$0xff]
  %v38 = vld [vmem:[%s0 + $0x90] sm:$0xff]
  %v39 = vld [vmem:[%s0 + $0x98] sm:$0xff]
  %v40 = vld [vmem:[%s0 + $0xa0] sm:$0xff]
  %v41 = vld [vmem:[%s0 + $0xa8] sm:$0xff]
  %v42 = vld [vmem:[%s0 + $0xb0] sm:$0xff]
  %v43 = vld [vmem:[%s0 + $0xb8] sm:$0xff]
  %v44 = vld [vmem:[%s0 + $0xc0] sm:$0xff]
  %v45 = vld [vmem:[%s0 + $0xc8] sm:$0xff]
  %v46 = vld [vmem:[%s0 + $0xd0] sm:$0xff]
  %v47 = vld [vmem:[%s0 + $0xd8] sm:$0xff]
  %v48 = vld [vmem:[%s0 + $0xe0] sm:$0xff]
  %v49 = vld [vmem:[%s0 + $0xe8] sm:$0xff]
  %v50 = vld [vmem:[%s0 + $0xf0] sm:$0xff]
  %v51 = vld [vmem:[%s0 + $0xf8] sm:$0xff]
  %v52 = vld [vmem:[%s0 + $0x100] sm:$0xff]
  %v53 = vld [vmem:[%s0 + $0x108] sm:$0xff]
  %v54 = vld [vmem:[%s0 + $0x110] sm:$0xff]
  %v55 = vld [vmem:[%s0 + $0x118] sm:$0xff]
  %v56 = vld [vmem:[%s0 + $0x120] sm:$0xff]
  %v57 = vld [vmem:[%s0 + $0x128] sm:$0xff]
  %v58 = vld [vmem:[%s0 + $0x130] sm:$0xff]
  %v59 = vld [vmem:[%s0 + $0x138] sm:$0xff]
  %v60 = vld [vmem:[%s0 + $0x140] sm:$0xff]
  %v61 = vld [vmem:[%s0 + $0x148] sm:$0xff]
  %v62 = vld [vmem:[%s0 + $0x150] sm:$0xff]
  %v63 = vld [vmem:[%s0 + $0x158] sm:$0xff]
  %v64 = vld [vmem:[%s0 + $0x160] sm:$0xff]
  %v65 = vld [vmem:[%s0 + $0x168] sm:$0xff]
  %v66 = vld [vmem:[%s0 + $0x170] sm:$0xff]
  %v67 = vld [vmem:[%s0 + $0x178] sm:$0xff]
  %v68 = vld [vmem:[%s0 + $0x180] sm:$0xff]
  %v69 = vld [vmem:[%s0 + $0x188] sm:$0xff]
  %v70 = vld [vmem:[%s0 + $0x190] sm:$0xff]
  %v71 = vld [vmem:[%s0 + $0x198] sm:$0xff]
  %v72 = vld [vmem:[%s0 + $0x1a0] sm:$0xff]
  %v73 = vld [vmem:[%s0 + $0x1a8] sm:$0xff]
  %v74 = vld [vmem:[%s0 + $0x1b0] sm:$0xff]
  %v75 = vld [vmem:[%s0 + $0x1b8] sm:$0xff]
  %v76 = vld [vmem:[%s0 + $0x1c0] sm:$0xff]
  %v77 = vld [vmem:[%s0 + $0x1c8] sm:$0xff]
  %v78 = vld [vmem:[%s0 + $0x1d0] sm:$0xff]
  %v79 = vld [vmem:[%s0 + $0x1d8] sm:$0xff]
  %v80 = vld [vmem:[%s0 + $0x1e0] sm:$0xff]
  %v81 = vld [vmem:[%s0 + $0x1e8] sm:$0xff]
  %v82 = vld [vmem:[%s0 + $0x1f0] sm:$0xff]
  %v83 = vld [vmem:[%s0 + $0x1f8] sm:$0xff]
  %v84 = vld [vmem:[%s0 + $0x200] sm:$0xff]
  %v85 = vld [vmem:[%s0 + $0x208] sm:$0xff]
  %v86 = vld [vmem:[%s0 + $0x210] sm:$0xff]
  %v87 = vld [vmem:[%s0 + $0x218] sm:$0xff]
  %v88 = vld [vmem:[%s0 + $0x220] sm:$0xff]
  %v89 = vld [vmem:[%s0 + $0x228] sm:$0xff]
  %v90 = vld [vmem:[%s0 + $0x230] sm:$0xff]
  %v91 = vld [vmem:[%s0 + $0x238] sm:$0xff]
  %v92 = vld [vmem:[%s0 + $0x240] sm:$0xff]
  %v93 = vld [vmem:[%s0 + $0x248] sm:$0xff]
  %v94 = vld [vmem:[%s0 + $0x250] sm:$0xff]
  %v95 = vld [vmem:[%s0 + $0x258] sm:$0xff]
  %v96 = vld [vmem:[%s0 + $0x260] sm:$0xff]
  %v97 = vld [vmem:[%s0 + $0x268] sm:$0xff]
  %v98 = vld [vmem:[%s0 + $0x270] sm:$0xff]
  %v99 = vld [vmem:[%s0 + $0x278] sm:$0xff]
  %v100 = vld [vmem:[%s0 + $0x280] sm:$0xff]
  %v101 = vld [vmem:[%s0 + $0x288] sm:$0xff]
  %v102 = vld [vmem:[%s0 + $0x290] sm:$0xff]
  %v103 = vld [vmem:[%s0 + $0x298] sm:$0xff]
  %v104 = vld [vmem:[%s0 + $0x2a0] sm:$0xff]
  %v105 = vld [vmem:[%s0 + $0x2a8] sm:$0xff]
  %v106 = vld [vmem:[%s0 + $0x2b0] sm:$0xff]
  %v107 = vld [vmem:[%s0 + $0x2b8] sm:$0xff]
  %v108 = vld [vmem:[%s0 + $0x2c0] sm:$0xff]
  %v109 = vld [vmem:[%s0 + $0x2c8] sm:$0xff]
  %v110 = vld [vmem:[%s0 + $0x2d0] sm:$0xff]
  %v111 = vld [vmem:[%s0 + $0x2d8] sm:$0xff]
  %v112 = vld [vmem:[%s0 + $0x2e0] sm:$0xff]
  %v113 = vld [vmem:[%s0 + $0x2e8] sm:$0xff]
  %v114 = vld [vmem:[%s0 + $0x2f0] sm:$0xff]
  %v115 = vld [vmem:[%s0 + $0x2f8] sm:$0xff]
  %v116 = vld [vmem:[%s0 + $0x300] sm:$0xff]
  %v117 = vld [vmem:[%s0 + $0x308] sm:$0xff]
  %v118 = vld [vmem:[%s0 + $0x310] sm:$0xff]
  %v119 = vld [vmem:[%s0 + $0x318] sm:$0xff]
  %v120 = vld [vmem:[%s0 + $0x320] sm:$0xff]
  %v121 = vld [vmem:[%s0 + $0x328] sm:$0xff]
  %v122 = vld [vmem:[%s0 + $0x330] sm:$0xff]
  %v123 = vld [vmem:[%s0 + $0x338] sm:$0xff]
  %v124 = vld [vmem:[%s0 + $0x340] sm:$0xff]
  %v125 = vld [vmem:[%s0 + $0x348] sm:$0xff]
  %v126 = vld [vmem:[%s0 + $0x350] sm:$0xff]
  %v127 = vld [vmem:[%s0 + $0x358] sm:$0xff]
  %v128 = vld [vmem:[%s0 + $0x360] sm:$0xff]
  %v129 = vld [vmem:[%s0 + $0x368] sm:$0xff]
  %v130 = vld [vmem:[%s0 + $0x370] sm:$0xff]
  %v131 = vld [vmem:[%s0 + $0x378] sm:$0xff]
  %v132 = vld [vmem:[%s0 + $0x380] sm:$0xff]
  %v133 = vld [vmem:[%s0 + $0x388] sm:$0xff]
  %v134 = vld [vmem:[%s0 + $0x390] sm:$0xff]
  %v135 = vld [vmem:[%s0 + $0x398] sm:$0xff]
  %v136 = vld [vmem:[%s0 + $0x3a0] sm:$0xff]
  %v137 = vld [vmem:[%s0 + $0x3a8] sm:$0xff]
  %v138 = vld [vmem:[%s0 + $0x3b0] sm:$0xff]
  %v139 = vld [vmem:[%s0 + $0x3b8] sm:$0xff]
  %v140 = vld [vmem:[%s0 + $0x3c0] sm:$0xff]
  %v141 = vld [vmem:[%s0 + $0x3c8] sm:$0xff]
  %v142 = vld [vmem:[%s0 + $0x3d0] sm:$0xff]
  %v143 = vld [vmem:[%s0 + $0x3d8] sm:$0xff]
  %v144 = vld [vmem:[%s0 + $0x3e0] sm:$0xff]
  %v145 = vld [vmem:[%s0 + $0x3e8] sm:$0xff]
  %v146 = vld [vmem:[%s0 + $0x3f0] sm:$0xff]
  %v147 = vld [vmem:[%s0 + $0x3f8] sm:$0xff]
  %v148 = vpack.c.bf16 %v22, %v20
  %v149 = vpack.c.bf16 %v23, %v21
  %v150 = vpack.c.bf16 %v26, %v24
  %v151 = vpack.c.bf16 %v27, %v25
  %v152 = vpack.c.bf16 %v30, %v28
  %v153 = vpack.c.bf16 %v31, %v29
  %v154 = vpack.c.bf16 %v34, %v32
  %v155 = vpack.c.bf16 %v35, %v33
  %v156 = vpack.c.bf16 %v38, %v36
  %v157 = vpack.c.bf16 %v39, %v37
  %v158 = vpack.c.bf16 %v42, %v40
  %v159 = vpack.c.bf16 %v43, %v41
  %v160 = vpack.c.bf16 %v46, %v44
  %v161 = vpack.c.bf16 %v47, %v45
  %v162 = vpack.c.bf16 %v50, %v48
  %v163 = vpack.c.bf16 %v51, %v49
  %v164 = vpack.c.bf16 %v54, %v52
  %v165 = vpack.c.bf16 %v55, %v53
  %v166 = vpack.c.bf16 %v58, %v56
  %v167 = vpack.c.bf16 %v59, %v57
  %v168 = vpack.c.bf16 %v62, %v60
  %v169 = vpack.c.bf16 %v63, %v61
  %v170 = vpack.c.bf16 %v66, %v64
  %v171 = vpack.c.bf16 %v67, %v65
  %v172 = vpack.c.bf16 %v70, %v68
  %v173 = vpack.c.bf16 %v71, %v69
  %v174 = vpack.c.bf16 %v74, %v72
  %v175 = vpack.c.bf16 %v75, %v73
  %v176 = vpack.c.bf16 %v78, %v76
  %v177 = vpack.c.bf16 %v79, %v77
  %v178 = vpack.c.bf16 %v82, %v80
  %v179 = vpack.c.bf16 %v83, %v81
  %v180 = vpack.c.bf16 %v86, %v84
  %v181 = vpack.c.bf16 %v87, %v85
  %v182 = vpack.c.bf16 %v90, %v88
  %v183 = vpack.c.bf16 %v91, %v89
  %v184 = vpack.c.bf16 %v94, %v92
  %v185 = vpack.c.bf16 %v95, %v93
  %v186 = vpack.c.bf16 %v98, %v96
  %v187 = vpack.c.bf16 %v99, %v97
  %v188 = vpack.c.bf16 %v102, %v100
  %v189 = vpack.c.bf16 %v103, %v101
  %v190 = vpack.c.bf16 %v106, %v104
  %v191 = vpack.c.bf16 %v107, %v105
  %v192 = vpack.c.bf16 %v110, %v108
  %v193 = vpack.c.bf16 %v111, %v109
  %v194 = vpack.c.bf16 %v114, %v112
  %v195 = vpack.c.bf16 %v115, %v113
  %v196 = vpack.c.bf16 %v118, %v116
  %v197 = vpack.c.bf16 %v119, %v117
  %v198 = vpack.c.bf16 %v122, %v120
  %v199 = vpack.c.bf16 %v123, %v121
  %v200 = vpack.c.bf16 %v126, %v124
  %v201 = vpack.c.bf16 %v127, %v125
  %v202 = vpack.c.bf16 %v130, %v128
  %v203 = vpack.c.bf16 %v131, %v129
  %v204 = vpack.c.bf16 %v134, %v132
  %v205 = vpack.c.bf16 %v135, %v133
  %v206 = vpack.c.bf16 %v138, %v136
  %v207 = vpack.c.bf16 %v139, %v137
  %v208 = vpack.c.bf16 %v142, %v140
  %v209 = vpack.c.bf16 %v143, %v141
  %v210 = vpack.c.bf16 %v146, %v144
  %v211 = vpack.c.bf16 %v147, %v145
  %v212 = vld [vmem:[%s1] sm:$0xff]
  %v213 = vld [vmem:[%s1 + $0x8] sm:$0xff]
  %v214 = vld [vmem:[%s1 + $0x10] sm:$0xff]
  %v215 = vld [vmem:[%s1 + $0x18] sm:$0xff]
  %v216 = vld [vmem:[%s1 + $0x20] sm:$0xff]
  %v217 = vld [vmem:[%s1 + $0x28] sm:$0xff]
  %v218 = vld [vmem:[%s1 + $0x30] sm:$0xff]
  %v219 = vld [vmem:[%s1 + $0x38] sm:$0xff]
  %v220 = vld [vmem:[%s1 + $0x40] sm:$0xff]
  %v221 = vld [vmem:[%s1 + $0x48] sm:$0xff]
  %v222 = vld [vmem:[%s1 + $0x50] sm:$0xff]
  %v223 = vld [vmem:[%s1 + $0x58] sm:$0xff]
  %v224 = vld [vmem:[%s1 + $0x60] sm:$0xff]
  %v225 = vld [vmem:[%s1 + $0x68] sm:$0xff]
  %v226 = vld [vmem:[%s1 + $0x70] sm:$0xff]
  %v227 = vld [vmem:[%s1 + $0x78] sm:$0xff]
  %v228 = vld [vmem:[%s1 + $0x80] sm:$0xff]
  %v229 = vld [vmem:[%s1 + $0x88] sm:$0xff]
  %v230 = vld [vmem:[%s1 + $0x90] sm:$0xff]
  %v231 = vld [vmem:[%s1 + $0x98] sm:$0xff]
  %v232 = vld [vmem:[%s1 + $0xa0] sm:$0xff]
  %v233 = vld [vmem:[%s1 + $0xa8] sm:$0xff]
  %v234 = vld [vmem:[%s1 + $0xb0] sm:$0xff]
  %v235 = vld [vmem:[%s1 + $0xb8] sm:$0xff]
  %v236 = vld [vmem:[%s1 + $0xc0] sm:$0xff]
  %v237 = vld [vmem:[%s1 + $0xc8] sm:$0xff]
  %v238 = vld [vmem:[%s1 + $0xd0] sm:$0xff]
  %v239 = vld [vmem:[%s1 + $0xd8] sm:$0xff]
  %v240 = vld [vmem:[%s1 + $0xe0] sm:$0xff]
  %v241 = vld [vmem:[%s1 + $0xe8] sm:$0xff]
  %v242 = vld [vmem:[%s1 + $0xf0] sm:$0xff]
  %v243 = vld [vmem:[%s1 + $0xf8] sm:$0xff]
  %v244 = vld [vmem:[%s1 + $0x100] sm:$0xff]
  %v245 = vld [vmem:[%s1 + $0x108] sm:$0xff]
  %v246 = vld [vmem:[%s1 + $0x110] sm:$0xff]
  %v247 = vld [vmem:[%s1 + $0x118] sm:$0xff]
  %v248 = vld [vmem:[%s1 + $0x120] sm:$0xff]
  %v249 = vld [vmem:[%s1 + $0x128] sm:$0xff]
  %v250 = vld [vmem:[%s1 + $0x130] sm:$0xff]
  %v251 = vld [vmem:[%s1 + $0x138] sm:$0xff]
  %v252 = vld [vmem:[%s1 + $0x140] sm:$0xff]
  %v253 = vld [vmem:[%s1 + $0x148] sm:$0xff]
  %v254 = vld [vmem:[%s1 + $0x150] sm:$0xff]
  %v255 = vld [vmem:[%s1 + $0x158] sm:$0xff]
  %v256 = vld [vmem:[%s1 + $0x160] sm:$0xff]
  %v257 = vld [vmem:[%s1 + $0x168] sm:$0xff]
  %v258 = vld [vmem:[%s1 + $0x170] sm:$0xff]
  %v259 = vld [vmem:[%s1 + $0x178] sm:$0xff]
  %v260 = vld [vmem:[%s1 + $0x180] sm:$0xff]
  %v261 = vld [vmem:[%s1 + $0x188] sm:$0xff]
  %v262 = vld [vmem:[%s1 + $0x190] sm:$0xff]
  %v263 = vld [vmem:[%s1 + $0x198] sm:$0xff]
  %v264 = vld [vmem:[%s1 + $0x1a0] sm:$0xff]
  %v265 = vld [vmem:[%s1 + $0x1a8] sm:$0xff]
  %v266 = vld [vmem:[%s1 + $0x1b0] sm:$0xff]
  %v267 = vld [vmem:[%s1 + $0x1b8] sm:$0xff]
  %v268 = vld [vmem:[%s1 + $0x1c0] sm:$0xff]
  %v269 = vld [vmem:[%s1 + $0x1c8] sm:$0xff]
  %v270 = vld [vmem:[%s1 + $0x1d0] sm:$0xff]
  %v271 = vld [vmem:[%s1 + $0x1d8] sm:$0xff]
  %v272 = vld [vmem:[%s1 + $0x1e0] sm:$0xff]
  %v273 = vld [vmem:[%s1 + $0x1e8] sm:$0xff]
  %v274 = vld [vmem:[%s1 + $0x1f0] sm:$0xff]
  %v275 = vld [vmem:[%s1 + $0x1f8] sm:$0xff]
  %v276 = vld [vmem:[%s2] sm:$0xf]
  %v278 = vperm.slane %v276, 0
  %v279 = vperm.slane %v276, 1
  %v280 = vperm.slane %v276, 2
  %v281 = vperm.slane %v276, 3
  %v350 = vunpack.c.l.b16 %v212
  %v351 = vunpack.c.h.b16 %v212
  %v352 = vunpack.c.l.b16 %v213
  %v353 = vunpack.c.h.b16 %v213
  %v354 = vunpack.c.l.b16 %v214
  %v355 = vunpack.c.h.b16 %v214
  %v356 = vunpack.c.l.b16 %v215
  %v357 = vunpack.c.h.b16 %v215
  %v358 = vunpack.c.l.b16 %v216
  %v359 = vunpack.c.h.b16 %v216
  %v360 = vunpack.c.l.b16 %v217
  %v361 = vunpack.c.h.b16 %v217
  %v362 = vunpack.c.l.b16 %v218
  %v363 = vunpack.c.h.b16 %v218
  %v364 = vunpack.c.l.b16 %v219
  %v365 = vunpack.c.h.b16 %v219
  %v366 = vunpack.c.l.b16 %v220
  %v367 = vunpack.c.h.b16 %v220
  %v368 = vunpack.c.l.b16 %v221
  %v369 = vunpack.c.h.b16 %v221
  %v370 = vunpack.c.l.b16 %v222
  %v371 = vunpack.c.h.b16 %v222
  %v372 = vunpack.c.l.b16 %v223
  %v373 = vunpack.c.h.b16 %v223
  %v374 = vunpack.c.l.b16 %v224
  %v375 = vunpack.c.h.b16 %v224
  %v376 = vunpack.c.l.b16 %v225
  %v377 = vunpack.c.h.b16 %v225
  %v378 = vunpack.c.l.b16 %v226
  %v379 = vunpack.c.h.b16 %v226
  %v380 = vunpack.c.l.b16 %v227
  %v381 = vunpack.c.h.b16 %v227
  %v382 = vunpack.c.l.b16 %v228
  %v383 = vunpack.c.h.b16 %v228
  %v384 = vunpack.c.l.b16 %v229
  %v385 = vunpack.c.h.b16 %v229
  %v386 = vunpack.c.l.b16 %v230
  %v387 = vunpack.c.h.b16 %v230
  %v388 = vunpack.c.l.b16 %v231
  %v389 = vunpack.c.h.b16 %v231
  %v390 = vunpack.c.l.b16 %v232
  %v391 = vunpack.c.h.b16 %v232
  %v392 = vunpack.c.l.b16 %v233
  %v393 = vunpack.c.h.b16 %v233
  %v394 = vunpack.c.l.b16 %v234
  %v395 = vunpack.c.h.b16 %v234
  %v396 = vunpack.c.l.b16 %v235
  %v397 = vunpack.c.h.b16 %v235
  %v398 = vunpack.c.l.b16 %v236
  %v399 = vunpack.c.h.b16 %v236
  %v400 = vunpack.c.l.b16 %v237
  %v401 = vunpack.c.h.b16 %v237
  %v402 = vunpack.c.l.b16 %v238
  %v403 = vunpack.c.h.b16 %v238
  %v404 = vunpack.c.l.b16 %v239
  %v405 = vunpack.c.h.b16 %v239
  %v406 = vunpack.c.l.b16 %v240
  %v407 = vunpack.c.h.b16 %v240
  %v408 = vunpack.c.l.b16 %v241
  %v409 = vunpack.c.h.b16 %v241
  %v410 = vunpack.c.l.b16 %v242
  %v411 = vunpack.c.h.b16 %v242
  %v412 = vunpack.c.l.b16 %v243
  %v413 = vunpack.c.h.b16 %v243
  %v414 = vunpack.c.l.b16 %v244
  %v415 = vunpack.c.h.b16 %v244
  %v416 = vunpack.c.l.b16 %v245
  %v417 = vunpack.c.h.b16 %v245
  %v418 = vunpack.c.l.b16 %v246
  %v419 = vunpack.c.h.b16 %v246
  %v420 = vunpack.c.l.b16 %v247
  %v421 = vunpack.c.h.b16 %v247
  %v422 = vunpack.c.l.b16 %v248
  %v423 = vunpack.c.h.b16 %v248
  %v424 = vunpack.c.l.b16 %v249
  %v425 = vunpack.c.h.b16 %v249
  %v426 = vunpack.c.l.b16 %v250
  %v427 = vunpack.c.h.b16 %v250
  %v428 = vunpack.c.l.b16 %v251
  %v429 = vunpack.c.h.b16 %v251
  %v430 = vunpack.c.l.b16 %v252
  %v431 = vunpack.c.h.b16 %v252
  %v432 = vunpack.c.l.b16 %v253
  %v433 = vunpack.c.h.b16 %v253
  %v434 = vunpack.c.l.b16 %v254
  %v435 = vunpack.c.h.b16 %v254
  %v436 = vunpack.c.l.b16 %v255
  %v437 = vunpack.c.h.b16 %v255
  %v438 = vunpack.c.l.b16 %v256
  %v439 = vunpack.c.h.b16 %v256
  %v440 = vunpack.c.l.b16 %v257
  %v441 = vunpack.c.h.b16 %v257
  %v442 = vunpack.c.l.b16 %v258
  %v443 = vunpack.c.h.b16 %v258
  %v444 = vunpack.c.l.b16 %v259
  %v445 = vunpack.c.h.b16 %v259
  %v446 = vunpack.c.l.b16 %v260
  %v447 = vunpack.c.h.b16 %v260
  %v448 = vunpack.c.l.b16 %v261
  %v449 = vunpack.c.h.b16 %v261
  %v450 = vunpack.c.l.b16 %v262
  %v451 = vunpack.c.h.b16 %v262
  %v452 = vunpack.c.l.b16 %v263
  %v453 = vunpack.c.h.b16 %v263
  %v454 = vunpack.c.l.b16 %v264
  %v455 = vunpack.c.h.b16 %v264
  %v456 = vunpack.c.l.b16 %v265
  %v457 = vunpack.c.h.b16 %v265
  %v458 = vunpack.c.l.b16 %v266
  %v459 = vunpack.c.h.b16 %v266
  %v460 = vunpack.c.l.b16 %v267
  %v461 = vunpack.c.h.b16 %v267
  %v462 = vunpack.c.l.b16 %v268
  %v463 = vunpack.c.h.b16 %v268
  %v464 = vunpack.c.l.b16 %v269
  %v465 = vunpack.c.h.b16 %v269
  %v466 = vunpack.c.l.b16 %v270
  %v467 = vunpack.c.h.b16 %v270
  %v468 = vunpack.c.l.b16 %v271
  %v469 = vunpack.c.h.b16 %v271
  %v470 = vunpack.c.l.b16 %v272
  %v471 = vunpack.c.h.b16 %v272
  %v472 = vunpack.c.l.b16 %v273
  %v473 = vunpack.c.h.b16 %v273
  %v474 = vunpack.c.l.b16 %v274
  %v475 = vunpack.c.h.b16 %v274
  %v476 = vunpack.c.l.b16 %v275
  %v477 = vunpack.c.h.b16 %v275
  %v478 = vpack.c.b16 %v354, %v350
  %v479 = vpack.c.b16 %v355, %v351
  %v480 = vpack.c.b16 %v356, %v352
  %v481 = vpack.c.b16 %v357, %v353
  %v482 = vpack.c.b16 %v362, %v358
  %v483 = vpack.c.b16 %v363, %v359
  %v484 = vpack.c.b16 %v364, %v360
  %v485 = vpack.c.b16 %v365, %v361
  %v486 = vpack.c.b16 %v370, %v366
  %v487 = vpack.c.b16 %v371, %v367
  %v488 = vpack.c.b16 %v372, %v368
  %v489 = vpack.c.b16 %v373, %v369
  %v490 = vpack.c.b16 %v378, %v374
  %v491 = vpack.c.b16 %v379, %v375
  %v492 = vpack.c.b16 %v380, %v376
  %v493 = vpack.c.b16 %v381, %v377
  %v494 = vpack.c.b16 %v386, %v382
  %v495 = vpack.c.b16 %v387, %v383
  %v496 = vpack.c.b16 %v388, %v384
  %v497 = vpack.c.b16 %v389, %v385
  %v498 = vpack.c.b16 %v394, %v390
  %v499 = vpack.c.b16 %v395, %v391
  %v500 = vpack.c.b16 %v396, %v392
  %v501 = vpack.c.b16 %v397, %v393
  %v502 = vpack.c.b16 %v402, %v398
  %v503 = vpack.c.b16 %v403, %v399
  %v504 = vpack.c.b16 %v404, %v400
  %v505 = vpack.c.b16 %v405, %v401
  %v506 = vpack.c.b16 %v410, %v406
  %v507 = vpack.c.b16 %v411, %v407
  %v508 = vpack.c.b16 %v412, %v408
  %v509 = vpack.c.b16 %v413, %v409
  %v510 = vpack.c.b16 %v418, %v414
  %v511 = vpack.c.b16 %v419, %v415
  %v512 = vpack.c.b16 %v420, %v416
  %v513 = vpack.c.b16 %v421, %v417
  %v514 = vpack.c.b16 %v426, %v422
  %v515 = vpack.c.b16 %v427, %v423
  %v516 = vpack.c.b16 %v428, %v424
  %v517 = vpack.c.b16 %v429, %v425
  %v518 = vpack.c.b16 %v434, %v430
  %v519 = vpack.c.b16 %v435, %v431
  %v520 = vpack.c.b16 %v436, %v432
  %v521 = vpack.c.b16 %v437, %v433
  %v522 = vpack.c.b16 %v442, %v438
  %v523 = vpack.c.b16 %v443, %v439
  %v524 = vpack.c.b16 %v444, %v440
  %v525 = vpack.c.b16 %v445, %v441
  %v526 = vpack.c.b16 %v450, %v446
  %v527 = vpack.c.b16 %v451, %v447
  %v528 = vpack.c.b16 %v452, %v448
  %v529 = vpack.c.b16 %v453, %v449
  %v530 = vpack.c.b16 %v458, %v454
  %v531 = vpack.c.b16 %v459, %v455
  %v532 = vpack.c.b16 %v460, %v456
  %v533 = vpack.c.b16 %v461, %v457
  %v534 = vpack.c.b16 %v466, %v462
  %v535 = vpack.c.b16 %v467, %v463
  %v536 = vpack.c.b16 %v468, %v464
  %v537 = vpack.c.b16 %v469, %v465
  %v538 = vpack.c.b16 %v474, %v470
  %v539 = vpack.c.b16 %v475, %v471
  %v540 = vpack.c.b16 %v476, %v472
  %v541 = vpack.c.b16 %v477, %v473
  %606 = vmatpush.bf16.msra.mxu0 %v506
  %607 = vmatpush.bf16.msra.mxu0 %v502
  %608 = vmatpush.bf16.msra.mxu0 %v498
  %609 = vmatpush.bf16.msra.mxu0 %v494
  %610 = vmatpush.bf16.msra.mxu0 %v490
  %611 = vmatpush.bf16.msra.mxu0 %v486
  %612 = vmatpush.bf16.msra.mxu0 %v482
  %613 = vmatpush.bf16.msra.mxu0 %v478
  %614 = vmatmul.bf16.gmra.mxu0 %v148
  %v615 = vpop.f32.mrf.mxu0
  %v616 = vadd.f32 %v278, %v615
  %v617 = vpop.f32.mrf.mxu0
  %v618 = vadd.f32 %v278, %v617
  %619 = vmatmul.bf16.gmra.mxu0 %v150
  %v620 = vpop.f32.mrf.mxu0
  %v621 = vadd.f32 %v278, %v620
  %v622 = vpop.f32.mrf.mxu0
  %v623 = vadd.f32 %v278, %v622
  %624 = vmatmul.bf16.gmra.mxu0 %v152
  %v625 = vpop.f32.mrf.mxu0
  %v626 = vadd.f32 %v278, %v625
  %v627 = vpop.f32.mrf.mxu0
  %v628 = vadd.f32 %v278, %v627
  %629 = vmatmul.bf16.gmra.mxu0 %v154
  %v630 = vpop.f32.mrf.mxu0
  %v631 = vadd.f32 %v278, %v630
  %v632 = vpop.f32.mrf.mxu0
  %v633 = vadd.f32 %v278, %v632
  %634 = vmatmul.bf16.gmra.mxu0 %v156
  %v635 = vpop.f32.mrf.mxu0
  %v636 = vadd.f32 %v278, %v635
  %v637 = vpop.f32.mrf.mxu0
  %v638 = vadd.f32 %v278, %v637
  %639 = vmatmul.bf16.gmra.mxu0 %v158
  %v640 = vpop.f32.mrf.mxu0
  %v641 = vadd.f32 %v278, %v640
  %v642 = vpop.f32.mrf.mxu0
  %v643 = vadd.f32 %v278, %v642
  %644 = vmatmul.bf16.gmra.mxu0 %v160
  %v645 = vpop.f32.mrf.mxu0
  %v646 = vadd.f32 %v278, %v645
  %v647 = vpop.f32.mrf.mxu0
  %v648 = vadd.f32 %v278, %v647
  %649 = vmatmul.bf16.gmra.mxu0 %v162
  %v650 = vpop.f32.mrf.mxu0
  %v651 = vadd.f32 %v278, %v650
  %v652 = vpop.f32.mrf.mxu0
  %v653 = vadd.f32 %v278, %v652
  %654 = vmatmul.bf16.gmra.mxu0 %v164
  %v655 = vpop.f32.mrf.mxu0
  %v656 = vadd.f32 %v278, %v655
  %v657 = vpop.f32.mrf.mxu0
  %v658 = vadd.f32 %v278, %v657
  %659 = vmatmul.bf16.gmra.mxu0 %v166
  %v660 = vpop.f32.mrf.mxu0
  %v661 = vadd.f32 %v278, %v660
  %v662 = vpop.f32.mrf.mxu0
  %v663 = vadd.f32 %v278, %v662
  %664 = vmatmul.bf16.gmra.mxu0 %v168
  %v665 = vpop.f32.mrf.mxu0
  %v666 = vadd.f32 %v278, %v665
  %v667 = vpop.f32.mrf.mxu0
  %v668 = vadd.f32 %v278, %v667
  %669 = vmatmul.bf16.gmra.mxu0 %v170
  %v670 = vpop.f32.mrf.mxu0
  %v671 = vadd.f32 %v278, %v670
  %v672 = vpop.f32.mrf.mxu0
  %v673 = vadd.f32 %v278, %v672
  %674 = vmatmul.bf16.gmra.mxu0 %v172
  %v675 = vpop.f32.mrf.mxu0
  %v676 = vadd.f32 %v278, %v675
  %v677 = vpop.f32.mrf.mxu0
  %v678 = vadd.f32 %v278, %v677
  %679 = vmatmul.bf16.gmra.mxu0 %v174
  %v680 = vpop.f32.mrf.mxu0
  %v681 = vadd.f32 %v278, %v680
  %v682 = vpop.f32.mrf.mxu0
  %v683 = vadd.f32 %v278, %v682
  %684 = vmatmul.bf16.gmra.mxu0 %v176
  %v685 = vpop.f32.mrf.mxu0
  %v686 = vadd.f32 %v278, %v685
  %v687 = vpop.f32.mrf.mxu0
  %v688 = vadd.f32 %v278, %v687
  %689 = vmatmul.bf16.gmra.mxu0 %v178
  %v690 = vpop.f32.mrf.mxu0
  %v691 = vadd.f32 %v278, %v690
  %v692 = vpop.f32.mrf.mxu0
  %v693 = vadd.f32 %v278, %v692
  %694 = vmatmul.bf16.gmra.mxu0 %v180
  %v695 = vpop.f32.mrf.mxu0
  %v696 = vadd.f32 %v278, %v695
  %v697 = vpop.f32.mrf.mxu0
  %v698 = vadd.f32 %v278, %v697
  %699 = vmatmul.bf16.gmra.mxu0 %v182
  %v700 = vpop.f32.mrf.mxu0
  %v701 = vadd.f32 %v278, %v700
  %v702 = vpop.f32.mrf.mxu0
  %v703 = vadd.f32 %v278, %v702
  %704 = vmatmul.bf16.gmra.mxu0 %v184
  %v705 = vpop.f32.mrf.mxu0
  %v706 = vadd.f32 %v278, %v705
  %v707 = vpop.f32.mrf.mxu0
  %v708 = vadd.f32 %v278, %v707
  %709 = vmatmul.bf16.gmra.mxu0 %v186
  %v710 = vpop.f32.mrf.mxu0
  %v711 = vadd.f32 %v278, %v710
  %v712 = vpop.f32.mrf.mxu0
  %v713 = vadd.f32 %v278, %v712
  %714 = vmatmul.bf16.gmra.mxu0 %v188
  %v715 = vpop.f32.mrf.mxu0
  %v716 = vadd.f32 %v278, %v715
  %v717 = vpop.f32.mrf.mxu0
  %v718 = vadd.f32 %v278, %v717
  %719 = vmatmul.bf16.gmra.mxu0 %v190
  %v720 = vpop.f32.mrf.mxu0
  %v721 = vadd.f32 %v278, %v720
  %v722 = vpop.f32.mrf.mxu0
  %v723 = vadd.f32 %v278, %v722
  %724 = vmatmul.bf16.gmra.mxu0 %v192
  %v725 = vpop.f32.mrf.mxu0
  %v726 = vadd.f32 %v278, %v725
  %v727 = vpop.f32.mrf.mxu0
  %v728 = vadd.f32 %v278, %v727
  %729 = vmatmul.bf16.gmra.mxu0 %v194
  %v730 = vpop.f32.mrf.mxu0
  %v731 = vadd.f32 %v278, %v730
  %v732 = vpop.f32.mrf.mxu0
  %v733 = vadd.f32 %v278, %v732
  %734 = vmatmul.bf16.gmra.mxu0 %v196
  %v735 = vpop.f32.mrf.mxu0
  %v736 = vadd.f32 %v278, %v735
  %v737 = vpop.f32.mrf.mxu0
  %v738 = vadd.f32 %v278, %v737
  %739 = vmatmul.bf16.gmra.mxu0 %v198
  %v740 = vpop.f32.mrf.mxu0
  %v741 = vadd.f32 %v278, %v740
  %v742 = vpop.f32.mrf.mxu0
  %v743 = vadd.f32 %v278, %v742
  %744 = vmatmul.bf16.gmra.mxu0 %v200
  %v745 = vpop.f32.mrf.mxu0
  %v746 = vadd.f32 %v278, %v745
  %v747 = vpop.f32.mrf.mxu0
  %v748 = vadd.f32 %v278, %v747
  %749 = vmatmul.bf16.gmra.mxu0 %v202
  %v750 = vpop.f32.mrf.mxu0
  %v751 = vadd.f32 %v278, %v750
  %v752 = vpop.f32.mrf.mxu0
  %v753 = vadd.f32 %v278, %v752
  %754 = vmatmul.bf16.gmra.mxu0 %v204
  %v755 = vpop.f32.mrf.mxu0
  %v756 = vadd.f32 %v278, %v755
  %v757 = vpop.f32.mrf.mxu0
  %v758 = vadd.f32 %v278, %v757
  %759 = vmatmul.bf16.gmra.mxu0 %v206
  %v760 = vpop.f32.mrf.mxu0
  %v761 = vadd.f32 %v278, %v760
  %v762 = vpop.f32.mrf.mxu0
  %v763 = vadd.f32 %v278, %v762
  %764 = vmatmul.bf16.gmra.mxu0 %v208
  %v765 = vpop.f32.mrf.mxu0
  %v766 = vadd.f32 %v278, %v765
  %v767 = vpop.f32.mrf.mxu0
  %v768 = vadd.f32 %v278, %v767
  %769 = vmatmul.bf16.gmra.mxu0 %v210
  %v770 = vpop.f32.mrf.mxu0
  %v771 = vadd.f32 %v278, %v770
  %v772 = vpop.f32.mrf.mxu0
  %v773 = vadd.f32 %v278, %v772
  %774 = vdwg.mxu0
  %775 = vmatpush.bf16.msra.mxu0 %v538
  %776 = vmatpush.bf16.msra.mxu0 %v534
  %777 = vmatpush.bf16.msra.mxu0 %v530
  %778 = vmatpush.bf16.msra.mxu0 %v526
  %779 = vmatpush.bf16.msra.mxu0 %v522
  %780 = vmatpush.bf16.msra.mxu0 %v518
  %781 = vmatpush.bf16.msra.mxu0 %v514
  %782 = vmatpush.bf16.msra.mxu0 %v510
  %783 = vmatmul.bf16.gmra.mxu0 %v149
  %v784 = vpop.f32.mrf.mxu0
  %v785 = vadd.f32 %v616, %v784
  %v786 = vpop.f32.mrf.mxu0
  %v787 = vadd.f32 %v618, %v786
  %788 = vmatmul.bf16.gmra.mxu0 %v151
  %v789 = vpop.f32.mrf.mxu0
  %v790 = vadd.f32 %v621, %v789
  %v791 = vpop.f32.mrf.mxu0
  %v792 = vadd.f32 %v623, %v791
  %793 = vmatmul.bf16.gmra.mxu0 %v153
  %v794 = vpop.f32.mrf.mxu0
  %v795 = vadd.f32 %v626, %v794
  %v796 = vpop.f32.mrf.mxu0
  %v797 = vadd.f32 %v628, %v796
  %798 = vmatmul.bf16.gmra.mxu0 %v155
  %v799 = vpop.f32.mrf.mxu0
  %v800 = vadd.f32 %v631, %v799
  %v801 = vpop.f32.mrf.mxu0
  %v802 = vadd.f32 %v633, %v801
  %803 = vmatmul.bf16.gmra.mxu0 %v157
  %v804 = vpop.f32.mrf.mxu0
  %v805 = vadd.f32 %v636, %v804
  %v806 = vpop.f32.mrf.mxu0
  %v807 = vadd.f32 %v638, %v806
  %808 = vmatmul.bf16.gmra.mxu0 %v159
  %v809 = vpop.f32.mrf.mxu0
  %v810 = vadd.f32 %v641, %v809
  %v811 = vpop.f32.mrf.mxu0
  %v812 = vadd.f32 %v643, %v811
  %813 = vmatmul.bf16.gmra.mxu0 %v161
  %v814 = vpop.f32.mrf.mxu0
  %v815 = vadd.f32 %v646, %v814
  %v816 = vpop.f32.mrf.mxu0
  %v817 = vadd.f32 %v648, %v816
  %818 = vmatmul.bf16.gmra.mxu0 %v163
  %v819 = vpop.f32.mrf.mxu0
  %v820 = vadd.f32 %v651, %v819
  %v821 = vpop.f32.mrf.mxu0
  %v822 = vadd.f32 %v653, %v821
  %823 = vmatmul.bf16.gmra.mxu0 %v165
  %v824 = vpop.f32.mrf.mxu0
  %v825 = vadd.f32 %v656, %v824
  %v826 = vpop.f32.mrf.mxu0
  %v827 = vadd.f32 %v658, %v826
  %828 = vmatmul.bf16.gmra.mxu0 %v167
  %v829 = vpop.f32.mrf.mxu0
  %v830 = vadd.f32 %v661, %v829
  %v831 = vpop.f32.mrf.mxu0
  %v832 = vadd.f32 %v663, %v831
  %833 = vmatmul.bf16.gmra.mxu0 %v169
  %v834 = vpop.f32.mrf.mxu0
  %v835 = vadd.f32 %v666, %v834
  %v836 = vpop.f32.mrf.mxu0
  %v837 = vadd.f32 %v668, %v836
  %838 = vmatmul.bf16.gmra.mxu0 %v171
  %v839 = vpop.f32.mrf.mxu0
  %v840 = vadd.f32 %v671, %v839
  %v841 = vpop.f32.mrf.mxu0
  %v842 = vadd.f32 %v673, %v841
  %843 = vmatmul.bf16.gmra.mxu0 %v173
  %v844 = vpop.f32.mrf.mxu0
  %v845 = vadd.f32 %v676, %v844
  %v846 = vpop.f32.mrf.mxu0
  %v847 = vadd.f32 %v678, %v846
  %848 = vmatmul.bf16.gmra.mxu0 %v175
  %v849 = vpop.f32.mrf.mxu0
  %v850 = vadd.f32 %v681, %v849
  %v851 = vpop.f32.mrf.mxu0
  %v852 = vadd.f32 %v683, %v851
  %853 = vmatmul.bf16.gmra.mxu0 %v177
  %v854 = vpop.f32.mrf.mxu0
  %v855 = vadd.f32 %v686, %v854
  %v856 = vpop.f32.mrf.mxu0
  %v857 = vadd.f32 %v688, %v856
  %858 = vmatmul.bf16.gmra.mxu0 %v179
  %v859 = vpop.f32.mrf.mxu0
  %v860 = vadd.f32 %v691, %v859
  %v861 = vpop.f32.mrf.mxu0
  %v862 = vadd.f32 %v693, %v861
  %863 = vmatmul.bf16.gmra.mxu0 %v181
  %v864 = vpop.f32.mrf.mxu0
  %v865 = vadd.f32 %v696, %v864
  %v866 = vpop.f32.mrf.mxu0
  %v867 = vadd.f32 %v698, %v866
  %868 = vmatmul.bf16.gmra.mxu0 %v183
  %v869 = vpop.f32.mrf.mxu0
  %v870 = vadd.f32 %v701, %v869
  %v871 = vpop.f32.mrf.mxu0
  %v872 = vadd.f32 %v703, %v871
  %873 = vmatmul.bf16.gmra.mxu0 %v185
  %v874 = vpop.f32.mrf.mxu0
  %v875 = vadd.f32 %v706, %v874
  %v876 = vpop.f32.mrf.mxu0
  %v877 = vadd.f32 %v708, %v876
  %878 = vmatmul.bf16.gmra.mxu0 %v187
  %v879 = vpop.f32.mrf.mxu0
  %v880 = vadd.f32 %v711, %v879
  %v881 = vpop.f32.mrf.mxu0
  %v882 = vadd.f32 %v713, %v881
  %883 = vmatmul.bf16.gmra.mxu0 %v189
  %v884 = vpop.f32.mrf.mxu0
  %v885 = vadd.f32 %v716, %v884
  %v886 = vpop.f32.mrf.mxu0
  %v887 = vadd.f32 %v718, %v886
  %888 = vmatmul.bf16.gmra.mxu0 %v191
  %v889 = vpop.f32.mrf.mxu0
  %v890 = vadd.f32 %v721, %v889
  %v891 = vpop.f32.mrf.mxu0
  %v892 = vadd.f32 %v723, %v891
  %893 = vmatmul.bf16.gmra.mxu0 %v193
  %v894 = vpop.f32.mrf.mxu0
  %v895 = vadd.f32 %v726, %v894
  %v896 = vpop.f32.mrf.mxu0
  %v897 = vadd.f32 %v728, %v896
  %898 = vmatmul.bf16.gmra.mxu0 %v195
  %v899 = vpop.f32.mrf.mxu0
  %v900 = vadd.f32 %v731, %v899
  %v901 = vpop.f32.mrf.mxu0
  %v902 = vadd.f32 %v733, %v901
  %903 = vmatmul.bf16.gmra.mxu0 %v197
  %v904 = vpop.f32.mrf.mxu0
  %v905 = vadd.f32 %v736, %v904
  %v906 = vpop.f32.mrf.mxu0
  %v907 = vadd.f32 %v738, %v906
  %908 = vmatmul.bf16.gmra.mxu0 %v199
  %v909 = vpop.f32.mrf.mxu0
  %v910 = vadd.f32 %v741, %v909
  %v911 = vpop.f32.mrf.mxu0
  %v912 = vadd.f32 %v743, %v911
  %913 = vmatmul.bf16.gmra.mxu0 %v201
  %v914 = vpop.f32.mrf.mxu0
  %v915 = vadd.f32 %v746, %v914
  %v916 = vpop.f32.mrf.mxu0
  %v917 = vadd.f32 %v748, %v916
  %918 = vmatmul.bf16.gmra.mxu0 %v203
  %v919 = vpop.f32.mrf.mxu0
  %v920 = vadd.f32 %v751, %v919
  %v921 = vpop.f32.mrf.mxu0
  %v922 = vadd.f32 %v753, %v921
  %923 = vmatmul.bf16.gmra.mxu0 %v205
  %v924 = vpop.f32.mrf.mxu0
  %v925 = vadd.f32 %v756, %v924
  %v926 = vpop.f32.mrf.mxu0
  %v927 = vadd.f32 %v758, %v926
  %928 = vmatmul.bf16.gmra.mxu0 %v207
  %v929 = vpop.f32.mrf.mxu0
  %v930 = vadd.f32 %v761, %v929
  %v931 = vpop.f32.mrf.mxu0
  %v932 = vadd.f32 %v763, %v931
  %933 = vmatmul.bf16.gmra.mxu0 %v209
  %v934 = vpop.f32.mrf.mxu0
  %v935 = vadd.f32 %v766, %v934
  %v936 = vpop.f32.mrf.mxu0
  %v937 = vadd.f32 %v768, %v936
  %938 = vmatmul.bf16.gmra.mxu0 %v211
  %v939 = vpop.f32.mrf.mxu0
  %v940 = vadd.f32 %v771, %v939
  %v941 = vpop.f32.mrf.mxu0
  %v942 = vadd.f32 %v773, %v941
  %943 = vdwg.mxu0
  %944 = vmatpush.bf16.msra.mxu0 %v507
  %945 = vmatpush.bf16.msra.mxu0 %v503
  %946 = vmatpush.bf16.msra.mxu0 %v499
  %947 = vmatpush.bf16.msra.mxu0 %v495
  %948 = vmatpush.bf16.msra.mxu0 %v491
  %949 = vmatpush.bf16.msra.mxu0 %v487
  %950 = vmatpush.bf16.msra.mxu0 %v483
  %951 = vmatpush.bf16.msra.mxu0 %v479
  %952 = vmatmul.bf16.gmra.mxu0 %v148
  %v953 = vpop.f32.mrf.mxu0
  %v954 = vadd.f32 %v279, %v953
  %v955 = vpop.f32.mrf.mxu0
  %v956 = vadd.f32 %v279, %v955
  %957 = vmatmul.bf16.gmra.mxu0 %v150
  %v958 = vpop.f32.mrf.mxu0
  %v959 = vadd.f32 %v279, %v958
  %v960 = vpop.f32.mrf.mxu0
  %v961 = vadd.f32 %v279, %v960
  %962 = vmatmul.bf16.gmra.mxu0 %v152
  %v963 = vpop.f32.mrf.mxu0
  %v964 = vadd.f32 %v279, %v963
  %v965 = vpop.f32.mrf.mxu0
  %v966 = vadd.f32 %v279, %v965
  %967 = vmatmul.bf16.gmra.mxu0 %v154
  %v968 = vpop.f32.mrf.mxu0
  %v969 = vadd.f32 %v279, %v968
  %v970 = vpop.f32.mrf.mxu0
  %v971 = vadd.f32 %v279, %v970
  %972 = vmatmul.bf16.gmra.mxu0 %v156
  %v973 = vpop.f32.mrf.mxu0
  %v974 = vadd.f32 %v279, %v973
  %v975 = vpop.f32.mrf.mxu0
  %v976 = vadd.f32 %v279, %v975
  %977 = vmatmul.bf16.gmra.mxu0 %v158
  %v978 = vpop.f32.mrf.mxu0
  %v979 = vadd.f32 %v279, %v978
  %v980 = vpop.f32.mrf.mxu0
  %v981 = vadd.f32 %v279, %v980
  %982 = vmatmul.bf16.gmra.mxu0 %v160
  %v983 = vpop.f32.mrf.mxu0
  %v984 = vadd.f32 %v279, %v983
  %v985 = vpop.f32.mrf.mxu0
  %v986 = vadd.f32 %v279, %v985
  %987 = vmatmul.bf16.gmra.mxu0 %v162
  %v988 = vpop.f32.mrf.mxu0
  %v989 = vadd.f32 %v279, %v988
  %v990 = vpop.f32.mrf.mxu0
  %v991 = vadd.f32 %v279, %v990
  %992 = vmatmul.bf16.gmra.mxu0 %v164
  %v993 = vpop.f32.mrf.mxu0
  %v994 = vadd.f32 %v279, %v993
  %v995 = vpop.f32.mrf.mxu0
  %v996 = vadd.f32 %v279, %v995
  %997 = vmatmul.bf16.gmra.mxu0 %v166
  %v998 = vpop.f32.mrf.mxu0
  %v999 = vadd.f32 %v279, %v998
  %v1000 = vpop.f32.mrf.mxu0
  %v1001 = vadd.f32 %v279, %v1000
  %1002 = vmatmul.bf16.gmra.mxu0 %v168
  %v1003 = vpop.f32.mrf.mxu0
  %v1004 = vadd.f32 %v279, %v1003
  %v1005 = vpop.f32.mrf.mxu0
  %v1006 = vadd.f32 %v279, %v1005
  %1007 = vmatmul.bf16.gmra.mxu0 %v170
  %v1008 = vpop.f32.mrf.mxu0
  %v1009 = vadd.f32 %v279, %v1008
  %v1010 = vpop.f32.mrf.mxu0
  %v1011 = vadd.f32 %v279, %v1010
  %1012 = vmatmul.bf16.gmra.mxu0 %v172
  %v1013 = vpop.f32.mrf.mxu0
  %v1014 = vadd.f32 %v279, %v1013
  %v1015 = vpop.f32.mrf.mxu0
  %v1016 = vadd.f32 %v279, %v1015
  %1017 = vmatmul.bf16.gmra.mxu0 %v174
  %v1018 = vpop.f32.mrf.mxu0
  %v1019 = vadd.f32 %v279, %v1018
  %v1020 = vpop.f32.mrf.mxu0
  %v1021 = vadd.f32 %v279, %v1020
  %1022 = vmatmul.bf16.gmra.mxu0 %v176
  %v1023 = vpop.f32.mrf.mxu0
  %v1024 = vadd.f32 %v279, %v1023
  %v1025 = vpop.f32.mrf.mxu0
  %v1026 = vadd.f32 %v279, %v1025
  %1027 = vmatmul.bf16.gmra.mxu0 %v178
  %v1028 = vpop.f32.mrf.mxu0
  %v1029 = vadd.f32 %v279, %v1028
  %v1030 = vpop.f32.mrf.mxu0
  %v1031 = vadd.f32 %v279, %v1030
  %1032 = vmatmul.bf16.gmra.mxu0 %v180
  %v1033 = vpop.f32.mrf.mxu0
  %v1034 = vadd.f32 %v279, %v1033
  %v1035 = vpop.f32.mrf.mxu0
  %v1036 = vadd.f32 %v279, %v1035
  %1037 = vmatmul.bf16.gmra.mxu0 %v182
  %v1038 = vpop.f32.mrf.mxu0
  %v1039 = vadd.f32 %v279, %v1038
  %v1040 = vpop.f32.mrf.mxu0
  %v1041 = vadd.f32 %v279, %v1040
  %1042 = vmatmul.bf16.gmra.mxu0 %v184
  %v1043 = vpop.f32.mrf.mxu0
  %v1044 = vadd.f32 %v279, %v1043
  %v1045 = vpop.f32.mrf.mxu0
  %v1046 = vadd.f32 %v279, %v1045
  %1047 = vmatmul.bf16.gmra.mxu0 %v186
  %v1048 = vpop.f32.mrf.mxu0
  %v1049 = vadd.f32 %v279, %v1048
  %v1050 = vpop.f32.mrf.mxu0
  %v1051 = vadd.f32 %v279, %v1050
  %1052 = vmatmul.bf16.gmra.mxu0 %v188
  %v1053 = vpop.f32.mrf.mxu0
  %v1054 = vadd.f32 %v279, %v1053
  %v1055 = vpop.f32.mrf.mxu0
  %v1056 = vadd.f32 %v279, %v1055
  %1057 = vmatmul.bf16.gmra.mxu0 %v190
  %v1058 = vpop.f32.mrf.mxu0
  %v1059 = vadd.f32 %v279, %v1058
  %v1060 = vpop.f32.mrf.mxu0
  %v1061 = vadd.f32 %v279, %v1060
  %1062 = vmatmul.bf16.gmra.mxu0 %v192
  %v1063 = vpop.f32.mrf.mxu0
  %v1064 = vadd.f32 %v279, %v1063
  %v1065 = vpop.f32.mrf.mxu0
  %v1066 = vadd.f32 %v279, %v1065
  %1067 = vmatmul.bf16.gmra.mxu0 %v194
  %v1068 = vpop.f32.mrf.mxu0
  %v1069 = vadd.f32 %v279, %v1068
  %v1070 = vpop.f32.mrf.mxu0
  %v1071 = vadd.f32 %v279, %v1070
  %1072 = vmatmul.bf16.gmra.mxu0 %v196
  %v1073 = vpop.f32.mrf.mxu0
  %v1074 = vadd.f32 %v279, %v1073
  %v1075 = vpop.f32.mrf.mxu0
  %v1076 = vadd.f32 %v279, %v1075
  %1077 = vmatmul.bf16.gmra.mxu0 %v198
  %v1078 = vpop.f32.mrf.mxu0
  %v1079 = vadd.f32 %v279, %v1078
  %v1080 = vpop.f32.mrf.mxu0
  %v1081 = vadd.f32 %v279, %v1080
  %1082 = vmatmul.bf16.gmra.mxu0 %v200
  %v1083 = vpop.f32.mrf.mxu0
  %v1084 = vadd.f32 %v279, %v1083
  %v1085 = vpop.f32.mrf.mxu0
  %v1086 = vadd.f32 %v279, %v1085
  %1087 = vmatmul.bf16.gmra.mxu0 %v202
  %v1088 = vpop.f32.mrf.mxu0
  %v1089 = vadd.f32 %v279, %v1088
  %v1090 = vpop.f32.mrf.mxu0
  %v1091 = vadd.f32 %v279, %v1090
  %1092 = vmatmul.bf16.gmra.mxu0 %v204
  %v1093 = vpop.f32.mrf.mxu0
  %v1094 = vadd.f32 %v279, %v1093
  %v1095 = vpop.f32.mrf.mxu0
  %v1096 = vadd.f32 %v279, %v1095
  %1097 = vmatmul.bf16.gmra.mxu0 %v206
  %v1098 = vpop.f32.mrf.mxu0
  %v1099 = vadd.f32 %v279, %v1098
  %v1100 = vpop.f32.mrf.mxu0
  %v1101 = vadd.f32 %v279, %v1100
  %1102 = vmatmul.bf16.gmra.mxu0 %v208
  %v1103 = vpop.f32.mrf.mxu0
  %v1104 = vadd.f32 %v279, %v1103
  %v1105 = vpop.f32.mrf.mxu0
  %v1106 = vadd.f32 %v279, %v1105
  %1107 = vmatmul.bf16.gmra.mxu0 %v210
  %v1108 = vpop.f32.mrf.mxu0
  %v1109 = vadd.f32 %v279, %v1108
  %v1110 = vpop.f32.mrf.mxu0
  %v1111 = vadd.f32 %v279, %v1110
  %1112 = vdwg.mxu0
  %1113 = vmatpush.bf16.msra.mxu0 %v539
  %1114 = vmatpush.bf16.msra.mxu0 %v535
  %1115 = vmatpush.bf16.msra.mxu0 %v531
  %1116 = vmatpush.bf16.msra.mxu0 %v527
  %1117 = vmatpush.bf16.msra.mxu0 %v523
  %1118 = vmatpush.bf16.msra.mxu0 %v519
  %1119 = vmatpush.bf16.msra.mxu0 %v515
  %1120 = vmatpush.bf16.msra.mxu0 %v511
  %1121 = vmatmul.bf16.gmra.mxu0 %v149
  %v1122 = vpop.f32.mrf.mxu0
  %v1123 = vadd.f32 %v954, %v1122
  %v1124 = vpop.f32.mrf.mxu0
  %v1125 = vadd.f32 %v956, %v1124
  %1126 = vmatmul.bf16.gmra.mxu0 %v151
  %v1127 = vpop.f32.mrf.mxu0
  %v1128 = vadd.f32 %v959, %v1127
  %v1129 = vpop.f32.mrf.mxu0
  %v1130 = vadd.f32 %v961, %v1129
  %1131 = vmatmul.bf16.gmra.mxu0 %v153
  %v1132 = vpop.f32.mrf.mxu0
  %v1133 = vadd.f32 %v964, %v1132
  %v1134 = vpop.f32.mrf.mxu0
  %v1135 = vadd.f32 %v966, %v1134
  %1136 = vmatmul.bf16.gmra.mxu0 %v155
  %v1137 = vpop.f32.mrf.mxu0
  %v1138 = vadd.f32 %v969, %v1137
  %v1139 = vpop.f32.mrf.mxu0
  %v1140 = vadd.f32 %v971, %v1139
  %1141 = vmatmul.bf16.gmra.mxu0 %v157
  %v1142 = vpop.f32.mrf.mxu0
  %v1143 = vadd.f32 %v974, %v1142
  %v1144 = vpop.f32.mrf.mxu0
  %v1145 = vadd.f32 %v976, %v1144
  %1146 = vmatmul.bf16.gmra.mxu0 %v159
  %v1147 = vpop.f32.mrf.mxu0
  %v1148 = vadd.f32 %v979, %v1147
  %v1149 = vpop.f32.mrf.mxu0
  %v1150 = vadd.f32 %v981, %v1149
  %1151 = vmatmul.bf16.gmra.mxu0 %v161
  %v1152 = vpop.f32.mrf.mxu0
  %v1153 = vadd.f32 %v984, %v1152
  %v1154 = vpop.f32.mrf.mxu0
  %v1155 = vadd.f32 %v986, %v1154
  %1156 = vmatmul.bf16.gmra.mxu0 %v163
  %v1157 = vpop.f32.mrf.mxu0
  %v1158 = vadd.f32 %v989, %v1157
  %v1159 = vpop.f32.mrf.mxu0
  %v1160 = vadd.f32 %v991, %v1159
  %1161 = vmatmul.bf16.gmra.mxu0 %v165
  %v1162 = vpop.f32.mrf.mxu0
  %v1163 = vadd.f32 %v994, %v1162
  %v1164 = vpop.f32.mrf.mxu0
  %v1165 = vadd.f32 %v996, %v1164
  %1166 = vmatmul.bf16.gmra.mxu0 %v167
  %v1167 = vpop.f32.mrf.mxu0
  %v1168 = vadd.f32 %v999, %v1167
  %v1169 = vpop.f32.mrf.mxu0
  %v1170 = vadd.f32 %v1001, %v1169
  %1171 = vmatmul.bf16.gmra.mxu0 %v169
  %v1172 = vpop.f32.mrf.mxu0
  %v1173 = vadd.f32 %v1004, %v1172
  %v1174 = vpop.f32.mrf.mxu0
  %v1175 = vadd.f32 %v1006, %v1174
  %1176 = vmatmul.bf16.gmra.mxu0 %v171
  %v1177 = vpop.f32.mrf.mxu0
  %v1178 = vadd.f32 %v1009, %v1177
  %v1179 = vpop.f32.mrf.mxu0
  %v1180 = vadd.f32 %v1011, %v1179
  %1181 = vmatmul.bf16.gmra.mxu0 %v173
  %v1182 = vpop.f32.mrf.mxu0
  %v1183 = vadd.f32 %v1014, %v1182
  %v1184 = vpop.f32.mrf.mxu0
  %v1185 = vadd.f32 %v1016, %v1184
  %1186 = vmatmul.bf16.gmra.mxu0 %v175
  %v1187 = vpop.f32.mrf.mxu0
  %v1188 = vadd.f32 %v1019, %v1187
  %v1189 = vpop.f32.mrf.mxu0
  %v1190 = vadd.f32 %v1021, %v1189
  %1191 = vmatmul.bf16.gmra.mxu0 %v177
  %v1192 = vpop.f32.mrf.mxu0
  %v1193 = vadd.f32 %v1024, %v1192
  %v1194 = vpop.f32.mrf.mxu0
  %v1195 = vadd.f32 %v1026, %v1194
  %1196 = vmatmul.bf16.gmra.mxu0 %v179
  %v1197 = vpop.f32.mrf.mxu0
  %v1198 = vadd.f32 %v1029, %v1197
  %v1199 = vpop.f32.mrf.mxu0
  %v1200 = vadd.f32 %v1031, %v1199
  %1201 = vmatmul.bf16.gmra.mxu0 %v181
  %v1202 = vpop.f32.mrf.mxu0
  %v1203 = vadd.f32 %v1034, %v1202
  %v1204 = vpop.f32.mrf.mxu0
  %v1205 = vadd.f32 %v1036, %v1204
  %1206 = vmatmul.bf16.gmra.mxu0 %v183
  %v1207 = vpop.f32.mrf.mxu0
  %v1208 = vadd.f32 %v1039, %v1207
  %v1209 = vpop.f32.mrf.mxu0
  %v1210 = vadd.f32 %v1041, %v1209
  %1211 = vmatmul.bf16.gmra.mxu0 %v185
  %v1212 = vpop.f32.mrf.mxu0
  %v1213 = vadd.f32 %v1044, %v1212
  %v1214 = vpop.f32.mrf.mxu0
  %v1215 = vadd.f32 %v1046, %v1214
  %1216 = vmatmul.bf16.gmra.mxu0 %v187
  %v1217 = vpop.f32.mrf.mxu0
  %v1218 = vadd.f32 %v1049, %v1217
  %v1219 = vpop.f32.mrf.mxu0
  %v1220 = vadd.f32 %v1051, %v1219
  %1221 = vmatmul.bf16.gmra.mxu0 %v189
  %v1222 = vpop.f32.mrf.mxu0
  %v1223 = vadd.f32 %v1054, %v1222
  %v1224 = vpop.f32.mrf.mxu0
  %v1225 = vadd.f32 %v1056, %v1224
  %1226 = vmatmul.bf16.gmra.mxu0 %v191
  %v1227 = vpop.f32.mrf.mxu0
  %v1228 = vadd.f32 %v1059, %v1227
  %v1229 = vpop.f32.mrf.mxu0
  %v1230 = vadd.f32 %v1061, %v1229
  %1231 = vmatmul.bf16.gmra.mxu0 %v193
  %v1232 = vpop.f32.mrf.mxu0
  %v1233 = vadd.f32 %v1064, %v1232
  %v1234 = vpop.f32.mrf.mxu0
  %v1235 = vadd.f32 %v1066, %v1234
  %1236 = vmatmul.bf16.gmra.mxu0 %v195
  %v1237 = vpop.f32.mrf.mxu0
  %v1238 = vadd.f32 %v1069, %v1237
  %v1239 = vpop.f32.mrf.mxu0
  %v1240 = vadd.f32 %v1071, %v1239
  %1241 = vmatmul.bf16.gmra.mxu0 %v197
  %v1242 = vpop.f32.mrf.mxu0
  %v1243 = vadd.f32 %v1074, %v1242
  %v1244 = vpop.f32.mrf.mxu0
  %v1245 = vadd.f32 %v1076, %v1244
  %1246 = vmatmul.bf16.gmra.mxu0 %v199
  %v1247 = vpop.f32.mrf.mxu0
  %v1248 = vadd.f32 %v1079, %v1247
  %v1249 = vpop.f32.mrf.mxu0
  %v1250 = vadd.f32 %v1081, %v1249
  %1251 = vmatmul.bf16.gmra.mxu0 %v201
  %v1252 = vpop.f32.mrf.mxu0
  %v1253 = vadd.f32 %v1084, %v1252
  %v1254 = vpop.f32.mrf.mxu0
  %v1255 = vadd.f32 %v1086, %v1254
  %1256 = vmatmul.bf16.gmra.mxu0 %v203
  %v1257 = vpop.f32.mrf.mxu0
  %v1258 = vadd.f32 %v1089, %v1257
  %v1259 = vpop.f32.mrf.mxu0
  %v1260 = vadd.f32 %v1091, %v1259
  %1261 = vmatmul.bf16.gmra.mxu0 %v205
  %v1262 = vpop.f32.mrf.mxu0
  %v1263 = vadd.f32 %v1094, %v1262
  %v1264 = vpop.f32.mrf.mxu0
  %v1265 = vadd.f32 %v1096, %v1264
  %1266 = vmatmul.bf16.gmra.mxu0 %v207
  %v1267 = vpop.f32.mrf.mxu0
  %v1268 = vadd.f32 %v1099, %v1267
  %v1269 = vpop.f32.mrf.mxu0
  %v1270 = vadd.f32 %v1101, %v1269
  %1271 = vmatmul.bf16.gmra.mxu0 %v209
  %v1272 = vpop.f32.mrf.mxu0
  %v1273 = vadd.f32 %v1104, %v1272
  %v1274 = vpop.f32.mrf.mxu0
  %v1275 = vadd.f32 %v1106, %v1274
  %1276 = vmatmul.bf16.gmra.mxu0 %v211
  %v1277 = vpop.f32.mrf.mxu0
  %v1278 = vadd.f32 %v1109, %v1277
  %v1279 = vpop.f32.mrf.mxu0
  %v1280 = vadd.f32 %v1111, %v1279
  %1281 = vdwg.mxu0
  %1282 = vmatpush.bf16.msra.mxu0 %v508
  %1283 = vmatpush.bf16.msra.mxu0 %v504
  %1284 = vmatpush.bf16.msra.mxu0 %v500
  %1285 = vmatpush.bf16.msra.mxu0 %v496
  %1286 = vmatpush.bf16.msra.mxu0 %v492
  %1287 = vmatpush.bf16.msra.mxu0 %v488
  %1288 = vmatpush.bf16.msra.mxu0 %v484
  %1289 = vmatpush.bf16.msra.mxu0 %v480
  %1290 = vmatmul.bf16.gmra.mxu0 %v148
  %v1291 = vpop.f32.mrf.mxu0
  %v1292 = vadd.f32 %v280, %v1291
  %v1293 = vpop.f32.mrf.mxu0
  %v1294 = vadd.f32 %v280, %v1293
  %1295 = vmatmul.bf16.gmra.mxu0 %v150
  %v1296 = vpop.f32.mrf.mxu0
  %v1297 = vadd.f32 %v280, %v1296
  %v1298 = vpop.f32.mrf.mxu0
  %v1299 = vadd.f32 %v280, %v1298
  %1300 = vmatmul.bf16.gmra.mxu0 %v152
  %v1301 = vpop.f32.mrf.mxu0
  %v1302 = vadd.f32 %v280, %v1301
  %v1303 = vpop.f32.mrf.mxu0
  %v1304 = vadd.f32 %v280, %v1303
  %1305 = vmatmul.bf16.gmra.mxu0 %v154
  %v1306 = vpop.f32.mrf.mxu0
  %v1307 = vadd.f32 %v280, %v1306
  %v1308 = vpop.f32.mrf.mxu0
  %v1309 = vadd.f32 %v280, %v1308
  %1310 = vmatmul.bf16.gmra.mxu0 %v156
  %v1311 = vpop.f32.mrf.mxu0
  %v1312 = vadd.f32 %v280, %v1311
  %v1313 = vpop.f32.mrf.mxu0
  %v1314 = vadd.f32 %v280, %v1313
  %1315 = vmatmul.bf16.gmra.mxu0 %v158
  %v1316 = vpop.f32.mrf.mxu0
  %v1317 = vadd.f32 %v280, %v1316
  %v1318 = vpop.f32.mrf.mxu0
  %v1319 = vadd.f32 %v280, %v1318
  %1320 = vmatmul.bf16.gmra.mxu0 %v160
  %v1321 = vpop.f32.mrf.mxu0
  %v1322 = vadd.f32 %v280, %v1321
  %v1323 = vpop.f32.mrf.mxu0
  %v1324 = vadd.f32 %v280, %v1323
  %1325 = vmatmul.bf16.gmra.mxu0 %v162
  %v1326 = vpop.f32.mrf.mxu0
  %v1327 = vadd.f32 %v280, %v1326
  %v1328 = vpop.f32.mrf.mxu0
  %v1329 = vadd.f32 %v280, %v1328
  %1330 = vmatmul.bf16.gmra.mxu0 %v164
  %v1331 = vpop.f32.mrf.mxu0
  %v1332 = vadd.f32 %v280, %v1331
  %v1333 = vpop.f32.mrf.mxu0
  %v1334 = vadd.f32 %v280, %v1333
  %1335 = vmatmul.bf16.gmra.mxu0 %v166
  %v1336 = vpop.f32.mrf.mxu0
  %v1337 = vadd.f32 %v280, %v1336
  %v1338 = vpop.f32.mrf.mxu0
  %v1339 = vadd.f32 %v280, %v1338
  %1340 = vmatmul.bf16.gmra.mxu0 %v168
  %v1341 = vpop.f32.mrf.mxu0
  %v1342 = vadd.f32 %v280, %v1341
  %v1343 = vpop.f32.mrf.mxu0
  %v1344 = vadd.f32 %v280, %v1343
  %1345 = vmatmul.bf16.gmra.mxu0 %v170
  %v1346 = vpop.f32.mrf.mxu0
  %v1347 = vadd.f32 %v280, %v1346
  %v1348 = vpop.f32.mrf.mxu0
  %v1349 = vadd.f32 %v280, %v1348
  %1350 = vmatmul.bf16.gmra.mxu0 %v172
  %v1351 = vpop.f32.mrf.mxu0
  %v1352 = vadd.f32 %v280, %v1351
  %v1353 = vpop.f32.mrf.mxu0
  %v1354 = vadd.f32 %v280, %v1353
  %1355 = vmatmul.bf16.gmra.mxu0 %v174
  %v1356 = vpop.f32.mrf.mxu0
  %v1357 = vadd.f32 %v280, %v1356
  %v1358 = vpop.f32.mrf.mxu0
  %v1359 = vadd.f32 %v280, %v1358
  %1360 = vmatmul.bf16.gmra.mxu0 %v176
  %v1361 = vpop.f32.mrf.mxu0
  %v1362 = vadd.f32 %v280, %v1361
  %v1363 = vpop.f32.mrf.mxu0
  %v1364 = vadd.f32 %v280, %v1363
  %1365 = vmatmul.bf16.gmra.mxu0 %v178
  %v1366 = vpop.f32.mrf.mxu0
  %v1367 = vadd.f32 %v280, %v1366
  %v1368 = vpop.f32.mrf.mxu0
  %v1369 = vadd.f32 %v280, %v1368
  %1370 = vmatmul.bf16.gmra.mxu0 %v180
  %v1371 = vpop.f32.mrf.mxu0
  %v1372 = vadd.f32 %v280, %v1371
  %v1373 = vpop.f32.mrf.mxu0
  %v1374 = vadd.f32 %v280, %v1373
  %1375 = vmatmul.bf16.gmra.mxu0 %v182
  %v1376 = vpop.f32.mrf.mxu0
  %v1377 = vadd.f32 %v280, %v1376
  %v1378 = vpop.f32.mrf.mxu0
  %v1379 = vadd.f32 %v280, %v1378
  %1380 = vmatmul.bf16.gmra.mxu0 %v184
  %v1381 = vpop.f32.mrf.mxu0
  %v1382 = vadd.f32 %v280, %v1381
  %v1383 = vpop.f32.mrf.mxu0
  %v1384 = vadd.f32 %v280, %v1383
  %1385 = vmatmul.bf16.gmra.mxu0 %v186
  %v1386 = vpop.f32.mrf.mxu0
  %v1387 = vadd.f32 %v280, %v1386
  %v1388 = vpop.f32.mrf.mxu0
  %v1389 = vadd.f32 %v280, %v1388
  %1390 = vmatmul.bf16.gmra.mxu0 %v188
  %v1391 = vpop.f32.mrf.mxu0
  %v1392 = vadd.f32 %v280, %v1391
  %v1393 = vpop.f32.mrf.mxu0
  %v1394 = vadd.f32 %v280, %v1393
  %1395 = vmatmul.bf16.gmra.mxu0 %v190
  %v1396 = vpop.f32.mrf.mxu0
  %v1397 = vadd.f32 %v280, %v1396
  %v1398 = vpop.f32.mrf.mxu0
  %v1399 = vadd.f32 %v280, %v1398
  %1400 = vmatmul.bf16.gmra.mxu0 %v192
  %v1401 = vpop.f32.mrf.mxu0
  %v1402 = vadd.f32 %v280, %v1401
  %v1403 = vpop.f32.mrf.mxu0
  %v1404 = vadd.f32 %v280, %v1403
  %1405 = vmatmul.bf16.gmra.mxu0 %v194
  %v1406 = vpop.f32.mrf.mxu0
  %v1407 = vadd.f32 %v280, %v1406
  %v1408 = vpop.f32.mrf.mxu0
  %v1409 = vadd.f32 %v280, %v1408
  %1410 = vmatmul.bf16.gmra.mxu0 %v196
  %v1411 = vpop.f32.mrf.mxu0
  %v1412 = vadd.f32 %v280, %v1411
  %v1413 = vpop.f32.mrf.mxu0
  %v1414 = vadd.f32 %v280, %v1413
  %1415 = vmatmul.bf16.gmra.mxu0 %v198
  %v1416 = vpop.f32.mrf.mxu0
  %v1417 = vadd.f32 %v280, %v1416
  %v1418 = vpop.f32.mrf.mxu0
  %v1419 = vadd.f32 %v280, %v1418
  %1420 = vmatmul.bf16.gmra.mxu0 %v200
  %v1421 = vpop.f32.mrf.mxu0
  %v1422 = vadd.f32 %v280, %v1421
  %v1423 = vpop.f32.mrf.mxu0
  %v1424 = vadd.f32 %v280, %v1423
  %1425 = vmatmul.bf16.gmra.mxu0 %v202
  %v1426 = vpop.f32.mrf.mxu0
  %v1427 = vadd.f32 %v280, %v1426
  %v1428 = vpop.f32.mrf.mxu0
  %v1429 = vadd.f32 %v280, %v1428
  %1430 = vmatmul.bf16.gmra.mxu0 %v204
  %v1431 = vpop.f32.mrf.mxu0
  %v1432 = vadd.f32 %v280, %v1431
  %v1433 = vpop.f32.mrf.mxu0
  %v1434 = vadd.f32 %v280, %v1433
  %1435 = vmatmul.bf16.gmra.mxu0 %v206
  %v1436 = vpop.f32.mrf.mxu0
  %v1437 = vadd.f32 %v280, %v1436
  %v1438 = vpop.f32.mrf.mxu0
  %v1439 = vadd.f32 %v280, %v1438
  %1440 = vmatmul.bf16.gmra.mxu0 %v208
  %v1441 = vpop.f32.mrf.mxu0
  %v1442 = vadd.f32 %v280, %v1441
  %v1443 = vpop.f32.mrf.mxu0
  %v1444 = vadd.f32 %v280, %v1443
  %1445 = vmatmul.bf16.gmra.mxu0 %v210
  %v1446 = vpop.f32.mrf.mxu0
  %v1447 = vadd.f32 %v280, %v1446
  %v1448 = vpop.f32.mrf.mxu0
  %v1449 = vadd.f32 %v280, %v1448
  %1450 = vdwg.mxu0
  %1451 = vmatpush.bf16.msra.mxu0 %v540
  %1452 = vmatpush.bf16.msra.mxu0 %v536
  %1453 = vmatpush.bf16.msra.mxu0 %v532
  %1454 = vmatpush.bf16.msra.mxu0 %v528
  %1455 = vmatpush.bf16.msra.mxu0 %v524
  %1456 = vmatpush.bf16.msra.mxu0 %v520
  %1457 = vmatpush.bf16.msra.mxu0 %v516
  %1458 = vmatpush.bf16.msra.mxu0 %v512
  %1459 = vmatmul.bf16.gmra.mxu0 %v149
  %v1460 = vpop.f32.mrf.mxu0
  %v1461 = vadd.f32 %v1292, %v1460
  %v1462 = vpop.f32.mrf.mxu0
  %v1463 = vadd.f32 %v1294, %v1462
  %1464 = vmatmul.bf16.gmra.mxu0 %v151
  %v1465 = vpop.f32.mrf.mxu0
  %v1466 = vadd.f32 %v1297, %v1465
  %v1467 = vpop.f32.mrf.mxu0
  %v1468 = vadd.f32 %v1299, %v1467
  %1469 = vmatmul.bf16.gmra.mxu0 %v153
  %v1470 = vpop.f32.mrf.mxu0
  %v1471 = vadd.f32 %v1302, %v1470
  %v1472 = vpop.f32.mrf.mxu0
  %v1473 = vadd.f32 %v1304, %v1472
  %1474 = vmatmul.bf16.gmra.mxu0 %v155
  %v1475 = vpop.f32.mrf.mxu0
  %v1476 = vadd.f32 %v1307, %v1475
  %v1477 = vpop.f32.mrf.mxu0
  %v1478 = vadd.f32 %v1309, %v1477
  %1479 = vmatmul.bf16.gmra.mxu0 %v157
  %v1480 = vpop.f32.mrf.mxu0
  %v1481 = vadd.f32 %v1312, %v1480
  %v1482 = vpop.f32.mrf.mxu0
  %v1483 = vadd.f32 %v1314, %v1482
  %1484 = vmatmul.bf16.gmra.mxu0 %v159
  %v1485 = vpop.f32.mrf.mxu0
  %v1486 = vadd.f32 %v1317, %v1485
  %v1487 = vpop.f32.mrf.mxu0
  %v1488 = vadd.f32 %v1319, %v1487
  %1489 = vmatmul.bf16.gmra.mxu0 %v161
  %v1490 = vpop.f32.mrf.mxu0
  %v1491 = vadd.f32 %v1322, %v1490
  %v1492 = vpop.f32.mrf.mxu0
  %v1493 = vadd.f32 %v1324, %v1492
  %1494 = vmatmul.bf16.gmra.mxu0 %v163
  %v1495 = vpop.f32.mrf.mxu0
  %v1496 = vadd.f32 %v1327, %v1495
  %v1497 = vpop.f32.mrf.mxu0
  %v1498 = vadd.f32 %v1329, %v1497
  %1499 = vmatmul.bf16.gmra.mxu0 %v165
  %v1500 = vpop.f32.mrf.mxu0
  %v1501 = vadd.f32 %v1332, %v1500
  %v1502 = vpop.f32.mrf.mxu0
  %v1503 = vadd.f32 %v1334, %v1502
  %1504 = vmatmul.bf16.gmra.mxu0 %v167
  %v1505 = vpop.f32.mrf.mxu0
  %v1506 = vadd.f32 %v1337, %v1505
  %v1507 = vpop.f32.mrf.mxu0
  %v1508 = vadd.f32 %v1339, %v1507
  %1509 = vmatmul.bf16.gmra.mxu0 %v169
  %v1510 = vpop.f32.mrf.mxu0
  %v1511 = vadd.f32 %v1342, %v1510
  %v1512 = vpop.f32.mrf.mxu0
  %v1513 = vadd.f32 %v1344, %v1512
  %1514 = vmatmul.bf16.gmra.mxu0 %v171
  %v1515 = vpop.f32.mrf.mxu0
  %v1516 = vadd.f32 %v1347, %v1515
  %v1517 = vpop.f32.mrf.mxu0
  %v1518 = vadd.f32 %v1349, %v1517
  %1519 = vmatmul.bf16.gmra.mxu0 %v173
  %v1520 = vpop.f32.mrf.mxu0
  %v1521 = vadd.f32 %v1352, %v1520
  %v1522 = vpop.f32.mrf.mxu0
  %v1523 = vadd.f32 %v1354, %v1522
  %1524 = vmatmul.bf16.gmra.mxu0 %v175
  %v1525 = vpop.f32.mrf.mxu0
  %v1526 = vadd.f32 %v1357, %v1525
  %v1527 = vpop.f32.mrf.mxu0
  %v1528 = vadd.f32 %v1359, %v1527
  %1529 = vmatmul.bf16.gmra.mxu0 %v177
  %v1530 = vpop.f32.mrf.mxu0
  %v1531 = vadd.f32 %v1362, %v1530
  %v1532 = vpop.f32.mrf.mxu0
  %v1533 = vadd.f32 %v1364, %v1532
  %1534 = vmatmul.bf16.gmra.mxu0 %v179
  %v1535 = vpop.f32.mrf.mxu0
  %v1536 = vadd.f32 %v1367, %v1535
  %v1537 = vpop.f32.mrf.mxu0
  %v1538 = vadd.f32 %v1369, %v1537
  %1539 = vmatmul.bf16.gmra.mxu0 %v181
  %v1540 = vpop.f32.mrf.mxu0
  %v1541 = vadd.f32 %v1372, %v1540
  %v1542 = vpop.f32.mrf.mxu0
  %v1543 = vadd.f32 %v1374, %v1542
  %1544 = vmatmul.bf16.gmra.mxu0 %v183
  %v1545 = vpop.f32.mrf.mxu0
  %v1546 = vadd.f32 %v1377, %v1545
  %v1547 = vpop.f32.mrf.mxu0
  %v1548 = vadd.f32 %v1379, %v1547
  %1549 = vmatmul.bf16.gmra.mxu0 %v185
  %v1550 = vpop.f32.mrf.mxu0
  %v1551 = vadd.f32 %v1382, %v1550
  %v1552 = vpop.f32.mrf.mxu0
  %v1553 = vadd.f32 %v1384, %v1552
  %1554 = vmatmul.bf16.gmra.mxu0 %v187
  %v1555 = vpop.f32.mrf.mxu0
  %v1556 = vadd.f32 %v1387, %v1555
  %v1557 = vpop.f32.mrf.mxu0
  %v1558 = vadd.f32 %v1389, %v1557
  %1559 = vmatmul.bf16.gmra.mxu0 %v189
  %v1560 = vpop.f32.mrf.mxu0
  %v1561 = vadd.f32 %v1392, %v1560
  %v1562 = vpop.f32.mrf.mxu0
  %v1563 = vadd.f32 %v1394, %v1562
  %1564 = vmatmul.bf16.gmra.mxu0 %v191
  %v1565 = vpop.f32.mrf.mxu0
  %v1566 = vadd.f32 %v1397, %v1565
  %v1567 = vpop.f32.mrf.mxu0
  %v1568 = vadd.f32 %v1399, %v1567
  %1569 = vmatmul.bf16.gmra.mxu0 %v193
  %v1570 = vpop.f32.mrf.mxu0
  %v1571 = vadd.f32 %v1402, %v1570
  %v1572 = vpop.f32.mrf.mxu0
  %v1573 = vadd.f32 %v1404, %v1572
  %1574 = vmatmul.bf16.gmra.mxu0 %v195
  %v1575 = vpop.f32.mrf.mxu0
  %v1576 = vadd.f32 %v1407, %v1575
  %v1577 = vpop.f32.mrf.mxu0
  %v1578 = vadd.f32 %v1409, %v1577
  %1579 = vmatmul.bf16.gmra.mxu0 %v197
  %v1580 = vpop.f32.mrf.mxu0
  %v1581 = vadd.f32 %v1412, %v1580
  %v1582 = vpop.f32.mrf.mxu0
  %v1583 = vadd.f32 %v1414, %v1582
  %1584 = vmatmul.bf16.gmra.mxu0 %v199
  %v1585 = vpop.f32.mrf.mxu0
  %v1586 = vadd.f32 %v1417, %v1585
  %v1587 = vpop.f32.mrf.mxu0
  %v1588 = vadd.f32 %v1419, %v1587
  %1589 = vmatmul.bf16.gmra.mxu0 %v201
  %v1590 = vpop.f32.mrf.mxu0
  %v1591 = vadd.f32 %v1422, %v1590
  %v1592 = vpop.f32.mrf.mxu0
  %v1593 = vadd.f32 %v1424, %v1592
  %1594 = vmatmul.bf16.gmra.mxu0 %v203
  %v1595 = vpop.f32.mrf.mxu0
  %v1596 = vadd.f32 %v1427, %v1595
  %v1597 = vpop.f32.mrf.mxu0
  %v1598 = vadd.f32 %v1429, %v1597
  %1599 = vmatmul.bf16.gmra.mxu0 %v205
  %v1600 = vpop.f32.mrf.mxu0
  %v1601 = vadd.f32 %v1432, %v1600
  %v1602 = vpop.f32.mrf.mxu0
  %v1603 = vadd.f32 %v1434, %v1602
  %1604 = vmatmul.bf16.gmra.mxu0 %v207
  %v1605 = vpop.f32.mrf.mxu0
  %v1606 = vadd.f32 %v1437, %v1605
  %v1607 = vpop.f32.mrf.mxu0
  %v1608 = vadd.f32 %v1439, %v1607
  %1609 = vmatmul.bf16.gmra.mxu0 %v209
  %v1610 = vpop.f32.mrf.mxu0
  %v1611 = vadd.f32 %v1442, %v1610
  %v1612 = vpop.f32.mrf.mxu0
  %v1613 = vadd.f32 %v1444, %v1612
  %1614 = vmatmul.bf16.gmra.mxu0 %v211
  %v1615 = vpop.f32.mrf.mxu0
  %v1616 = vadd.f32 %v1447, %v1615
  %v1617 = vpop.f32.mrf.mxu0
  %v1618 = vadd.f32 %v1449, %v1617
  %1619 = vdwg.mxu0
  %1620 = vmatpush.bf16.msra.mxu0 %v509
  %1621 = vmatpush.bf16.msra.mxu0 %v505
  %1622 = vmatpush.bf16.msra.mxu0 %v501
  %1623 = vmatpush.bf16.msra.mxu0 %v497
  %1624 = vmatpush.bf16.msra.mxu0 %v493
  %1625 = vmatpush.bf16.msra.mxu0 %v489
  %1626 = vmatpush.bf16.msra.mxu0 %v485
  %1627 = vmatpush.bf16.msra.mxu0 %v481
  %1628 = vmatmul.bf16.gmra.mxu0 %v148
  %v1629 = vpop.f32.mrf.mxu0
  %v1630 = vadd.f32 %v281, %v1629
  %v1631 = vpop.f32.mrf.mxu0
  %v1632 = vadd.f32 %v281, %v1631
  %1633 = vmatmul.bf16.gmra.mxu0 %v150
  %v1634 = vpop.f32.mrf.mxu0
  %v1635 = vadd.f32 %v281, %v1634
  %v1636 = vpop.f32.mrf.mxu0
  %v1637 = vadd.f32 %v281, %v1636
  %1638 = vmatmul.bf16.gmra.mxu0 %v152
  %v1639 = vpop.f32.mrf.mxu0
  %v1640 = vadd.f32 %v281, %v1639
  %v1641 = vpop.f32.mrf.mxu0
  %v1642 = vadd.f32 %v281, %v1641
  %1643 = vmatmul.bf16.gmra.mxu0 %v154
  %v1644 = vpop.f32.mrf.mxu0
  %v1645 = vadd.f32 %v281, %v1644
  %v1646 = vpop.f32.mrf.mxu0
  %v1647 = vadd.f32 %v281, %v1646
  %1648 = vmatmul.bf16.gmra.mxu0 %v156
  %v1649 = vpop.f32.mrf.mxu0
  %v1650 = vadd.f32 %v281, %v1649
  %v1651 = vpop.f32.mrf.mxu0
  %v1652 = vadd.f32 %v281, %v1651
  %1653 = vmatmul.bf16.gmra.mxu0 %v158
  %v1654 = vpop.f32.mrf.mxu0
  %v1655 = vadd.f32 %v281, %v1654
  %v1656 = vpop.f32.mrf.mxu0
  %v1657 = vadd.f32 %v281, %v1656
  %1658 = vmatmul.bf16.gmra.mxu0 %v160
  %v1659 = vpop.f32.mrf.mxu0
  %v1660 = vadd.f32 %v281, %v1659
  %v1661 = vpop.f32.mrf.mxu0
  %v1662 = vadd.f32 %v281, %v1661
  %1663 = vmatmul.bf16.gmra.mxu0 %v162
  %v1664 = vpop.f32.mrf.mxu0
  %v1665 = vadd.f32 %v281, %v1664
  %v1666 = vpop.f32.mrf.mxu0
  %v1667 = vadd.f32 %v281, %v1666
  %1668 = vmatmul.bf16.gmra.mxu0 %v164
  %v1669 = vpop.f32.mrf.mxu0
  %v1670 = vadd.f32 %v281, %v1669
  %v1671 = vpop.f32.mrf.mxu0
  %v1672 = vadd.f32 %v281, %v1671
  %1673 = vmatmul.bf16.gmra.mxu0 %v166
  %v1674 = vpop.f32.mrf.mxu0
  %v1675 = vadd.f32 %v281, %v1674
  %v1676 = vpop.f32.mrf.mxu0
  %v1677 = vadd.f32 %v281, %v1676
  %1678 = vmatmul.bf16.gmra.mxu0 %v168
  %v1679 = vpop.f32.mrf.mxu0
  %v1680 = vadd.f32 %v281, %v1679
  %v1681 = vpop.f32.mrf.mxu0
  %v1682 = vadd.f32 %v281, %v1681
  %1683 = vmatmul.bf16.gmra.mxu0 %v170
  %v1684 = vpop.f32.mrf.mxu0
  %v1685 = vadd.f32 %v281, %v1684
  %v1686 = vpop.f32.mrf.mxu0
  %v1687 = vadd.f32 %v281, %v1686
  %1688 = vmatmul.bf16.gmra.mxu0 %v172
  %v1689 = vpop.f32.mrf.mxu0
  %v1690 = vadd.f32 %v281, %v1689
  %v1691 = vpop.f32.mrf.mxu0
  %v1692 = vadd.f32 %v281, %v1691
  %1693 = vmatmul.bf16.gmra.mxu0 %v174
  %v1694 = vpop.f32.mrf.mxu0
  %v1695 = vadd.f32 %v281, %v1694
  %v1696 = vpop.f32.mrf.mxu0
  %v1697 = vadd.f32 %v281, %v1696
  %1698 = vmatmul.bf16.gmra.mxu0 %v176
  %v1699 = vpop.f32.mrf.mxu0
  %v1700 = vadd.f32 %v281, %v1699
  %v1701 = vpop.f32.mrf.mxu0
  %v1702 = vadd.f32 %v281, %v1701
  %1703 = vmatmul.bf16.gmra.mxu0 %v178
  %v1704 = vpop.f32.mrf.mxu0
  %v1705 = vadd.f32 %v281, %v1704
  %v1706 = vpop.f32.mrf.mxu0
  %v1707 = vadd.f32 %v281, %v1706
  %1708 = vmatmul.bf16.gmra.mxu0 %v180
  %v1709 = vpop.f32.mrf.mxu0
  %v1710 = vadd.f32 %v281, %v1709
  %v1711 = vpop.f32.mrf.mxu0
  %v1712 = vadd.f32 %v281, %v1711
  %1713 = vmatmul.bf16.gmra.mxu0 %v182
  %v1714 = vpop.f32.mrf.mxu0
  %v1715 = vadd.f32 %v281, %v1714
  %v1716 = vpop.f32.mrf.mxu0
  %v1717 = vadd.f32 %v281, %v1716
  %1718 = vmatmul.bf16.gmra.mxu0 %v184
  %v1719 = vpop.f32.mrf.mxu0
  %v1720 = vadd.f32 %v281, %v1719
  %v1721 = vpop.f32.mrf.mxu0
  %v1722 = vadd.f32 %v281, %v1721
  %1723 = vmatmul.bf16.gmra.mxu0 %v186
  %v1724 = vpop.f32.mrf.mxu0
  %v1725 = vadd.f32 %v281, %v1724
  %v1726 = vpop.f32.mrf.mxu0
  %v1727 = vadd.f32 %v281, %v1726
  %1728 = vmatmul.bf16.gmra.mxu0 %v188
  %v1729 = vpop.f32.mrf.mxu0
  %v1730 = vadd.f32 %v281, %v1729
  %v1731 = vpop.f32.mrf.mxu0
  %v1732 = vadd.f32 %v281, %v1731
  %1733 = vmatmul.bf16.gmra.mxu0 %v190
  %v1734 = vpop.f32.mrf.mxu0
  %v1735 = vadd.f32 %v281, %v1734
  %v1736 = vpop.f32.mrf.mxu0
  %v1737 = vadd.f32 %v281, %v1736
  %1738 = vmatmul.bf16.gmra.mxu0 %v192
  %v1739 = vpop.f32.mrf.mxu0
  %v1740 = vadd.f32 %v281, %v1739
  %v1741 = vpop.f32.mrf.mxu0
  %v1742 = vadd.f32 %v281, %v1741
  %1743 = vmatmul.bf16.gmra.mxu0 %v194
  %v1744 = vpop.f32.mrf.mxu0
  %v1745 = vadd.f32 %v281, %v1744
  %v1746 = vpop.f32.mrf.mxu0
  %v1747 = vadd.f32 %v281, %v1746
  %1748 = vmatmul.bf16.gmra.mxu0 %v196
  %v1749 = vpop.f32.mrf.mxu0
  %v1750 = vadd.f32 %v281, %v1749
  %v1751 = vpop.f32.mrf.mxu0
  %v1752 = vadd.f32 %v281, %v1751
  %1753 = vmatmul.bf16.gmra.mxu0 %v198
  %v1754 = vpop.f32.mrf.mxu0
  %v1755 = vadd.f32 %v281, %v1754
  %v1756 = vpop.f32.mrf.mxu0
  %v1757 = vadd.f32 %v281, %v1756
  %1758 = vmatmul.bf16.gmra.mxu0 %v200
  %v1759 = vpop.f32.mrf.mxu0
  %v1760 = vadd.f32 %v281, %v1759
  %v1761 = vpop.f32.mrf.mxu0
  %v1762 = vadd.f32 %v281, %v1761
  %1763 = vmatmul.bf16.gmra.mxu0 %v202
  %v1764 = vpop.f32.mrf.mxu0
  %v1765 = vadd.f32 %v281, %v1764
  %v1766 = vpop.f32.mrf.mxu0
  %v1767 = vadd.f32 %v281, %v1766
  %1768 = vmatmul.bf16.gmra.mxu0 %v204
  %v1769 = vpop.f32.mrf.mxu0
  %v1770 = vadd.f32 %v281, %v1769
  %v1771 = vpop.f32.mrf.mxu0
  %v1772 = vadd.f32 %v281, %v1771
  %1773 = vmatmul.bf16.gmra.mxu0 %v206
  %v1774 = vpop.f32.mrf.mxu0
  %v1775 = vadd.f32 %v281, %v1774
  %v1776 = vpop.f32.mrf.mxu0
  %v1777 = vadd.f32 %v281, %v1776
  %1778 = vmatmul.bf16.gmra.mxu0 %v208
  %v1779 = vpop.f32.mrf.mxu0
  %v1780 = vadd.f32 %v281, %v1779
  %v1781 = vpop.f32.mrf.mxu0
  %v1782 = vadd.f32 %v281, %v1781
  %1783 = vmatmul.bf16.gmra.mxu0 %v210
  %v1784 = vpop.f32.mrf.mxu0
  %v1785 = vadd.f32 %v281, %v1784
  %v1786 = vpop.f32.mrf.mxu0
  %v1787 = vadd.f32 %v281, %v1786
  %1788 = vdwg.mxu0
  %1789 = vmatpush.bf16.msra.mxu0 %v541
  %1790 = vmatpush.bf16.msra.mxu0 %v537
  %1791 = vmatpush.bf16.msra.mxu0 %v533
  %1792 = vmatpush.bf16.msra.mxu0 %v529
  %1793 = vmatpush.bf16.msra.mxu0 %v525
  %1794 = vmatpush.bf16.msra.mxu0 %v521
  %1795 = vmatpush.bf16.msra.mxu0 %v517
  %1796 = vmatpush.bf16.msra.mxu0 %v513
  %1797 = vmatmul.bf16.gmra.mxu0 %v149
  %v1798 = vpop.f32.mrf.mxu0
  %v1799 = vadd.f32 %v1630, %v1798
  %v1800 = vpop.f32.mrf.mxu0
  %v1801 = vadd.f32 %v1632, %v1800
  %1802 = vmatmul.bf16.gmra.mxu0 %v151
  %v1803 = vpop.f32.mrf.mxu0
  %v1804 = vadd.f32 %v1635, %v1803
  %v1805 = vpop.f32.mrf.mxu0
  %v1806 = vadd.f32 %v1637, %v1805
  %1807 = vmatmul.bf16.gmra.mxu0 %v153
  %v1808 = vpop.f32.mrf.mxu0
  %v1809 = vadd.f32 %v1640, %v1808
  %v1810 = vpop.f32.mrf.mxu0
  %v1811 = vadd.f32 %v1642, %v1810
  %1812 = vmatmul.bf16.gmra.mxu0 %v155
  %v1813 = vpop.f32.mrf.mxu0
  %v1814 = vadd.f32 %v1645, %v1813
  %v1815 = vpop.f32.mrf.mxu0
  %v1816 = vadd.f32 %v1647, %v1815
  %1817 = vmatmul.bf16.gmra.mxu0 %v157
  %v1818 = vpop.f32.mrf.mxu0
  %v1819 = vadd.f32 %v1650, %v1818
  %v1820 = vpop.f32.mrf.mxu0
  %v1821 = vadd.f32 %v1652, %v1820
  %1822 = vmatmul.bf16.gmra.mxu0 %v159
  %v1823 = vpop.f32.mrf.mxu0
  %v1824 = vadd.f32 %v1655, %v1823
  %v1825 = vpop.f32.mrf.mxu0
  %v1826 = vadd.f32 %v1657, %v1825
  %1827 = vmatmul.bf16.gmra.mxu0 %v161
  %v1828 = vpop.f32.mrf.mxu0
  %v1829 = vadd.f32 %v1660, %v1828
  %v1830 = vpop.f32.mrf.mxu0
  %v1831 = vadd.f32 %v1662, %v1830
  %1832 = vmatmul.bf16.gmra.mxu0 %v163
  %v1833 = vpop.f32.mrf.mxu0
  %v1834 = vadd.f32 %v1665, %v1833
  %v1835 = vpop.f32.mrf.mxu0
  %v1836 = vadd.f32 %v1667, %v1835
  %1837 = vmatmul.bf16.gmra.mxu0 %v165
  %v1838 = vpop.f32.mrf.mxu0
  %v1839 = vadd.f32 %v1670, %v1838
  %v1840 = vpop.f32.mrf.mxu0
  %v1841 = vadd.f32 %v1672, %v1840
  %1842 = vmatmul.bf16.gmra.mxu0 %v167
  %v1843 = vpop.f32.mrf.mxu0
  %v1844 = vadd.f32 %v1675, %v1843
  %v1845 = vpop.f32.mrf.mxu0
  %v1846 = vadd.f32 %v1677, %v1845
  %1847 = vmatmul.bf16.gmra.mxu0 %v169
  %v1848 = vpop.f32.mrf.mxu0
  %v1849 = vadd.f32 %v1680, %v1848
  %v1850 = vpop.f32.mrf.mxu0
  %v1851 = vadd.f32 %v1682, %v1850
  %1852 = vmatmul.bf16.gmra.mxu0 %v171
  %v1853 = vpop.f32.mrf.mxu0
  %v1854 = vadd.f32 %v1685, %v1853
  %v1855 = vpop.f32.mrf.mxu0
  %v1856 = vadd.f32 %v1687, %v1855
  %1857 = vmatmul.bf16.gmra.mxu0 %v173
  %v1858 = vpop.f32.mrf.mxu0
  %v1859 = vadd.f32 %v1690, %v1858
  %v1860 = vpop.f32.mrf.mxu0
  %v1861 = vadd.f32 %v1692, %v1860
  %1862 = vmatmul.bf16.gmra.mxu0 %v175
  %v1863 = vpop.f32.mrf.mxu0
  %v1864 = vadd.f32 %v1695, %v1863
  %v1865 = vpop.f32.mrf.mxu0
  %v1866 = vadd.f32 %v1697, %v1865
  %1867 = vmatmul.bf16.gmra.mxu0 %v177
  %v1868 = vpop.f32.mrf.mxu0
  %v1869 = vadd.f32 %v1700, %v1868
  %v1870 = vpop.f32.mrf.mxu0
  %v1871 = vadd.f32 %v1702, %v1870
  %1872 = vmatmul.bf16.gmra.mxu0 %v179
  %v1873 = vpop.f32.mrf.mxu0
  %v1874 = vadd.f32 %v1705, %v1873
  %v1875 = vpop.f32.mrf.mxu0
  %v1876 = vadd.f32 %v1707, %v1875
  %1877 = vmatmul.bf16.gmra.mxu0 %v181
  %v1878 = vpop.f32.mrf.mxu0
  %v1879 = vadd.f32 %v1710, %v1878
  %v1880 = vpop.f32.mrf.mxu0
  %v1881 = vadd.f32 %v1712, %v1880
  %1882 = vmatmul.bf16.gmra.mxu0 %v183
  %v1883 = vpop.f32.mrf.mxu0
  %v1884 = vadd.f32 %v1715, %v1883
  %v1885 = vpop.f32.mrf.mxu0
  %v1886 = vadd.f32 %v1717, %v1885
  %1887 = vmatmul.bf16.gmra.mxu0 %v185
  %v1888 = vpop.f32.mrf.mxu0
  %v1889 = vadd.f32 %v1720, %v1888
  %v1890 = vpop.f32.mrf.mxu0
  %v1891 = vadd.f32 %v1722, %v1890
  %1892 = vmatmul.bf16.gmra.mxu0 %v187
  %v1893 = vpop.f32.mrf.mxu0
  %v1894 = vadd.f32 %v1725, %v1893
  %v1895 = vpop.f32.mrf.mxu0
  %v1896 = vadd.f32 %v1727, %v1895
  %1897 = vmatmul.bf16.gmra.mxu0 %v189
  %v1898 = vpop.f32.mrf.mxu0
  %v1899 = vadd.f32 %v1730, %v1898
  %v1900 = vpop.f32.mrf.mxu0
  %v1901 = vadd.f32 %v1732, %v1900
  %1902 = vmatmul.bf16.gmra.mxu0 %v191
  %v1903 = vpop.f32.mrf.mxu0
  %v1904 = vadd.f32 %v1735, %v1903
  %v1905 = vpop.f32.mrf.mxu0
  %v1906 = vadd.f32 %v1737, %v1905
  %1907 = vmatmul.bf16.gmra.mxu0 %v193
  %v1908 = vpop.f32.mrf.mxu0
  %v1909 = vadd.f32 %v1740, %v1908
  %v1910 = vpop.f32.mrf.mxu0
  %v1911 = vadd.f32 %v1742, %v1910
  %1912 = vmatmul.bf16.gmra.mxu0 %v195
  %v1913 = vpop.f32.mrf.mxu0
  %v1914 = vadd.f32 %v1745, %v1913
  %v1915 = vpop.f32.mrf.mxu0
  %v1916 = vadd.f32 %v1747, %v1915
  %1917 = vmatmul.bf16.gmra.mxu0 %v197
  %v1918 = vpop.f32.mrf.mxu0
  %v1919 = vadd.f32 %v1750, %v1918
  %v1920 = vpop.f32.mrf.mxu0
  %v1921 = vadd.f32 %v1752, %v1920
  %1922 = vmatmul.bf16.gmra.mxu0 %v199
  %v1923 = vpop.f32.mrf.mxu0
  %v1924 = vadd.f32 %v1755, %v1923
  %v1925 = vpop.f32.mrf.mxu0
  %v1926 = vadd.f32 %v1757, %v1925
  %1927 = vmatmul.bf16.gmra.mxu0 %v201
  %v1928 = vpop.f32.mrf.mxu0
  %v1929 = vadd.f32 %v1760, %v1928
  %v1930 = vpop.f32.mrf.mxu0
  %v1931 = vadd.f32 %v1762, %v1930
  %1932 = vmatmul.bf16.gmra.mxu0 %v203
  %v1933 = vpop.f32.mrf.mxu0
  %v1934 = vadd.f32 %v1765, %v1933
  %v1935 = vpop.f32.mrf.mxu0
  %v1936 = vadd.f32 %v1767, %v1935
  %1937 = vmatmul.bf16.gmra.mxu0 %v205
  %v1938 = vpop.f32.mrf.mxu0
  %v1939 = vadd.f32 %v1770, %v1938
  %v1940 = vpop.f32.mrf.mxu0
  %v1941 = vadd.f32 %v1772, %v1940
  %1942 = vmatmul.bf16.gmra.mxu0 %v207
  %v1943 = vpop.f32.mrf.mxu0
  %v1944 = vadd.f32 %v1775, %v1943
  %v1945 = vpop.f32.mrf.mxu0
  %v1946 = vadd.f32 %v1777, %v1945
  %1947 = vmatmul.bf16.gmra.mxu0 %v209
  %v1948 = vpop.f32.mrf.mxu0
  %v1949 = vadd.f32 %v1780, %v1948
  %v1950 = vpop.f32.mrf.mxu0
  %v1951 = vadd.f32 %v1782, %v1950
  %1952 = vmatmul.bf16.gmra.mxu0 %v211
  %v1953 = vpop.f32.mrf.mxu0
  %v1954 = vadd.f32 %v1785, %v1953
  %v1955 = vpop.f32.mrf.mxu0
  %v1956 = vadd.f32 %v1787, %v1955
  %1957 = vdwg.mxu0
  %v1958 = vmul.f32 %v785, 0.5
  %v1959 = vmul.f32 %v1123, 0.5
  %v1960 = vmul.f32 %v1461, 0.5
  %v1961 = vmul.f32 %v1799, 0.5
  %v1962 = vmul.f32 %v787, 0.5
  %v1963 = vmul.f32 %v1125, 0.5
  %v1964 = vmul.f32 %v1463, 0.5
  %v1965 = vmul.f32 %v1801, 0.5
  %v1966 = vmul.f32 %v790, 0.5
  %v1967 = vmul.f32 %v1128, 0.5
  %v1968 = vmul.f32 %v1466, 0.5
  %v1969 = vmul.f32 %v1804, 0.5
  %v1970 = vmul.f32 %v792, 0.5
  %v1971 = vmul.f32 %v1130, 0.5
  %v1972 = vmul.f32 %v1468, 0.5
  %v1973 = vmul.f32 %v1806, 0.5
  %v1974 = vmul.f32 %v795, 0.5
  %v1975 = vmul.f32 %v1133, 0.5
  %v1976 = vmul.f32 %v1471, 0.5
  %v1977 = vmul.f32 %v1809, 0.5
  %v1978 = vmul.f32 %v797, 0.5
  %v1979 = vmul.f32 %v1135, 0.5
  %v1980 = vmul.f32 %v1473, 0.5
  %v1981 = vmul.f32 %v1811, 0.5
  %v1982 = vmul.f32 %v800, 0.5
  %v1983 = vmul.f32 %v1138, 0.5
  %v1984 = vmul.f32 %v1476, 0.5
  %v1985 = vmul.f32 %v1814, 0.5
  %v1986 = vmul.f32 %v802, 0.5
  %v1987 = vmul.f32 %v1140, 0.5
  %v1988 = vmul.f32 %v1478, 0.5
  %v1989 = vmul.f32 %v1816, 0.5
  %v1990 = vmul.f32 %v805, 0.5
  %v1991 = vmul.f32 %v1143, 0.5
  %v1992 = vmul.f32 %v1481, 0.5
  %v1993 = vmul.f32 %v1819, 0.5
  %v1994 = vmul.f32 %v807, 0.5
  %v1995 = vmul.f32 %v1145, 0.5
  %v1996 = vmul.f32 %v1483, 0.5
  %v1997 = vmul.f32 %v1821, 0.5
  %v1998 = vmul.f32 %v810, 0.5
  %v1999 = vmul.f32 %v1148, 0.5
  %v2000 = vmul.f32 %v1486, 0.5
  %v2001 = vmul.f32 %v1824, 0.5
  %v2002 = vmul.f32 %v812, 0.5
  %v2003 = vmul.f32 %v1150, 0.5
  %v2004 = vmul.f32 %v1488, 0.5
  %v2005 = vmul.f32 %v1826, 0.5
  %v2006 = vmul.f32 %v815, 0.5
  %v2007 = vmul.f32 %v1153, 0.5
  %v2008 = vmul.f32 %v1491, 0.5
  %v2009 = vmul.f32 %v1829, 0.5
  %v2010 = vmul.f32 %v817, 0.5
  %v2011 = vmul.f32 %v1155, 0.5
  %v2012 = vmul.f32 %v1493, 0.5
  %v2013 = vmul.f32 %v1831, 0.5
  %v2014 = vmul.f32 %v820, 0.5
  %v2015 = vmul.f32 %v1158, 0.5
  %v2016 = vmul.f32 %v1496, 0.5
  %v2017 = vmul.f32 %v1834, 0.5
  %v2018 = vmul.f32 %v822, 0.5
  %v2019 = vmul.f32 %v1160, 0.5
  %v2020 = vmul.f32 %v1498, 0.5
  %v2021 = vmul.f32 %v1836, 0.5
  %v2022 = vmul.f32 %v825, 0.5
  %v2023 = vmul.f32 %v1163, 0.5
  %v2024 = vmul.f32 %v1501, 0.5
  %v2025 = vmul.f32 %v1839, 0.5
  %v2026 = vmul.f32 %v827, 0.5
  %v2027 = vmul.f32 %v1165, 0.5
  %v2028 = vmul.f32 %v1503, 0.5
  %v2029 = vmul.f32 %v1841, 0.5
  %v2030 = vmul.f32 %v830, 0.5
  %v2031 = vmul.f32 %v1168, 0.5
  %v2032 = vmul.f32 %v1506, 0.5
  %v2033 = vmul.f32 %v1844, 0.5
  %v2034 = vmul.f32 %v832, 0.5
  %v2035 = vmul.f32 %v1170, 0.5
  %v2036 = vmul.f32 %v1508, 0.5
  %v2037 = vmul.f32 %v1846, 0.5
  %v2038 = vmul.f32 %v835, 0.5
  %v2039 = vmul.f32 %v1173, 0.5
  %v2040 = vmul.f32 %v1511, 0.5
  %v2041 = vmul.f32 %v1849, 0.5
  %v2042 = vmul.f32 %v837, 0.5
  %v2043 = vmul.f32 %v1175, 0.5
  %v2044 = vmul.f32 %v1513, 0.5
  %v2045 = vmul.f32 %v1851, 0.5
  %v2046 = vmul.f32 %v840, 0.5
  %v2047 = vmul.f32 %v1178, 0.5
  %v2048 = vmul.f32 %v1516, 0.5
  %v2049 = vmul.f32 %v1854, 0.5
  %v2050 = vmul.f32 %v842, 0.5
  %v2051 = vmul.f32 %v1180, 0.5
  %v2052 = vmul.f32 %v1518, 0.5
  %v2053 = vmul.f32 %v1856, 0.5
  %v2054 = vmul.f32 %v845, 0.5
  %v2055 = vmul.f32 %v1183, 0.5
  %v2056 = vmul.f32 %v1521, 0.5
  %v2057 = vmul.f32 %v1859, 0.5
  %v2058 = vmul.f32 %v847, 0.5
  %v2059 = vmul.f32 %v1185, 0.5
  %v2060 = vmul.f32 %v1523, 0.5
  %v2061 = vmul.f32 %v1861, 0.5
  %v2062 = vmul.f32 %v850, 0.5
  %v2063 = vmul.f32 %v1188, 0.5
  %v2064 = vmul.f32 %v1526, 0.5
  %v2065 = vmul.f32 %v1864, 0.5
  %v2066 = vmul.f32 %v852, 0.5
  %v2067 = vmul.f32 %v1190, 0.5
  %v2068 = vmul.f32 %v1528, 0.5
  %v2069 = vmul.f32 %v1866, 0.5
  %v2070 = vmul.f32 %v855, 0.5
  %v2071 = vmul.f32 %v1193, 0.5
  %v2072 = vmul.f32 %v1531, 0.5
  %v2073 = vmul.f32 %v1869, 0.5
  %v2074 = vmul.f32 %v857, 0.5
  %v2075 = vmul.f32 %v1195, 0.5
  %v2076 = vmul.f32 %v1533, 0.5
  %v2077 = vmul.f32 %v1871, 0.5
  %v2078 = vmul.f32 %v860, 0.5
  %v2079 = vmul.f32 %v1198, 0.5
  %v2080 = vmul.f32 %v1536, 0.5
  %v2081 = vmul.f32 %v1874, 0.5
  %v2082 = vmul.f32 %v862, 0.5
  %v2083 = vmul.f32 %v1200, 0.5
  %v2084 = vmul.f32 %v1538, 0.5
  %v2085 = vmul.f32 %v1876, 0.5
  %v2086 = vmul.f32 %v865, 0.5
  %v2087 = vmul.f32 %v1203, 0.5
  %v2088 = vmul.f32 %v1541, 0.5
  %v2089 = vmul.f32 %v1879, 0.5
  %v2090 = vmul.f32 %v867, 0.5
  %v2091 = vmul.f32 %v1205, 0.5
  %v2092 = vmul.f32 %v1543, 0.5
  %v2093 = vmul.f32 %v1881, 0.5
  %v2094 = vmul.f32 %v870, 0.5
  %v2095 = vmul.f32 %v1208, 0.5
  %v2096 = vmul.f32 %v1546, 0.5
  %v2097 = vmul.f32 %v1884, 0.5
  %v2098 = vmul.f32 %v872, 0.5
  %v2099 = vmul.f32 %v1210, 0.5
  %v2100 = vmul.f32 %v1548, 0.5
  %v2101 = vmul.f32 %v1886, 0.5
  %v2102 = vmul.f32 %v875, 0.5
  %v2103 = vmul.f32 %v1213, 0.5
  %v2104 = vmul.f32 %v1551, 0.5
  %v2105 = vmul.f32 %v1889, 0.5
  %v2106 = vmul.f32 %v877, 0.5
  %v2107 = vmul.f32 %v1215, 0.5
  %v2108 = vmul.f32 %v1553, 0.5
  %v2109 = vmul.f32 %v1891, 0.5
  %v2110 = vmul.f32 %v880, 0.5
  %v2111 = vmul.f32 %v1218, 0.5
  %v2112 = vmul.f32 %v1556, 0.5
  %v2113 = vmul.f32 %v1894, 0.5
  %v2114 = vmul.f32 %v882, 0.5
  %v2115 = vmul.f32 %v1220, 0.5
  %v2116 = vmul.f32 %v1558, 0.5
  %v2117 = vmul.f32 %v1896, 0.5
  %v2118 = vmul.f32 %v885, 0.5
  %v2119 = vmul.f32 %v1223, 0.5
  %v2120 = vmul.f32 %v1561, 0.5
  %v2121 = vmul.f32 %v1899, 0.5
  %v2122 = vmul.f32 %v887, 0.5
  %v2123 = vmul.f32 %v1225, 0.5
  %v2124 = vmul.f32 %v1563, 0.5
  %v2125 = vmul.f32 %v1901, 0.5
  %v2126 = vmul.f32 %v890, 0.5
  %v2127 = vmul.f32 %v1228, 0.5
  %v2128 = vmul.f32 %v1566, 0.5
  %v2129 = vmul.f32 %v1904, 0.5
  %v2130 = vmul.f32 %v892, 0.5
  %v2131 = vmul.f32 %v1230, 0.5
  %v2132 = vmul.f32 %v1568, 0.5
  %v2133 = vmul.f32 %v1906, 0.5
  %v2134 = vmul.f32 %v895, 0.5
  %v2135 = vmul.f32 %v1233, 0.5
  %v2136 = vmul.f32 %v1571, 0.5
  %v2137 = vmul.f32 %v1909, 0.5
  %v2138 = vmul.f32 %v897, 0.5
  %v2139 = vmul.f32 %v1235, 0.5
  %v2140 = vmul.f32 %v1573, 0.5
  %v2141 = vmul.f32 %v1911, 0.5
  %v2142 = vmul.f32 %v900, 0.5
  %v2143 = vmul.f32 %v1238, 0.5
  %v2144 = vmul.f32 %v1576, 0.5
  %v2145 = vmul.f32 %v1914, 0.5
  %v2146 = vmul.f32 %v902, 0.5
  %v2147 = vmul.f32 %v1240, 0.5
  %v2148 = vmul.f32 %v1578, 0.5
  %v2149 = vmul.f32 %v1916, 0.5
  %v2150 = vmul.f32 %v905, 0.5
  %v2151 = vmul.f32 %v1243, 0.5
  %v2152 = vmul.f32 %v1581, 0.5
  %v2153 = vmul.f32 %v1919, 0.5
  %v2154 = vmul.f32 %v907, 0.5
  %v2155 = vmul.f32 %v1245, 0.5
  %v2156 = vmul.f32 %v1583, 0.5
  %v2157 = vmul.f32 %v1921, 0.5
  %v2158 = vmul.f32 %v910, 0.5
  %v2159 = vmul.f32 %v1248, 0.5
  %v2160 = vmul.f32 %v1586, 0.5
  %v2161 = vmul.f32 %v1924, 0.5
  %v2162 = vmul.f32 %v912, 0.5
  %v2163 = vmul.f32 %v1250, 0.5
  %v2164 = vmul.f32 %v1588, 0.5
  %v2165 = vmul.f32 %v1926, 0.5
  %v2166 = vmul.f32 %v915, 0.5
  %v2167 = vmul.f32 %v1253, 0.5
  %v2168 = vmul.f32 %v1591, 0.5
  %v2169 = vmul.f32 %v1929, 0.5
  %v2170 = vmul.f32 %v917, 0.5
  %v2171 = vmul.f32 %v1255, 0.5
  %v2172 = vmul.f32 %v1593, 0.5
  %v2173 = vmul.f32 %v1931, 0.5
  %v2174 = vmul.f32 %v920, 0.5
  %v2175 = vmul.f32 %v1258, 0.5
  %v2176 = vmul.f32 %v1596, 0.5
  %v2177 = vmul.f32 %v1934, 0.5
  %v2178 = vmul.f32 %v922, 0.5
  %v2179 = vmul.f32 %v1260, 0.5
  %v2180 = vmul.f32 %v1598, 0.5
  %v2181 = vmul.f32 %v1936, 0.5
  %v2182 = vmul.f32 %v925, 0.5
  %v2183 = vmul.f32 %v1263, 0.5
  %v2184 = vmul.f32 %v1601, 0.5
  %v2185 = vmul.f32 %v1939, 0.5
  %v2186 = vmul.f32 %v927, 0.5
  %v2187 = vmul.f32 %v1265, 0.5
  %v2188 = vmul.f32 %v1603, 0.5
  %v2189 = vmul.f32 %v1941, 0.5
  %v2190 = vmul.f32 %v930, 0.5
  %v2191 = vmul.f32 %v1268, 0.5
  %v2192 = vmul.f32 %v1606, 0.5
  %v2193 = vmul.f32 %v1944, 0.5
  %v2194 = vmul.f32 %v932, 0.5
  %v2195 = vmul.f32 %v1270, 0.5
  %v2196 = vmul.f32 %v1608, 0.5
  %v2197 = vmul.f32 %v1946, 0.5
  %v2198 = vmul.f32 %v935, 0.5
  %v2199 = vmul.f32 %v1273, 0.5
  %v2200 = vmul.f32 %v1611, 0.5
  %v2201 = vmul.f32 %v1949, 0.5
  %v2202 = vmul.f32 %v937, 0.5
  %v2203 = vmul.f32 %v1275, 0.5
  %v2204 = vmul.f32 %v1613, 0.5
  %v2205 = vmul.f32 %v1951, 0.5
  %v2206 = vmul.f32 %v940, 0.5
  %v2207 = vmul.f32 %v1278, 0.5
  %v2208 = vmul.f32 %v1616, 0.5
  %v2209 = vmul.f32 %v1954, 0.5
  %v2210 = vmul.f32 %v942, 0.5
  %v2211 = vmul.f32 %v1280, 0.5
  %v2212 = vmul.f32 %v1618, 0.5
  %v2213 = vmul.f32 %v1956, 0.5
  %v2214 = vtanh.pop %v1958
  %v2215 = vtanh.pop %v1959
  %v2216 = vtanh.pop %v1960
  %v2217 = vtanh.pop %v1961
  %v2218 = vtanh.pop %v1962
  %v2219 = vtanh.pop %v1963
  %v2220 = vtanh.pop %v1964
  %v2221 = vtanh.pop %v1965
  %v2222 = vtanh.pop %v1966
  %v2223 = vtanh.pop %v1967
  %v2224 = vtanh.pop %v1968
  %v2225 = vtanh.pop %v1969
  %v2226 = vtanh.pop %v1970
  %v2227 = vtanh.pop %v1971
  %v2228 = vtanh.pop %v1972
  %v2229 = vtanh.pop %v1973
  %v2230 = vtanh.pop %v1974
  %v2231 = vtanh.pop %v1975
  %v2232 = vtanh.pop %v1976
  %v2233 = vtanh.pop %v1977
  %v2234 = vtanh.pop %v1978
  %v2235 = vtanh.pop %v1979
  %v2236 = vtanh.pop %v1980
  %v2237 = vtanh.pop %v1981
  %v2238 = vtanh.pop %v1982
  %v2239 = vtanh.pop %v1983
  %v2240 = vtanh.pop %v1984
  %v2241 = vtanh.pop %v1985
  %v2242 = vtanh.pop %v1986
  %v2243 = vtanh.pop %v1987
  %v2244 = vtanh.pop %v1988
  %v2245 = vtanh.pop %v1989
  %v2246 = vtanh.pop %v1990
  %v2247 = vtanh.pop %v1991
  %v2248 = vtanh.pop %v1992
  %v2249 = vtanh.pop %v1993
  %v2250 = vtanh.pop %v1994
  %v2251 = vtanh.pop %v1995
  %v2252 = vtanh.pop %v1996
  %v2253 = vtanh.pop %v1997
  %v2254 = vtanh.pop %v1998
  %v2255 = vtanh.pop %v1999
  %v2256 = vtanh.pop %v2000
  %v2257 = vtanh.pop %v2001
  %v2258 = vtanh.pop %v2002
  %v2259 = vtanh.pop %v2003
  %v2260 = vtanh.pop %v2004
  %v2261 = vtanh.pop %v2005
  %v2262 = vtanh.pop %v2006
  %v2263 = vtanh.pop %v2007
  %v2264 = vtanh.pop %v2008
  %v2265 = vtanh.pop %v2009
  %v2266 = vtanh.pop %v2010
  %v2267 = vtanh.pop %v2011
  %v2268 = vtanh.pop %v2012
  %v2269 = vtanh.pop %v2013
  %v2270 = vtanh.pop %v2014
  %v2271 = vtanh.pop %v2015
  %v2272 = vtanh.pop %v2016
  %v2273 = vtanh.pop %v2017
  %v2274 = vtanh.pop %v2018
  %v2275 = vtanh.pop %v2019
  %v2276 = vtanh.pop %v2020
  %v2277 = vtanh.pop %v2021
  %v2278 = vtanh.pop %v2022
  %v2279 = vtanh.pop %v2023
  %v2280 = vtanh.pop %v2024
  %v2281 = vtanh.pop %v2025
  %v2282 = vtanh.pop %v2026
  %v2283 = vtanh.pop %v2027
  %v2284 = vtanh.pop %v2028
  %v2285 = vtanh.pop %v2029
  %v2286 = vtanh.pop %v2030
  %v2287 = vtanh.pop %v2031
  %v2288 = vtanh.pop %v2032
  %v2289 = vtanh.pop %v2033
  %v2290 = vtanh.pop %v2034
  %v2291 = vtanh.pop %v2035
  %v2292 = vtanh.pop %v2036
  %v2293 = vtanh.pop %v2037
  %v2294 = vtanh.pop %v2038
  %v2295 = vtanh.pop %v2039
  %v2296 = vtanh.pop %v2040
  %v2297 = vtanh.pop %v2041
  %v2298 = vtanh.pop %v2042
  %v2299 = vtanh.pop %v2043
  %v2300 = vtanh.pop %v2044
  %v2301 = vtanh.pop %v2045
  %v2302 = vtanh.pop %v2046
  %v2303 = vtanh.pop %v2047
  %v2304 = vtanh.pop %v2048
  %v2305 = vtanh.pop %v2049
  %v2306 = vtanh.pop %v2050
  %v2307 = vtanh.pop %v2051
  %v2308 = vtanh.pop %v2052
  %v2309 = vtanh.pop %v2053
  %v2310 = vtanh.pop %v2054
  %v2311 = vtanh.pop %v2055
  %v2312 = vtanh.pop %v2056
  %v2313 = vtanh.pop %v2057
  %v2314 = vtanh.pop %v2058
  %v2315 = vtanh.pop %v2059
  %v2316 = vtanh.pop %v2060
  %v2317 = vtanh.pop %v2061
  %v2318 = vtanh.pop %v2062
  %v2319 = vtanh.pop %v2063
  %v2320 = vtanh.pop %v2064
  %v2321 = vtanh.pop %v2065
  %v2322 = vtanh.pop %v2066
  %v2323 = vtanh.pop %v2067
  %v2324 = vtanh.pop %v2068
  %v2325 = vtanh.pop %v2069
  %v2326 = vtanh.pop %v2070
  %v2327 = vtanh.pop %v2071
  %v2328 = vtanh.pop %v2072
  %v2329 = vtanh.pop %v2073
  %v2330 = vtanh.pop %v2074
  %v2331 = vtanh.pop %v2075
  %v2332 = vtanh.pop %v2076
  %v2333 = vtanh.pop %v2077
  %v2334 = vtanh.pop %v2078
  %v2335 = vtanh.pop %v2079
  %v2336 = vtanh.pop %v2080
  %v2337 = vtanh.pop %v2081
  %v2338 = vtanh.pop %v2082
  %v2339 = vtanh.pop %v2083
  %v2340 = vtanh.pop %v2084
  %v2341 = vtanh.pop %v2085
  %v2342 = vtanh.pop %v2086
  %v2343 = vtanh.pop %v2087
  %v2344 = vtanh.pop %v2088
  %v2345 = vtanh.pop %v2089
  %v2346 = vtanh.pop %v2090
  %v2347 = vtanh.pop %v2091
  %v2348 = vtanh.pop %v2092
  %v2349 = vtanh.pop %v2093
  %v2350 = vtanh.pop %v2094
  %v2351 = vtanh.pop %v2095
  %v2352 = vtanh.pop %v2096
  %v2353 = vtanh.pop %v2097
  %v2354 = vtanh.pop %v2098
  %v2355 = vtanh.pop %v2099
  %v2356 = vtanh.pop %v2100
  %v2357 = vtanh.pop %v2101
  %v2358 = vtanh.pop %v2102
  %v2359 = vtanh.pop %v2103
  %v2360 = vtanh.pop %v2104
  %v2361 = vtanh.pop %v2105
  %v2362 = vtanh.pop %v2106
  %v2363 = vtanh.pop %v2107
  %v2364 = vtanh.pop %v2108
  %v2365 = vtanh.pop %v2109
  %v2366 = vtanh.pop %v2110
  %v2367 = vtanh.pop %v2111
  %v2368 = vtanh.pop %v2112
  %v2369 = vtanh.pop %v2113
  %v2370 = vtanh.pop %v2114
  %v2371 = vtanh.pop %v2115
  %v2372 = vtanh.pop %v2116
  %v2373 = vtanh.pop %v2117
  %v2374 = vtanh.pop %v2118
  %v2375 = vtanh.pop %v2119
  %v2376 = vtanh.pop %v2120
  %v2377 = vtanh.pop %v2121
  %v2378 = vtanh.pop %v2122
  %v2379 = vtanh.pop %v2123
  %v2380 = vtanh.pop %v2124
  %v2381 = vtanh.pop %v2125
  %v2382 = vtanh.pop %v2126
  %v2383 = vtanh.pop %v2127
  %v2384 = vtanh.pop %v2128
  %v2385 = vtanh.pop %v2129
  %v2386 = vtanh.pop %v2130
  %v2387 = vtanh.pop %v2131
  %v2388 = vtanh.pop %v2132
  %v2389 = vtanh.pop %v2133
  %v2390 = vtanh.pop %v2134
  %v2391 = vtanh.pop %v2135
  %v2392 = vtanh.pop %v2136
  %v2393 = vtanh.pop %v2137
  %v2394 = vtanh.pop %v2138
  %v2395 = vtanh.pop %v2139
  %v2396 = vtanh.pop %v2140
  %v2397 = vtanh.pop %v2141
  %v2398 = vtanh.pop %v2142
  %v2399 = vtanh.pop %v2143
  %v2400 = vtanh.pop %v2144
  %v2401 = vtanh.pop %v2145
  %v2402 = vtanh.pop %v2146
  %v2403 = vtanh.pop %v2147
  %v2404 = vtanh.pop %v2148
  %v2405 = vtanh.pop %v2149
  %v2406 = vtanh.pop %v2150
  %v2407 = vtanh.pop %v2151
  %v2408 = vtanh.pop %v2152
  %v2409 = vtanh.pop %v2153
  %v2410 = vtanh.pop %v2154
  %v2411 = vtanh.pop %v2155
  %v2412 = vtanh.pop %v2156
  %v2413 = vtanh.pop %v2157
  %v2414 = vtanh.pop %v2158
  %v2415 = vtanh.pop %v2159
  %v2416 = vtanh.pop %v2160
  %v2417 = vtanh.pop %v2161
  %v2418 = vtanh.pop %v2162
  %v2419 = vtanh.pop %v2163
  %v2420 = vtanh.pop %v2164
  %v2421 = vtanh.pop %v2165
  %v2422 = vtanh.pop %v2166
  %v2423 = vtanh.pop %v2167
  %v2424 = vtanh.pop %v2168
  %v2425 = vtanh.pop %v2169
  %v2426 = vtanh.pop %v2170
  %v2427 = vtanh.pop %v2171
  %v2428 = vtanh.pop %v2172
  %v2429 = vtanh.pop %v2173
  %v2430 = vtanh.pop %v2174
  %v2431 = vtanh.pop %v2175
  %v2432 = vtanh.pop %v2176
  %v2433 = vtanh.pop %v2177
  %v2434 = vtanh.pop %v2178
  %v2435 = vtanh.pop %v2179
  %v2436 = vtanh.pop %v2180
  %v2437 = vtanh.pop %v2181
  %v2438 = vtanh.pop %v2182
  %v2439 = vtanh.pop %v2183
  %v2440 = vtanh.pop %v2184
  %v2441 = vtanh.pop %v2185
  %v2442 = vtanh.pop %v2186
  %v2443 = vtanh.pop %v2187
  %v2444 = vtanh.pop %v2188
  %v2445 = vtanh.pop %v2189
  %v2446 = vtanh.pop %v2190
  %v2447 = vtanh.pop %v2191
  %v2448 = vtanh.pop %v2192
  %v2449 = vtanh.pop %v2193
  %v2450 = vtanh.pop %v2194
  %v2451 = vtanh.pop %v2195
  %v2452 = vtanh.pop %v2196
  %v2453 = vtanh.pop %v2197
  %v2454 = vtanh.pop %v2198
  %v2455 = vtanh.pop %v2199
  %v2456 = vtanh.pop %v2200
  %v2457 = vtanh.pop %v2201
  %v2458 = vtanh.pop %v2202
  %v2459 = vtanh.pop %v2203
  %v2460 = vtanh.pop %v2204
  %v2461 = vtanh.pop %v2205
  %v2462 = vtanh.pop %v2206
  %v2463 = vtanh.pop %v2207
  %v2464 = vtanh.pop %v2208
  %v2465 = vtanh.pop %v2209
  %v2466 = vtanh.pop %v2210
  %v2467 = vtanh.pop %v2211
  %v2468 = vtanh.pop %v2212
  %v2469 = vtanh.pop %v2213
  %v2470 = vmul.f32 %v2214, 0.5
  %v2471 = vmul.f32 %v2215, 0.5
  %v2472 = vmul.f32 %v2216, 0.5
  %v2473 = vmul.f32 %v2217, 0.5
  %v2474 = vmul.f32 %v2218, 0.5
  %v2475 = vmul.f32 %v2219, 0.5
  %v2476 = vmul.f32 %v2220, 0.5
  %v2477 = vmul.f32 %v2221, 0.5
  %v2478 = vmul.f32 %v2222, 0.5
  %v2479 = vmul.f32 %v2223, 0.5
  %v2480 = vmul.f32 %v2224, 0.5
  %v2481 = vmul.f32 %v2225, 0.5
  %v2482 = vmul.f32 %v2226, 0.5
  %v2483 = vmul.f32 %v2227, 0.5
  %v2484 = vmul.f32 %v2228, 0.5
  %v2485 = vmul.f32 %v2229, 0.5
  %v2486 = vmul.f32 %v2230, 0.5
  %v2487 = vmul.f32 %v2231, 0.5
  %v2488 = vmul.f32 %v2232, 0.5
  %v2489 = vmul.f32 %v2233, 0.5
  %v2490 = vmul.f32 %v2234, 0.5
  %v2491 = vmul.f32 %v2235, 0.5
  %v2492 = vmul.f32 %v2236, 0.5
  %v2493 = vmul.f32 %v2237, 0.5
  %v2494 = vmul.f32 %v2238, 0.5
  %v2495 = vmul.f32 %v2239, 0.5
  %v2496 = vmul.f32 %v2240, 0.5
  %v2497 = vmul.f32 %v2241, 0.5
  %v2498 = vmul.f32 %v2242, 0.5
  %v2499 = vmul.f32 %v2243, 0.5
  %v2500 = vmul.f32 %v2244, 0.5
  %v2501 = vmul.f32 %v2245, 0.5
  %v2502 = vmul.f32 %v2246, 0.5
  %v2503 = vmul.f32 %v2247, 0.5
  %v2504 = vmul.f32 %v2248, 0.5
  %v2505 = vmul.f32 %v2249, 0.5
  %v2506 = vmul.f32 %v2250, 0.5
  %v2507 = vmul.f32 %v2251, 0.5
  %v2508 = vmul.f32 %v2252, 0.5
  %v2509 = vmul.f32 %v2253, 0.5
  %v2510 = vmul.f32 %v2254, 0.5
  %v2511 = vmul.f32 %v2255, 0.5
  %v2512 = vmul.f32 %v2256, 0.5
  %v2513 = vmul.f32 %v2257, 0.5
  %v2514 = vmul.f32 %v2258, 0.5
  %v2515 = vmul.f32 %v2259, 0.5
  %v2516 = vmul.f32 %v2260, 0.5
  %v2517 = vmul.f32 %v2261, 0.5
  %v2518 = vmul.f32 %v2262, 0.5
  %v2519 = vmul.f32 %v2263, 0.5
  %v2520 = vmul.f32 %v2264, 0.5
  %v2521 = vmul.f32 %v2265, 0.5
  %v2522 = vmul.f32 %v2266, 0.5
  %v2523 = vmul.f32 %v2267, 0.5
  %v2524 = vmul.f32 %v2268, 0.5
  %v2525 = vmul.f32 %v2269, 0.5
  %v2526 = vmul.f32 %v2270, 0.5
  %v2527 = vmul.f32 %v2271, 0.5
  %v2528 = vmul.f32 %v2272, 0.5
  %v2529 = vmul.f32 %v2273, 0.5
  %v2530 = vmul.f32 %v2274, 0.5
  %v2531 = vmul.f32 %v2275, 0.5
  %v2532 = vmul.f32 %v2276, 0.5
  %v2533 = vmul.f32 %v2277, 0.5
  %v2534 = vmul.f32 %v2278, 0.5
  %v2535 = vmul.f32 %v2279, 0.5
  %v2536 = vmul.f32 %v2280, 0.5
  %v2537 = vmul.f32 %v2281, 0.5
  %v2538 = vmul.f32 %v2282, 0.5
  %v2539 = vmul.f32 %v2283, 0.5
  %v2540 = vmul.f32 %v2284, 0.5
  %v2541 = vmul.f32 %v2285, 0.5
  %v2542 = vmul.f32 %v2286, 0.5
  %v2543 = vmul.f32 %v2287, 0.5
  %v2544 = vmul.f32 %v2288, 0.5
  %v2545 = vmul.f32 %v2289, 0.5
  %v2546 = vmul.f32 %v2290, 0.5
  %v2547 = vmul.f32 %v2291, 0.5
  %v2548 = vmul.f32 %v2292, 0.5
  %v2549 = vmul.f32 %v2293, 0.5
  %v2550 = vmul.f32 %v2294, 0.5
  %v2551 = vmul.f32 %v2295, 0.5
  %v2552 = vmul.f32 %v2296, 0.5
  %v2553 = vmul.f32 %v2297, 0.5
  %v2554 = vmul.f32 %v2298, 0.5
  %v2555 = vmul.f32 %v2299, 0.5
  %v2556 = vmul.f32 %v2300, 0.5
  %v2557 = vmul.f32 %v2301, 0.5
  %v2558 = vmul.f32 %v2302, 0.5
  %v2559 = vmul.f32 %v2303, 0.5
  %v2560 = vmul.f32 %v2304, 0.5
  %v2561 = vmul.f32 %v2305, 0.5
  %v2562 = vmul.f32 %v2306, 0.5
  %v2563 = vmul.f32 %v2307, 0.5
  %v2564 = vmul.f32 %v2308, 0.5
  %v2565 = vmul.f32 %v2309, 0.5
  %v2566 = vmul.f32 %v2310, 0.5
  %v2567 = vmul.f32 %v2311, 0.5
  %v2568 = vmul.f32 %v2312, 0.5
  %v2569 = vmul.f32 %v2313, 0.5
  %v2570 = vmul.f32 %v2314, 0.5
  %v2571 = vmul.f32 %v2315, 0.5
  %v2572 = vmul.f32 %v2316, 0.5
  %v2573 = vmul.f32 %v2317, 0.5
  %v2574 = vmul.f32 %v2318, 0.5
  %v2575 = vmul.f32 %v2319, 0.5
  %v2576 = vmul.f32 %v2320, 0.5
  %v2577 = vmul.f32 %v2321, 0.5
  %v2578 = vmul.f32 %v2322, 0.5
  %v2579 = vmul.f32 %v2323, 0.5
  %v2580 = vmul.f32 %v2324, 0.5
  %v2581 = vmul.f32 %v2325, 0.5
  %v2582 = vmul.f32 %v2326, 0.5
  %v2583 = vmul.f32 %v2327, 0.5
  %v2584 = vmul.f32 %v2328, 0.5
  %v2585 = vmul.f32 %v2329, 0.5
  %v2586 = vmul.f32 %v2330, 0.5
  %v2587 = vmul.f32 %v2331, 0.5
  %v2588 = vmul.f32 %v2332, 0.5
  %v2589 = vmul.f32 %v2333, 0.5
  %v2590 = vmul.f32 %v2334, 0.5
  %v2591 = vmul.f32 %v2335, 0.5
  %v2592 = vmul.f32 %v2336, 0.5
  %v2593 = vmul.f32 %v2337, 0.5
  %v2594 = vmul.f32 %v2338, 0.5
  %v2595 = vmul.f32 %v2339, 0.5
  %v2596 = vmul.f32 %v2340, 0.5
  %v2597 = vmul.f32 %v2341, 0.5
  %v2598 = vmul.f32 %v2342, 0.5
  %v2599 = vmul.f32 %v2343, 0.5
  %v2600 = vmul.f32 %v2344, 0.5
  %v2601 = vmul.f32 %v2345, 0.5
  %v2602 = vmul.f32 %v2346, 0.5
  %v2603 = vmul.f32 %v2347, 0.5
  %v2604 = vmul.f32 %v2348, 0.5
  %v2605 = vmul.f32 %v2349, 0.5
  %v2606 = vmul.f32 %v2350, 0.5
  %v2607 = vmul.f32 %v2351, 0.5
  %v2608 = vmul.f32 %v2352, 0.5
  %v2609 = vmul.f32 %v2353, 0.5
  %v2610 = vmul.f32 %v2354, 0.5
  %v2611 = vmul.f32 %v2355, 0.5
  %v2612 = vmul.f32 %v2356, 0.5
  %v2613 = vmul.f32 %v2357, 0.5
  %v2614 = vmul.f32 %v2358, 0.5
  %v2615 = vmul.f32 %v2359, 0.5
  %v2616 = vmul.f32 %v2360, 0.5
  %v2617 = vmul.f32 %v2361, 0.5
  %v2618 = vmul.f32 %v2362, 0.5
  %v2619 = vmul.f32 %v2363, 0.5
  %v2620 = vmul.f32 %v2364, 0.5
  %v2621 = vmul.f32 %v2365, 0.5
  %v2622 = vmul.f32 %v2366, 0.5
  %v2623 = vmul.f32 %v2367, 0.5
  %v2624 = vmul.f32 %v2368, 0.5
  %v2625 = vmul.f32 %v2369, 0.5
  %v2626 = vmul.f32 %v2370, 0.5
  %v2627 = vmul.f32 %v2371, 0.5
  %v2628 = vmul.f32 %v2372, 0.5
  %v2629 = vmul.f32 %v2373, 0.5
  %v2630 = vmul.f32 %v2374, 0.5
  %v2631 = vmul.f32 %v2375, 0.5
  %v2632 = vmul.f32 %v2376, 0.5
  %v2633 = vmul.f32 %v2377, 0.5
  %v2634 = vmul.f32 %v2378, 0.5
  %v2635 = vmul.f32 %v2379, 0.5
  %v2636 = vmul.f32 %v2380, 0.5
  %v2637 = vmul.f32 %v2381, 0.5
  %v2638 = vmul.f32 %v2382, 0.5
  %v2639 = vmul.f32 %v2383, 0.5
  %v2640 = vmul.f32 %v2384, 0.5
  %v2641 = vmul.f32 %v2385, 0.5
  %v2642 = vmul.f32 %v2386, 0.5
  %v2643 = vmul.f32 %v2387, 0.5
  %v2644 = vmul.f32 %v2388, 0.5
  %v2645 = vmul.f32 %v2389, 0.5
  %v2646 = vmul.f32 %v2390, 0.5
  %v2647 = vmul.f32 %v2391, 0.5
  %v2648 = vmul.f32 %v2392, 0.5
  %v2649 = vmul.f32 %v2393, 0.5
  %v2650 = vmul.f32 %v2394, 0.5
  %v2651 = vmul.f32 %v2395, 0.5
  %v2652 = vmul.f32 %v2396, 0.5
  %v2653 = vmul.f32 %v2397, 0.5
  %v2654 = vmul.f32 %v2398, 0.5
  %v2655 = vmul.f32 %v2399, 0.5
  %v2656 = vmul.f32 %v2400, 0.5
  %v2657 = vmul.f32 %v2401, 0.5
  %v2658 = vmul.f32 %v2402, 0.5
  %v2659 = vmul.f32 %v2403, 0.5
  %v2660 = vmul.f32 %v2404, 0.5
  %v2661 = vmul.f32 %v2405, 0.5
  %v2662 = vmul.f32 %v2406, 0.5
  %v2663 = vmul.f32 %v2407, 0.5
  %v2664 = vmul.f32 %v2408, 0.5
  %v2665 = vmul.f32 %v2409, 0.5
  %v2666 = vmul.f32 %v2410, 0.5
  %v2667 = vmul.f32 %v2411, 0.5
  %v2668 = vmul.f32 %v2412, 0.5
  %v2669 = vmul.f32 %v2413, 0.5
  %v2670 = vmul.f32 %v2414, 0.5
  %v2671 = vmul.f32 %v2415, 0.5
  %v2672 = vmul.f32 %v2416, 0.5
  %v2673 = vmul.f32 %v2417, 0.5
  %v2674 = vmul.f32 %v2418, 0.5
  %v2675 = vmul.f32 %v2419, 0.5
  %v2676 = vmul.f32 %v2420, 0.5
  %v2677 = vmul.f32 %v2421, 0.5
  %v2678 = vmul.f32 %v2422, 0.5
  %v2679 = vmul.f32 %v2423, 0.5
  %v2680 = vmul.f32 %v2424, 0.5
  %v2681 = vmul.f32 %v2425, 0.5
  %v2682 = vmul.f32 %v2426, 0.5
  %v2683 = vmul.f32 %v2427, 0.5
  %v2684 = vmul.f32 %v2428, 0.5
  %v2685 = vmul.f32 %v2429, 0.5
  %v2686 = vmul.f32 %v2430, 0.5
  %v2687 = vmul.f32 %v2431, 0.5
  %v2688 = vmul.f32 %v2432, 0.5
  %v2689 = vmul.f32 %v2433, 0.5
  %v2690 = vmul.f32 %v2434, 0.5
  %v2691 = vmul.f32 %v2435, 0.5
  %v2692 = vmul.f32 %v2436, 0.5
  %v2693 = vmul.f32 %v2437, 0.5
  %v2694 = vmul.f32 %v2438, 0.5
  %v2695 = vmul.f32 %v2439, 0.5
  %v2696 = vmul.f32 %v2440, 0.5
  %v2697 = vmul.f32 %v2441, 0.5
  %v2698 = vmul.f32 %v2442, 0.5
  %v2699 = vmul.f32 %v2443, 0.5
  %v2700 = vmul.f32 %v2444, 0.5
  %v2701 = vmul.f32 %v2445, 0.5
  %v2702 = vmul.f32 %v2446, 0.5
  %v2703 = vmul.f32 %v2447, 0.5
  %v2704 = vmul.f32 %v2448, 0.5
  %v2705 = vmul.f32 %v2449, 0.5
  %v2706 = vmul.f32 %v2450, 0.5
  %v2707 = vmul.f32 %v2451, 0.5
  %v2708 = vmul.f32 %v2452, 0.5
  %v2709 = vmul.f32 %v2453, 0.5
  %v2710 = vmul.f32 %v2454, 0.5
  %v2711 = vmul.f32 %v2455, 0.5
  %v2712 = vmul.f32 %v2456, 0.5
  %v2713 = vmul.f32 %v2457, 0.5
  %v2714 = vmul.f32 %v2458, 0.5
  %v2715 = vmul.f32 %v2459, 0.5
  %v2716 = vmul.f32 %v2460, 0.5
  %v2717 = vmul.f32 %v2461, 0.5
  %v2718 = vmul.f32 %v2462, 0.5
  %v2719 = vmul.f32 %v2463, 0.5
  %v2720 = vmul.f32 %v2464, 0.5
  %v2721 = vmul.f32 %v2465, 0.5
  %v2722 = vmul.f32 %v2466, 0.5
  %v2723 = vmul.f32 %v2467, 0.5
  %v2724 = vmul.f32 %v2468, 0.5
  %v2725 = vmul.f32 %v2469, 0.5
  %v2726 = vadd.f32 %v2470, 0.5
  %v2727 = vadd.f32 %v2471, 0.5
  %v2728 = vadd.f32 %v2472, 0.5
  %v2729 = vadd.f32 %v2473, 0.5
  %v2730 = vadd.f32 %v2474, 0.5
  %v2731 = vadd.f32 %v2475, 0.5
  %v2732 = vadd.f32 %v2476, 0.5
  %v2733 = vadd.f32 %v2477, 0.5
  %v2734 = vadd.f32 %v2478, 0.5
  %v2735 = vadd.f32 %v2479, 0.5
  %v2736 = vadd.f32 %v2480, 0.5
  %v2737 = vadd.f32 %v2481, 0.5
  %v2738 = vadd.f32 %v2482, 0.5
  %v2739 = vadd.f32 %v2483, 0.5
  %v2740 = vadd.f32 %v2484, 0.5
  %v2741 = vadd.f32 %v2485, 0.5
  %v2742 = vadd.f32 %v2486, 0.5
  %v2743 = vadd.f32 %v2487, 0.5
  %v2744 = vadd.f32 %v2488, 0.5
  %v2745 = vadd.f32 %v2489, 0.5
  %v2746 = vadd.f32 %v2490, 0.5
  %v2747 = vadd.f32 %v2491, 0.5
  %v2748 = vadd.f32 %v2492, 0.5
  %v2749 = vadd.f32 %v2493, 0.5
  %v2750 = vadd.f32 %v2494, 0.5
  %v2751 = vadd.f32 %v2495, 0.5
  %v2752 = vadd.f32 %v2496, 0.5
  %v2753 = vadd.f32 %v2497, 0.5
  %v2754 = vadd.f32 %v2498, 0.5
  %v2755 = vadd.f32 %v2499, 0.5
  %v2756 = vadd.f32 %v2500, 0.5
  %v2757 = vadd.f32 %v2501, 0.5
  %v2758 = vadd.f32 %v2502, 0.5
  %v2759 = vadd.f32 %v2503, 0.5
  %v2760 = vadd.f32 %v2504, 0.5
  %v2761 = vadd.f32 %v2505, 0.5
  %v2762 = vadd.f32 %v2506, 0.5
  %v2763 = vadd.f32 %v2507, 0.5
  %v2764 = vadd.f32 %v2508, 0.5
  %v2765 = vadd.f32 %v2509, 0.5
  %v2766 = vadd.f32 %v2510, 0.5
  %v2767 = vadd.f32 %v2511, 0.5
  %v2768 = vadd.f32 %v2512, 0.5
  %v2769 = vadd.f32 %v2513, 0.5
  %v2770 = vadd.f32 %v2514, 0.5
  %v2771 = vadd.f32 %v2515, 0.5
  %v2772 = vadd.f32 %v2516, 0.5
  %v2773 = vadd.f32 %v2517, 0.5
  %v2774 = vadd.f32 %v2518, 0.5
  %v2775 = vadd.f32 %v2519, 0.5
  %v2776 = vadd.f32 %v2520, 0.5
  %v2777 = vadd.f32 %v2521, 0.5
  %v2778 = vadd.f32 %v2522, 0.5
  %v2779 = vadd.f32 %v2523, 0.5
  %v2780 = vadd.f32 %v2524, 0.5
  %v2781 = vadd.f32 %v2525, 0.5
  %v2782 = vadd.f32 %v2526, 0.5
  %v2783 = vadd.f32 %v2527, 0.5
  %v2784 = vadd.f32 %v2528, 0.5
  %v2785 = vadd.f32 %v2529, 0.5
  %v2786 = vadd.f32 %v2530, 0.5
  %v2787 = vadd.f32 %v2531, 0.5
  %v2788 = vadd.f32 %v2532, 0.5
  %v2789 = vadd.f32 %v2533, 0.5
  %v2790 = vadd.f32 %v2534, 0.5
  %v2791 = vadd.f32 %v2535, 0.5
  %v2792 = vadd.f32 %v2536, 0.5
  %v2793 = vadd.f32 %v2537, 0.5
  %v2794 = vadd.f32 %v2538, 0.5
  %v2795 = vadd.f32 %v2539, 0.5
  %v2796 = vadd.f32 %v2540, 0.5
  %v2797 = vadd.f32 %v2541, 0.5
  %v2798 = vadd.f32 %v2542, 0.5
  %v2799 = vadd.f32 %v2543, 0.5
  %v2800 = vadd.f32 %v2544, 0.5
  %v2801 = vadd.f32 %v2545, 0.5
  %v2802 = vadd.f32 %v2546, 0.5
  %v2803 = vadd.f32 %v2547, 0.5
  %v2804 = vadd.f32 %v2548, 0.5
  %v2805 = vadd.f32 %v2549, 0.5
  %v2806 = vadd.f32 %v2550, 0.5
  %v2807 = vadd.f32 %v2551, 0.5
  %v2808 = vadd.f32 %v2552, 0.5
  %v2809 = vadd.f32 %v2553, 0.5
  %v2810 = vadd.f32 %v2554, 0.5
  %v2811 = vadd.f32 %v2555, 0.5
  %v2812 = vadd.f32 %v2556, 0.5
  %v2813 = vadd.f32 %v2557, 0.5
  %v2814 = vadd.f32 %v2558, 0.5
  %v2815 = vadd.f32 %v2559, 0.5
  %v2816 = vadd.f32 %v2560, 0.5
  %v2817 = vadd.f32 %v2561, 0.5
  %v2818 = vadd.f32 %v2562, 0.5
  %v2819 = vadd.f32 %v2563, 0.5
  %v2820 = vadd.f32 %v2564, 0.5
  %v2821 = vadd.f32 %v2565, 0.5
  %v2822 = vadd.f32 %v2566, 0.5
  %v2823 = vadd.f32 %v2567, 0.5
  %v2824 = vadd.f32 %v2568, 0.5
  %v2825 = vadd.f32 %v2569, 0.5
  %v2826 = vadd.f32 %v2570, 0.5
  %v2827 = vadd.f32 %v2571, 0.5
  %v2828 = vadd.f32 %v2572, 0.5
  %v2829 = vadd.f32 %v2573, 0.5
  %v2830 = vadd.f32 %v2574, 0.5
  %v2831 = vadd.f32 %v2575, 0.5
  %v2832 = vadd.f32 %v2576, 0.5
  %v2833 = vadd.f32 %v2577, 0.5
  %v2834 = vadd.f32 %v2578, 0.5
  %v2835 = vadd.f32 %v2579, 0.5
  %v2836 = vadd.f32 %v2580, 0.5
  %v2837 = vadd.f32 %v2581, 0.5
  %v2838 = vadd.f32 %v2582, 0.5
  %v2839 = vadd.f32 %v2583, 0.5
  %v2840 = vadd.f32 %v2584, 0.5
  %v2841 = vadd.f32 %v2585, 0.5
  %v2842 = vadd.f32 %v2586, 0.5
  %v2843 = vadd.f32 %v2587, 0.5
  %v2844 = vadd.f32 %v2588, 0.5
  %v2845 = vadd.f32 %v2589, 0.5
  %v2846 = vadd.f32 %v2590, 0.5
  %v2847 = vadd.f32 %v2591, 0.5
  %v2848 = vadd.f32 %v2592, 0.5
  %v2849 = vadd.f32 %v2593, 0.5
  %v2850 = vadd.f32 %v2594, 0.5
  %v2851 = vadd.f32 %v2595, 0.5
  %v2852 = vadd.f32 %v2596, 0.5
  %v2853 = vadd.f32 %v2597, 0.5
  %v2854 = vadd.f32 %v2598, 0.5
  %v2855 = vadd.f32 %v2599, 0.5
  %v2856 = vadd.f32 %v2600, 0.5
  %v2857 = vadd.f32 %v2601, 0.5
  %v2858 = vadd.f32 %v2602, 0.5
  %v2859 = vadd.f32 %v2603, 0.5
  %v2860 = vadd.f32 %v2604, 0.5
  %v2861 = vadd.f32 %v2605, 0.5
  %v2862 = vadd.f32 %v2606, 0.5
  %v2863 = vadd.f32 %v2607, 0.5
  %v2864 = vadd.f32 %v2608, 0.5
  %v2865 = vadd.f32 %v2609, 0.5
  %v2866 = vadd.f32 %v2610, 0.5
  %v2867 = vadd.f32 %v2611, 0.5
  %v2868 = vadd.f32 %v2612, 0.5
  %v2869 = vadd.f32 %v2613, 0.5
  %v2870 = vadd.f32 %v2614, 0.5
  %v2871 = vadd.f32 %v2615, 0.5
  %v2872 = vadd.f32 %v2616, 0.5
  %v2873 = vadd.f32 %v2617, 0.5
  %v2874 = vadd.f32 %v2618, 0.5
  %v2875 = vadd.f32 %v2619, 0.5
  %v2876 = vadd.f32 %v2620, 0.5
  %v2877 = vadd.f32 %v2621, 0.5
  %v2878 = vadd.f32 %v2622, 0.5
  %v2879 = vadd.f32 %v2623, 0.5
  %v2880 = vadd.f32 %v2624, 0.5
  %v2881 = vadd.f32 %v2625, 0.5
  %v2882 = vadd.f32 %v2626, 0.5
  %v2883 = vadd.f32 %v2627, 0.5
  %v2884 = vadd.f32 %v2628, 0.5
  %v2885 = vadd.f32 %v2629, 0.5
  %v2886 = vadd.f32 %v2630, 0.5
  %v2887 = vadd.f32 %v2631, 0.5
  %v2888 = vadd.f32 %v2632, 0.5
  %v2889 = vadd.f32 %v2633, 0.5
  %v2890 = vadd.f32 %v2634, 0.5
  %v2891 = vadd.f32 %v2635, 0.5
  %v2892 = vadd.f32 %v2636, 0.5
  %v2893 = vadd.f32 %v2637, 0.5
  %v2894 = vadd.f32 %v2638, 0.5
  %v2895 = vadd.f32 %v2639, 0.5
  %v2896 = vadd.f32 %v2640, 0.5
  %v2897 = vadd.f32 %v2641, 0.5
  %v2898 = vadd.f32 %v2642, 0.5
  %v2899 = vadd.f32 %v2643, 0.5
  %v2900 = vadd.f32 %v2644, 0.5
  %v2901 = vadd.f32 %v2645, 0.5
  %v2902 = vadd.f32 %v2646, 0.5
  %v2903 = vadd.f32 %v2647, 0.5
  %v2904 = vadd.f32 %v2648, 0.5
  %v2905 = vadd.f32 %v2649, 0.5
  %v2906 = vadd.f32 %v2650, 0.5
  %v2907 = vadd.f32 %v2651, 0.5
  %v2908 = vadd.f32 %v2652, 0.5
  %v2909 = vadd.f32 %v2653, 0.5
  %v2910 = vadd.f32 %v2654, 0.5
  %v2911 = vadd.f32 %v2655, 0.5
  %v2912 = vadd.f32 %v2656, 0.5
  %v2913 = vadd.f32 %v2657, 0.5
  %v2914 = vadd.f32 %v2658, 0.5
  %v2915 = vadd.f32 %v2659, 0.5
  %v2916 = vadd.f32 %v2660, 0.5
  %v2917 = vadd.f32 %v2661, 0.5
  %v2918 = vadd.f32 %v2662, 0.5
  %v2919 = vadd.f32 %v2663, 0.5
  %v2920 = vadd.f32 %v2664, 0.5
  %v2921 = vadd.f32 %v2665, 0.5
  %v2922 = vadd.f32 %v2666, 0.5
  %v2923 = vadd.f32 %v2667, 0.5
  %v2924 = vadd.f32 %v2668, 0.5
  %v2925 = vadd.f32 %v2669, 0.5
  %v2926 = vadd.f32 %v2670, 0.5
  %v2927 = vadd.f32 %v2671, 0.5
  %v2928 = vadd.f32 %v2672, 0.5
  %v2929 = vadd.f32 %v2673, 0.5
  %v2930 = vadd.f32 %v2674, 0.5
  %v2931 = vadd.f32 %v2675, 0.5
  %v2932 = vadd.f32 %v2676, 0.5
  %v2933 = vadd.f32 %v2677, 0.5
  %v2934 = vadd.f32 %v2678, 0.5
  %v2935 = vadd.f32 %v2679, 0.5
  %v2936 = vadd.f32 %v2680, 0.5
  %v2937 = vadd.f32 %v2681, 0.5
  %v2938 = vadd.f32 %v2682, 0.5
  %v2939 = vadd.f32 %v2683, 0.5
  %v2940 = vadd.f32 %v2684, 0.5
  %v2941 = vadd.f32 %v2685, 0.5
  %v2942 = vadd.f32 %v2686, 0.5
  %v2943 = vadd.f32 %v2687, 0.5
  %v2944 = vadd.f32 %v2688, 0.5
  %v2945 = vadd.f32 %v2689, 0.5
  %v2946 = vadd.f32 %v2690, 0.5
  %v2947 = vadd.f32 %v2691, 0.5
  %v2948 = vadd.f32 %v2692, 0.5
  %v2949 = vadd.f32 %v2693, 0.5
  %v2950 = vadd.f32 %v2694, 0.5
  %v2951 = vadd.f32 %v2695, 0.5
  %v2952 = vadd.f32 %v2696, 0.5
  %v2953 = vadd.f32 %v2697, 0.5
  %v2954 = vadd.f32 %v2698, 0.5
  %v2955 = vadd.f32 %v2699, 0.5
  %v2956 = vadd.f32 %v2700, 0.5
  %v2957 = vadd.f32 %v2701, 0.5
  %v2958 = vadd.f32 %v2702, 0.5
  %v2959 = vadd.f32 %v2703, 0.5
  %v2960 = vadd.f32 %v2704, 0.5
  %v2961 = vadd.f32 %v2705, 0.5
  %v2962 = vadd.f32 %v2706, 0.5
  %v2963 = vadd.f32 %v2707, 0.5
  %v2964 = vadd.f32 %v2708, 0.5
  %v2965 = vadd.f32 %v2709, 0.5
  %v2966 = vadd.f32 %v2710, 0.5
  %v2967 = vadd.f32 %v2711, 0.5
  %v2968 = vadd.f32 %v2712, 0.5
  %v2969 = vadd.f32 %v2713, 0.5
  %v2970 = vadd.f32 %v2714, 0.5
  %v2971 = vadd.f32 %v2715, 0.5
  %v2972 = vadd.f32 %v2716, 0.5
  %v2973 = vadd.f32 %v2717, 0.5
  %v2974 = vadd.f32 %v2718, 0.5
  %v2975 = vadd.f32 %v2719, 0.5
  %v2976 = vadd.f32 %v2720, 0.5
  %v2977 = vadd.f32 %v2721, 0.5
  %v2978 = vadd.f32 %v2722, 0.5
  %v2979 = vadd.f32 %v2723, 0.5
  %v2980 = vadd.f32 %v2724, 0.5
  %v2981 = vadd.f32 %v2725, 0.5
  %v2982 = vpack.c.bf16 %v2730, %v2726
  %v2983 = vpack.c.bf16 %v2731, %v2727
  %v2984 = vpack.c.bf16 %v2732, %v2728
  %v2985 = vpack.c.bf16 %v2733, %v2729
  %v2986 = vpack.c.bf16 %v2738, %v2734
  %v2987 = vpack.c.bf16 %v2739, %v2735
  %v2988 = vpack.c.bf16 %v2740, %v2736
  %v2989 = vpack.c.bf16 %v2741, %v2737
  %v2990 = vpack.c.bf16 %v2746, %v2742
  %v2991 = vpack.c.bf16 %v2747, %v2743
  %v2992 = vpack.c.bf16 %v2748, %v2744
  %v2993 = vpack.c.bf16 %v2749, %v2745
  %v2994 = vpack.c.bf16 %v2754, %v2750
  %v2995 = vpack.c.bf16 %v2755, %v2751
  %v2996 = vpack.c.bf16 %v2756, %v2752
  %v2997 = vpack.c.bf16 %v2757, %v2753
  %v2998 = vpack.c.bf16 %v2762, %v2758
  %v2999 = vpack.c.bf16 %v2763, %v2759
  %v3000 = vpack.c.bf16 %v2764, %v2760
  %v3001 = vpack.c.bf16 %v2765, %v2761
  %v3002 = vpack.c.bf16 %v2770, %v2766
  %v3003 = vpack.c.bf16 %v2771, %v2767
  %v3004 = vpack.c.bf16 %v2772, %v2768
  %v3005 = vpack.c.bf16 %v2773, %v2769
  %v3006 = vpack.c.bf16 %v2778, %v2774
  %v3007 = vpack.c.bf16 %v2779, %v2775
  %v3008 = vpack.c.bf16 %v2780, %v2776
  %v3009 = vpack.c.bf16 %v2781, %v2777
  %v3010 = vpack.c.bf16 %v2786, %v2782
  %v3011 = vpack.c.bf16 %v2787, %v2783
  %v3012 = vpack.c.bf16 %v2788, %v2784
  %v3013 = vpack.c.bf16 %v2789, %v2785
  %v3014 = vpack.c.bf16 %v2794, %v2790
  %v3015 = vpack.c.bf16 %v2795, %v2791
  %v3016 = vpack.c.bf16 %v2796, %v2792
  %v3017 = vpack.c.bf16 %v2797, %v2793
  %v3018 = vpack.c.bf16 %v2802, %v2798
  %v3019 = vpack.c.bf16 %v2803, %v2799
  %v3020 = vpack.c.bf16 %v2804, %v2800
  %v3021 = vpack.c.bf16 %v2805, %v2801
  %v3022 = vpack.c.bf16 %v2810, %v2806
  %v3023 = vpack.c.bf16 %v2811, %v2807
  %v3024 = vpack.c.bf16 %v2812, %v2808
  %v3025 = vpack.c.bf16 %v2813, %v2809
  %v3026 = vpack.c.bf16 %v2818, %v2814
  %v3027 = vpack.c.bf16 %v2819, %v2815
  %v3028 = vpack.c.bf16 %v2820, %v2816
  %v3029 = vpack.c.bf16 %v2821, %v2817
  %v3030 = vpack.c.bf16 %v2826, %v2822
  %v3031 = vpack.c.bf16 %v2827, %v2823
  %v3032 = vpack.c.bf16 %v2828, %v2824
  %v3033 = vpack.c.bf16 %v2829, %v2825
  %v3034 = vpack.c.bf16 %v2834, %v2830
  %v3035 = vpack.c.bf16 %v2835, %v2831
  %v3036 = vpack.c.bf16 %v2836, %v2832
  %v3037 = vpack.c.bf16 %v2837, %v2833
  %v3038 = vpack.c.bf16 %v2842, %v2838
  %v3039 = vpack.c.bf16 %v2843, %v2839
  %v3040 = vpack.c.bf16 %v2844, %v2840
  %v3041 = vpack.c.bf16 %v2845, %v2841
  %v3042 = vpack.c.bf16 %v2850, %v2846
  %v3043 = vpack.c.bf16 %v2851, %v2847
  %v3044 = vpack.c.bf16 %v2852, %v2848
  %v3045 = vpack.c.bf16 %v2853, %v2849
  %v3046 = vpack.c.bf16 %v2858, %v2854
  %v3047 = vpack.c.bf16 %v2859, %v2855
  %v3048 = vpack.c.bf16 %v2860, %v2856
  %v3049 = vpack.c.bf16 %v2861, %v2857
  %v3050 = vpack.c.bf16 %v2866, %v2862
  %v3051 = vpack.c.bf16 %v2867, %v2863
  %v3052 = vpack.c.bf16 %v2868, %v2864
  %v3053 = vpack.c.bf16 %v2869, %v2865
  %v3054 = vpack.c.bf16 %v2874, %v2870
  %v3055 = vpack.c.bf16 %v2875, %v2871
  %v3056 = vpack.c.bf16 %v2876, %v2872
  %v3057 = vpack.c.bf16 %v2877, %v2873
  %v3058 = vpack.c.bf16 %v2882, %v2878
  %v3059 = vpack.c.bf16 %v2883, %v2879
  %v3060 = vpack.c.bf16 %v2884, %v2880
  %v3061 = vpack.c.bf16 %v2885, %v2881
  %v3062 = vpack.c.bf16 %v2890, %v2886
  %v3063 = vpack.c.bf16 %v2891, %v2887
  %v3064 = vpack.c.bf16 %v2892, %v2888
  %v3065 = vpack.c.bf16 %v2893, %v2889
  %v3066 = vpack.c.bf16 %v2898, %v2894
  %v3067 = vpack.c.bf16 %v2899, %v2895
  %v3068 = vpack.c.bf16 %v2900, %v2896
  %v3069 = vpack.c.bf16 %v2901, %v2897
  %v3070 = vpack.c.bf16 %v2906, %v2902
  %v3071 = vpack.c.bf16 %v2907, %v2903
  %v3072 = vpack.c.bf16 %v2908, %v2904
  %v3073 = vpack.c.bf16 %v2909, %v2905
  %v3074 = vpack.c.bf16 %v2914, %v2910
  %v3075 = vpack.c.bf16 %v2915, %v2911
  %v3076 = vpack.c.bf16 %v2916, %v2912
  %v3077 = vpack.c.bf16 %v2917, %v2913
  %v3078 = vpack.c.bf16 %v2922, %v2918
  %v3079 = vpack.c.bf16 %v2923, %v2919
  %v3080 = vpack.c.bf16 %v2924, %v2920
  %v3081 = vpack.c.bf16 %v2925, %v2921
  %v3082 = vpack.c.bf16 %v2930, %v2926
  %v3083 = vpack.c.bf16 %v2931, %v2927
  %v3084 = vpack.c.bf16 %v2932, %v2928
  %v3085 = vpack.c.bf16 %v2933, %v2929
  %v3086 = vpack.c.bf16 %v2938, %v2934
  %v3087 = vpack.c.bf16 %v2939, %v2935
  %v3088 = vpack.c.bf16 %v2940, %v2936
  %v3089 = vpack.c.bf16 %v2941, %v2937
  %v3090 = vpack.c.bf16 %v2946, %v2942
  %v3091 = vpack.c.bf16 %v2947, %v2943
  %v3092 = vpack.c.bf16 %v2948, %v2944
  %v3093 = vpack.c.bf16 %v2949, %v2945
  %v3094 = vpack.c.bf16 %v2954, %v2950
  %v3095 = vpack.c.bf16 %v2955, %v2951
  %v3096 = vpack.c.bf16 %v2956, %v2952
  %v3097 = vpack.c.bf16 %v2957, %v2953
  %v3098 = vpack.c.bf16 %v2962, %v2958
  %v3099 = vpack.c.bf16 %v2963, %v2959
  %v3100 = vpack.c.bf16 %v2964, %v2960
  %v3101 = vpack.c.bf16 %v2965, %v2961
  %v3102 = vpack.c.bf16 %v2970, %v2966
  %v3103 = vpack.c.bf16 %v2971, %v2967
  %v3104 = vpack.c.bf16 %v2972, %v2968
  %v3105 = vpack.c.bf16 %v2973, %v2969
  %v3106 = vpack.c.bf16 %v2978, %v2974
  %v3107 = vpack.c.bf16 %v2979, %v2975
  %v3108 = vpack.c.bf16 %v2980, %v2976
  %v3109 = vpack.c.bf16 %v2981, %v2977
  %v3110 = vld [vmem:[%s3] sm:$0xff]
  %v3111 = vld [vmem:[%s3 + $0x8] sm:$0xff]
  %v3112 = vld [vmem:[%s3 + $0x10] sm:$0xff]
  %v3113 = vld [vmem:[%s3 + $0x18] sm:$0xff]
  %v3114 = vld [vmem:[%s3 + $0x20] sm:$0xff]
  %v3115 = vld [vmem:[%s3 + $0x28] sm:$0xff]
  %v3116 = vld [vmem:[%s3 + $0x30] sm:$0xff]
  %v3117 = vld [vmem:[%s3 + $0x38] sm:$0xff]
  %v3118 = vld [vmem:[%s3 + $0x40] sm:$0xff]
  %v3119 = vld [vmem:[%s3 + $0x48] sm:$0xff]
  %v3120 = vld [vmem:[%s3 + $0x50] sm:$0xff]
  %v3121 = vld [vmem:[%s3 + $0x58] sm:$0xff]
  %v3122 = vld [vmem:[%s3 + $0x60] sm:$0xff]
  %v3123 = vld [vmem:[%s3 + $0x68] sm:$0xff]
  %v3124 = vld [vmem:[%s3 + $0x70] sm:$0xff]
  %v3125 = vld [vmem:[%s3 + $0x78] sm:$0xff]
  %v3126 = vld [vmem:[%s3 + $0x80] sm:$0xff]
  %v3127 = vld [vmem:[%s3 + $0x88] sm:$0xff]
  %v3128 = vld [vmem:[%s3 + $0x90] sm:$0xff]
  %v3129 = vld [vmem:[%s3 + $0x98] sm:$0xff]
  %v3130 = vld [vmem:[%s3 + $0xa0] sm:$0xff]
  %v3131 = vld [vmem:[%s3 + $0xa8] sm:$0xff]
  %v3132 = vld [vmem:[%s3 + $0xb0] sm:$0xff]
  %v3133 = vld [vmem:[%s3 + $0xb8] sm:$0xff]
  %v3134 = vld [vmem:[%s3 + $0xc0] sm:$0xff]
  %v3135 = vld [vmem:[%s3 + $0xc8] sm:$0xff]
  %v3136 = vld [vmem:[%s3 + $0xd0] sm:$0xff]
  %v3137 = vld [vmem:[%s3 + $0xd8] sm:$0xff]
  %v3138 = vld [vmem:[%s3 + $0xe0] sm:$0xff]
  %v3139 = vld [vmem:[%s3 + $0xe8] sm:$0xff]
  %v3140 = vld [vmem:[%s3 + $0xf0] sm:$0xff]
  %v3141 = vld [vmem:[%s3 + $0xf8] sm:$0xff]
  %v3142 = vld [vmem:[%s3 + $0x100] sm:$0xff]
  %v3143 = vld [vmem:[%s3 + $0x108] sm:$0xff]
  %v3144 = vld [vmem:[%s3 + $0x110] sm:$0xff]
  %v3145 = vld [vmem:[%s3 + $0x118] sm:$0xff]
  %v3146 = vld [vmem:[%s3 + $0x120] sm:$0xff]
  %v3147 = vld [vmem:[%s3 + $0x128] sm:$0xff]
  %v3148 = vld [vmem:[%s3 + $0x130] sm:$0xff]
  %v3149 = vld [vmem:[%s3 + $0x138] sm:$0xff]
  %v3150 = vld [vmem:[%s3 + $0x140] sm:$0xff]
  %v3151 = vld [vmem:[%s3 + $0x148] sm:$0xff]
  %v3152 = vld [vmem:[%s3 + $0x150] sm:$0xff]
  %v3153 = vld [vmem:[%s3 + $0x158] sm:$0xff]
  %v3154 = vld [vmem:[%s3 + $0x160] sm:$0xff]
  %v3155 = vld [vmem:[%s3 + $0x168] sm:$0xff]
  %v3156 = vld [vmem:[%s3 + $0x170] sm:$0xff]
  %v3157 = vld [vmem:[%s3 + $0x178] sm:$0xff]
  %v3158 = vld [vmem:[%s3 + $0x180] sm:$0xff]
  %v3159 = vld [vmem:[%s3 + $0x188] sm:$0xff]
  %v3160 = vld [vmem:[%s3 + $0x190] sm:$0xff]
  %v3161 = vld [vmem:[%s3 + $0x198] sm:$0xff]
  %v3162 = vld [vmem:[%s3 + $0x1a0] sm:$0xff]
  %v3163 = vld [vmem:[%s3 + $0x1a8] sm:$0xff]
  %v3164 = vld [vmem:[%s3 + $0x1b0] sm:$0xff]
  %v3165 = vld [vmem:[%s3 + $0x1b8] sm:$0xff]
  %v3166 = vld [vmem:[%s3 + $0x1c0] sm:$0xff]
  %v3167 = vld [vmem:[%s3 + $0x1c8] sm:$0xff]
  %v3168 = vld [vmem:[%s3 + $0x1d0] sm:$0xff]
  %v3169 = vld [vmem:[%s3 + $0x1d8] sm:$0xff]
  %v3170 = vld [vmem:[%s3 + $0x1e0] sm:$0xff]
  %v3171 = vld [vmem:[%s3 + $0x1e8] sm:$0xff]
  %v3172 = vld [vmem:[%s3 + $0x1f0] sm:$0xff]
  %v3173 = vld [vmem:[%s3 + $0x1f8] sm:$0xff]
  %v3174 = vld [vmem:[%s4] sm:$0x3]
  %v3176 = vperm.slane %v3174, 0
  %v3177 = vperm.slane %v3174, 1
  %v3244 = vunpack.c.l.b16 %v3110
  %v3245 = vunpack.c.h.b16 %v3110
  %v3246 = vunpack.c.l.b16 %v3111
  %v3247 = vunpack.c.h.b16 %v3111
  %v3248 = vunpack.c.l.b16 %v3112
  %v3249 = vunpack.c.h.b16 %v3112
  %v3250 = vunpack.c.l.b16 %v3113
  %v3251 = vunpack.c.h.b16 %v3113
  %v3252 = vunpack.c.l.b16 %v3114
  %v3253 = vunpack.c.h.b16 %v3114
  %v3254 = vunpack.c.l.b16 %v3115
  %v3255 = vunpack.c.h.b16 %v3115
  %v3256 = vunpack.c.l.b16 %v3116
  %v3257 = vunpack.c.h.b16 %v3116
  %v3258 = vunpack.c.l.b16 %v3117
  %v3259 = vunpack.c.h.b16 %v3117
  %v3260 = vunpack.c.l.b16 %v3118
  %v3261 = vunpack.c.h.b16 %v3118
  %v3262 = vunpack.c.l.b16 %v3119
  %v3263 = vunpack.c.h.b16 %v3119
  %v3264 = vunpack.c.l.b16 %v3120
  %v3265 = vunpack.c.h.b16 %v3120
  %v3266 = vunpack.c.l.b16 %v3121
  %v3267 = vunpack.c.h.b16 %v3121
  %v3268 = vunpack.c.l.b16 %v3122
  %v3269 = vunpack.c.h.b16 %v3122
  %v3270 = vunpack.c.l.b16 %v3123
  %v3271 = vunpack.c.h.b16 %v3123
  %v3272 = vunpack.c.l.b16 %v3124
  %v3273 = vunpack.c.h.b16 %v3124
  %v3274 = vunpack.c.l.b16 %v3125
  %v3275 = vunpack.c.h.b16 %v3125
  %v3276 = vunpack.c.l.b16 %v3126
  %v3277 = vunpack.c.h.b16 %v3126
  %v3278 = vunpack.c.l.b16 %v3127
  %v3279 = vunpack.c.h.b16 %v3127
  %v3280 = vunpack.c.l.b16 %v3128
  %v3281 = vunpack.c.h.b16 %v3128
  %v3282 = vunpack.c.l.b16 %v3129
  %v3283 = vunpack.c.h.b16 %v3129
  %v3284 = vunpack.c.l.b16 %v3130
  %v3285 = vunpack.c.h.b16 %v3130
  %v3286 = vunpack.c.l.b16 %v3131
  %v3287 = vunpack.c.h.b16 %v3131
  %v3288 = vunpack.c.l.b16 %v3132
  %v3289 = vunpack.c.h.b16 %v3132
  %v3290 = vunpack.c.l.b16 %v3133
  %v3291 = vunpack.c.h.b16 %v3133
  %v3292 = vunpack.c.l.b16 %v3134
  %v3293 = vunpack.c.h.b16 %v3134
  %v3294 = vunpack.c.l.b16 %v3135
  %v3295 = vunpack.c.h.b16 %v3135
  %v3296 = vunpack.c.l.b16 %v3136
  %v3297 = vunpack.c.h.b16 %v3136
  %v3298 = vunpack.c.l.b16 %v3137
  %v3299 = vunpack.c.h.b16 %v3137
  %v3300 = vunpack.c.l.b16 %v3138
  %v3301 = vunpack.c.h.b16 %v3138
  %v3302 = vunpack.c.l.b16 %v3139
  %v3303 = vunpack.c.h.b16 %v3139
  %v3304 = vunpack.c.l.b16 %v3140
  %v3305 = vunpack.c.h.b16 %v3140
  %v3306 = vunpack.c.l.b16 %v3141
  %v3307 = vunpack.c.h.b16 %v3141
  %v3308 = vunpack.c.l.b16 %v3142
  %v3309 = vunpack.c.h.b16 %v3142
  %v3310 = vunpack.c.l.b16 %v3143
  %v3311 = vunpack.c.h.b16 %v3143
  %v3312 = vunpack.c.l.b16 %v3144
  %v3313 = vunpack.c.h.b16 %v3144
  %v3314 = vunpack.c.l.b16 %v3145
  %v3315 = vunpack.c.h.b16 %v3145
  %v3316 = vunpack.c.l.b16 %v3146
  %v3317 = vunpack.c.h.b16 %v3146
  %v3318 = vunpack.c.l.b16 %v3147
  %v3319 = vunpack.c.h.b16 %v3147
  %v3320 = vunpack.c.l.b16 %v3148
  %v3321 = vunpack.c.h.b16 %v3148
  %v3322 = vunpack.c.l.b16 %v3149
  %v3323 = vunpack.c.h.b16 %v3149
  %v3324 = vunpack.c.l.b16 %v3150
  %v3325 = vunpack.c.h.b16 %v3150
  %v3326 = vunpack.c.l.b16 %v3151
  %v3327 = vunpack.c.h.b16 %v3151
  %v3328 = vunpack.c.l.b16 %v3152
  %v3329 = vunpack.c.h.b16 %v3152
  %v3330 = vunpack.c.l.b16 %v3153
  %v3331 = vunpack.c.h.b16 %v3153
  %v3332 = vunpack.c.l.b16 %v3154
  %v3333 = vunpack.c.h.b16 %v3154
  %v3334 = vunpack.c.l.b16 %v3155
  %v3335 = vunpack.c.h.b16 %v3155
  %v3336 = vunpack.c.l.b16 %v3156
  %v3337 = vunpack.c.h.b16 %v3156
  %v3338 = vunpack.c.l.b16 %v3157
  %v3339 = vunpack.c.h.b16 %v3157
  %v3340 = vunpack.c.l.b16 %v3158
  %v3341 = vunpack.c.h.b16 %v3158
  %v3342 = vunpack.c.l.b16 %v3159
  %v3343 = vunpack.c.h.b16 %v3159
  %v3344 = vunpack.c.l.b16 %v3160
  %v3345 = vunpack.c.h.b16 %v3160
  %v3346 = vunpack.c.l.b16 %v3161
  %v3347 = vunpack.c.h.b16 %v3161
  %v3348 = vunpack.c.l.b16 %v3162
  %v3349 = vunpack.c.h.b16 %v3162
  %v3350 = vunpack.c.l.b16 %v3163
  %v3351 = vunpack.c.h.b16 %v3163
  %v3352 = vunpack.c.l.b16 %v3164
  %v3353 = vunpack.c.h.b16 %v3164
  %v3354 = vunpack.c.l.b16 %v3165
  %v3355 = vunpack.c.h.b16 %v3165
  %v3356 = vunpack.c.l.b16 %v3166
  %v3357 = vunpack.c.h.b16 %v3166
  %v3358 = vunpack.c.l.b16 %v3167
  %v3359 = vunpack.c.h.b16 %v3167
  %v3360 = vunpack.c.l.b16 %v3168
  %v3361 = vunpack.c.h.b16 %v3168
  %v3362 = vunpack.c.l.b16 %v3169
  %v3363 = vunpack.c.h.b16 %v3169
  %v3364 = vunpack.c.l.b16 %v3170
  %v3365 = vunpack.c.h.b16 %v3170
  %v3366 = vunpack.c.l.b16 %v3171
  %v3367 = vunpack.c.h.b16 %v3171
  %v3368 = vunpack.c.l.b16 %v3172
  %v3369 = vunpack.c.h.b16 %v3172
  %v3370 = vunpack.c.l.b16 %v3173
  %v3371 = vunpack.c.h.b16 %v3173
  %v3372 = vpack.c.b16 %v3246, %v3244
  %v3373 = vpack.c.b16 %v3247, %v3245
  %v3374 = vpack.c.b16 %v3250, %v3248
  %v3375 = vpack.c.b16 %v3251, %v3249
  %v3376 = vpack.c.b16 %v3254, %v3252
  %v3377 = vpack.c.b16 %v3255, %v3253
  %v3378 = vpack.c.b16 %v3258, %v3256
  %v3379 = vpack.c.b16 %v3259, %v3257
  %v3380 = vpack.c.b16 %v3262, %v3260
  %v3381 = vpack.c.b16 %v3263, %v3261
  %v3382 = vpack.c.b16 %v3266, %v3264
  %v3383 = vpack.c.b16 %v3267, %v3265
  %v3384 = vpack.c.b16 %v3270, %v3268
  %v3385 = vpack.c.b16 %v3271, %v3269
  %v3386 = vpack.c.b16 %v3274, %v3272
  %v3387 = vpack.c.b16 %v3275, %v3273
  %v3388 = vpack.c.b16 %v3278, %v3276
  %v3389 = vpack.c.b16 %v3279, %v3277
  %v3390 = vpack.c.b16 %v3282, %v3280
  %v3391 = vpack.c.b16 %v3283, %v3281
  %v3392 = vpack.c.b16 %v3286, %v3284
  %v3393 = vpack.c.b16 %v3287, %v3285
  %v3394 = vpack.c.b16 %v3290, %v3288
  %v3395 = vpack.c.b16 %v3291, %v3289
  %v3396 = vpack.c.b16 %v3294, %v3292
  %v3397 = vpack.c.b16 %v3295, %v3293
  %v3398 = vpack.c.b16 %v3298, %v3296
  %v3399 = vpack.c.b16 %v3299, %v3297
  %v3400 = vpack.c.b16 %v3302, %v3300
  %v3401 = vpack.c.b16 %v3303, %v3301
  %v3402 = vpack.c.b16 %v3306, %v3304
  %v3403 = vpack.c.b16 %v3307, %v3305
  %v3404 = vpack.c.b16 %v3310, %v3308
  %v3405 = vpack.c.b16 %v3311, %v3309
  %v3406 = vpack.c.b16 %v3314, %v3312
  %v3407 = vpack.c.b16 %v3315, %v3313
  %v3408 = vpack.c.b16 %v3318, %v3316
  %v3409 = vpack.c.b16 %v3319, %v3317
  %v3410 = vpack.c.b16 %v3322, %v3320
  %v3411 = vpack.c.b16 %v3323, %v3321
  %v3412 = vpack.c.b16 %v3326, %v3324
  %v3413 = vpack.c.b16 %v3327, %v3325
  %v3414 = vpack.c.b16 %v3330, %v3328
  %v3415 = vpack.c.b16 %v3331, %v3329
  %v3416 = vpack.c.b16 %v3334, %v3332
  %v3417 = vpack.c.b16 %v3335, %v3333
  %v3418 = vpack.c.b16 %v3338, %v3336
  %v3419 = vpack.c.b16 %v3339, %v3337
  %v3420 = vpack.c.b16 %v3342, %v3340
  %v3421 = vpack.c.b16 %v3343, %v3341
  %v3422 = vpack.c.b16 %v3346, %v3344
  %v3423 = vpack.c.b16 %v3347, %v3345
  %v3424 = vpack.c.b16 %v3350, %v3348
  %v3425 = vpack.c.b16 %v3351, %v3349
  %v3426 = vpack.c.b16 %v3354, %v3352
  %v3427 = vpack.c.b16 %v3355, %v3353
  %v3428 = vpack.c.b16 %v3358, %v3356
  %v3429 = vpack.c.b16 %v3359, %v3357
  %v3430 = vpack.c.b16 %v3362, %v3360
  %v3431 = vpack.c.b16 %v3363, %v3361
  %v3432 = vpack.c.b16 %v3366, %v3364
  %v3433 = vpack.c.b16 %v3367, %v3365
  %v3434 = vpack.c.b16 %v3370, %v3368
  %v3435 = vpack.c.b16 %v3371, %v3369
  %3500 = vmatpush.bf16.msra.mxu0 %v3386
  %3501 = vmatpush.bf16.msra.mxu0 %v3384
  %3502 = vmatpush.bf16.msra.mxu0 %v3382
  %3503 = vmatpush.bf16.msra.mxu0 %v3380
  %3504 = vmatpush.bf16.msra.mxu0 %v3378
  %3505 = vmatpush.bf16.msra.mxu0 %v3376
  %3506 = vmatpush.bf16.msra.mxu0 %v3374
  %3507 = vmatpush.bf16.msra.mxu0 %v3372
  %3508 = vmatmul.bf16.gmra.mxu0 %v2982
  %v3509 = vpop.f32.mrf.mxu0
  %v3510 = vadd.f32 %v3176, %v3509
  %v3511 = vpop.f32.mrf.mxu0
  %v3512 = vadd.f32 %v3176, %v3511
  %3513 = vmatmul.bf16.gmra.mxu0 %v2986
  %v3514 = vpop.f32.mrf.mxu0
  %v3515 = vadd.f32 %v3176, %v3514
  %v3516 = vpop.f32.mrf.mxu0
  %v3517 = vadd.f32 %v3176, %v3516
  %3518 = vmatmul.bf16.gmra.mxu0 %v2990
  %v3519 = vpop.f32.mrf.mxu0
  %v3520 = vadd.f32 %v3176, %v3519
  %v3521 = vpop.f32.mrf.mxu0
  %v3522 = vadd.f32 %v3176, %v3521
  %3523 = vmatmul.bf16.gmra.mxu0 %v2994
  %v3524 = vpop.f32.mrf.mxu0
  %v3525 = vadd.f32 %v3176, %v3524
  %v3526 = vpop.f32.mrf.mxu0
  %v3527 = vadd.f32 %v3176, %v3526
  %3528 = vmatmul.bf16.gmra.mxu0 %v2998
  %v3529 = vpop.f32.mrf.mxu0
  %v3530 = vadd.f32 %v3176, %v3529
  %v3531 = vpop.f32.mrf.mxu0
  %v3532 = vadd.f32 %v3176, %v3531
  %3533 = vmatmul.bf16.gmra.mxu0 %v3002
  %v3534 = vpop.f32.mrf.mxu0
  %v3535 = vadd.f32 %v3176, %v3534
  %v3536 = vpop.f32.mrf.mxu0
  %v3537 = vadd.f32 %v3176, %v3536
  %3538 = vmatmul.bf16.gmra.mxu0 %v3006
  %v3539 = vpop.f32.mrf.mxu0
  %v3540 = vadd.f32 %v3176, %v3539
  %v3541 = vpop.f32.mrf.mxu0
  %v3542 = vadd.f32 %v3176, %v3541
  %3543 = vmatmul.bf16.gmra.mxu0 %v3010
  %v3544 = vpop.f32.mrf.mxu0
  %v3545 = vadd.f32 %v3176, %v3544
  %v3546 = vpop.f32.mrf.mxu0
  %v3547 = vadd.f32 %v3176, %v3546
  %3548 = vmatmul.bf16.gmra.mxu0 %v3014
  %v3549 = vpop.f32.mrf.mxu0
  %v3550 = vadd.f32 %v3176, %v3549
  %v3551 = vpop.f32.mrf.mxu0
  %v3552 = vadd.f32 %v3176, %v3551
  %3553 = vmatmul.bf16.gmra.mxu0 %v3018
  %v3554 = vpop.f32.mrf.mxu0
  %v3555 = vadd.f32 %v3176, %v3554
  %v3556 = vpop.f32.mrf.mxu0
  %v3557 = vadd.f32 %v3176, %v3556
  %3558 = vmatmul.bf16.gmra.mxu0 %v3022
  %v3559 = vpop.f32.mrf.mxu0
  %v3560 = vadd.f32 %v3176, %v3559
  %v3561 = vpop.f32.mrf.mxu0
  %v3562 = vadd.f32 %v3176, %v3561
  %3563 = vmatmul.bf16.gmra.mxu0 %v3026
  %v3564 = vpop.f32.mrf.mxu0
  %v3565 = vadd.f32 %v3176, %v3564
  %v3566 = vpop.f32.mrf.mxu0
  %v3567 = vadd.f32 %v3176, %v3566
  %3568 = vmatmul.bf16.gmra.mxu0 %v3030
  %v3569 = vpop.f32.mrf.mxu0
  %v3570 = vadd.f32 %v3176, %v3569
  %v3571 = vpop.f32.mrf.mxu0
  %v3572 = vadd.f32 %v3176, %v3571
  %3573 = vmatmul.bf16.gmra.mxu0 %v3034
  %v3574 = vpop.f32.mrf.mxu0
  %v3575 = vadd.f32 %v3176, %v3574
  %v3576 = vpop.f32.mrf.mxu0
  %v3577 = vadd.f32 %v3176, %v3576
  %3578 = vmatmul.bf16.gmra.mxu0 %v3038
  %v3579 = vpop.f32.mrf.mxu0
  %v3580 = vadd.f32 %v3176, %v3579
  %v3581 = vpop.f32.mrf.mxu0
  %v3582 = vadd.f32 %v3176, %v3581
  %3583 = vmatmul.bf16.gmra.mxu0 %v3042
  %v3584 = vpop.f32.mrf.mxu0
  %v3585 = vadd.f32 %v3176, %v3584
  %v3586 = vpop.f32.mrf.mxu0
  %v3587 = vadd.f32 %v3176, %v3586
  %3588 = vmatmul.bf16.gmra.mxu0 %v3046
  %v3589 = vpop.f32.mrf.mxu0
  %v3590 = vadd.f32 %v3176, %v3589
  %v3591 = vpop.f32.mrf.mxu0
  %v3592 = vadd.f32 %v3176, %v3591
  %3593 = vmatmul.bf16.gmra.mxu0 %v3050
  %v3594 = vpop.f32.mrf.mxu0
  %v3595 = vadd.f32 %v3176, %v3594
  %v3596 = vpop.f32.mrf.mxu0
  %v3597 = vadd.f32 %v3176, %v3596
  %3598 = vmatmul.bf16.gmra.mxu0 %v3054
  %v3599 = vpop.f32.mrf.mxu0
  %v3600 = vadd.f32 %v3176, %v3599
  %v3601 = vpop.f32.mrf.mxu0
  %v3602 = vadd.f32 %v3176, %v3601
  %3603 = vmatmul.bf16.gmra.mxu0 %v3058
  %v3604 = vpop.f32.mrf.mxu0
  %v3605 = vadd.f32 %v3176, %v3604
  %v3606 = vpop.f32.mrf.mxu0
  %v3607 = vadd.f32 %v3176, %v3606
  %3608 = vmatmul.bf16.gmra.mxu0 %v3062
  %v3609 = vpop.f32.mrf.mxu0
  %v3610 = vadd.f32 %v3176, %v3609
  %v3611 = vpop.f32.mrf.mxu0
  %v3612 = vadd.f32 %v3176, %v3611
  %3613 = vmatmul.bf16.gmra.mxu0 %v3066
  %v3614 = vpop.f32.mrf.mxu0
  %v3615 = vadd.f32 %v3176, %v3614
  %v3616 = vpop.f32.mrf.mxu0
  %v3617 = vadd.f32 %v3176, %v3616
  %3618 = vmatmul.bf16.gmra.mxu0 %v3070
  %v3619 = vpop.f32.mrf.mxu0
  %v3620 = vadd.f32 %v3176, %v3619
  %v3621 = vpop.f32.mrf.mxu0
  %v3622 = vadd.f32 %v3176, %v3621
  %3623 = vmatmul.bf16.gmra.mxu0 %v3074
  %v3624 = vpop.f32.mrf.mxu0
  %v3625 = vadd.f32 %v3176, %v3624
  %v3626 = vpop.f32.mrf.mxu0
  %v3627 = vadd.f32 %v3176, %v3626
  %3628 = vmatmul.bf16.gmra.mxu0 %v3078
  %v3629 = vpop.f32.mrf.mxu0
  %v3630 = vadd.f32 %v3176, %v3629
  %v3631 = vpop.f32.mrf.mxu0
  %v3632 = vadd.f32 %v3176, %v3631
  %3633 = vmatmul.bf16.gmra.mxu0 %v3082
  %v3634 = vpop.f32.mrf.mxu0
  %v3635 = vadd.f32 %v3176, %v3634
  %v3636 = vpop.f32.mrf.mxu0
  %v3637 = vadd.f32 %v3176, %v3636
  %3638 = vmatmul.bf16.gmra.mxu0 %v3086
  %v3639 = vpop.f32.mrf.mxu0
  %v3640 = vadd.f32 %v3176, %v3639
  %v3641 = vpop.f32.mrf.mxu0
  %v3642 = vadd.f32 %v3176, %v3641
  %3643 = vmatmul.bf16.gmra.mxu0 %v3090
  %v3644 = vpop.f32.mrf.mxu0
  %v3645 = vadd.f32 %v3176, %v3644
  %v3646 = vpop.f32.mrf.mxu0
  %v3647 = vadd.f32 %v3176, %v3646
  %3648 = vmatmul.bf16.gmra.mxu0 %v3094
  %v3649 = vpop.f32.mrf.mxu0
  %v3650 = vadd.f32 %v3176, %v3649
  %v3651 = vpop.f32.mrf.mxu0
  %v3652 = vadd.f32 %v3176, %v3651
  %3653 = vmatmul.bf16.gmra.mxu0 %v3098
  %v3654 = vpop.f32.mrf.mxu0
  %v3655 = vadd.f32 %v3176, %v3654
  %v3656 = vpop.f32.mrf.mxu0
  %v3657 = vadd.f32 %v3176, %v3656
  %3658 = vmatmul.bf16.gmra.mxu0 %v3102
  %v3659 = vpop.f32.mrf.mxu0
  %v3660 = vadd.f32 %v3176, %v3659
  %v3661 = vpop.f32.mrf.mxu0
  %v3662 = vadd.f32 %v3176, %v3661
  %3663 = vmatmul.bf16.gmra.mxu0 %v3106
  %v3664 = vpop.f32.mrf.mxu0
  %v3665 = vadd.f32 %v3176, %v3664
  %v3666 = vpop.f32.mrf.mxu0
  %v3667 = vadd.f32 %v3176, %v3666
  %3668 = vdwg.mxu0
  %3669 = vmatpush.bf16.msra.mxu0 %v3402
  %3670 = vmatpush.bf16.msra.mxu0 %v3400
  %3671 = vmatpush.bf16.msra.mxu0 %v3398
  %3672 = vmatpush.bf16.msra.mxu0 %v3396
  %3673 = vmatpush.bf16.msra.mxu0 %v3394
  %3674 = vmatpush.bf16.msra.mxu0 %v3392
  %3675 = vmatpush.bf16.msra.mxu0 %v3390
  %3676 = vmatpush.bf16.msra.mxu0 %v3388
  %3677 = vmatmul.bf16.gmra.mxu0 %v2983
  %v3678 = vpop.f32.mrf.mxu0
  %v3679 = vadd.f32 %v3510, %v3678
  %v3680 = vpop.f32.mrf.mxu0
  %v3681 = vadd.f32 %v3512, %v3680
  %3682 = vmatmul.bf16.gmra.mxu0 %v2987
  %v3683 = vpop.f32.mrf.mxu0
  %v3684 = vadd.f32 %v3515, %v3683
  %v3685 = vpop.f32.mrf.mxu0
  %v3686 = vadd.f32 %v3517, %v3685
  %3687 = vmatmul.bf16.gmra.mxu0 %v2991
  %v3688 = vpop.f32.mrf.mxu0
  %v3689 = vadd.f32 %v3520, %v3688
  %v3690 = vpop.f32.mrf.mxu0
  %v3691 = vadd.f32 %v3522, %v3690
  %3692 = vmatmul.bf16.gmra.mxu0 %v2995
  %v3693 = vpop.f32.mrf.mxu0
  %v3694 = vadd.f32 %v3525, %v3693
  %v3695 = vpop.f32.mrf.mxu0
  %v3696 = vadd.f32 %v3527, %v3695
  %3697 = vmatmul.bf16.gmra.mxu0 %v2999
  %v3698 = vpop.f32.mrf.mxu0
  %v3699 = vadd.f32 %v3530, %v3698
  %v3700 = vpop.f32.mrf.mxu0
  %v3701 = vadd.f32 %v3532, %v3700
  %3702 = vmatmul.bf16.gmra.mxu0 %v3003
  %v3703 = vpop.f32.mrf.mxu0
  %v3704 = vadd.f32 %v3535, %v3703
  %v3705 = vpop.f32.mrf.mxu0
  %v3706 = vadd.f32 %v3537, %v3705
  %3707 = vmatmul.bf16.gmra.mxu0 %v3007
  %v3708 = vpop.f32.mrf.mxu0
  %v3709 = vadd.f32 %v3540, %v3708
  %v3710 = vpop.f32.mrf.mxu0
  %v3711 = vadd.f32 %v3542, %v3710
  %3712 = vmatmul.bf16.gmra.mxu0 %v3011
  %v3713 = vpop.f32.mrf.mxu0
  %v3714 = vadd.f32 %v3545, %v3713
  %v3715 = vpop.f32.mrf.mxu0
  %v3716 = vadd.f32 %v3547, %v3715
  %3717 = vmatmul.bf16.gmra.mxu0 %v3015
  %v3718 = vpop.f32.mrf.mxu0
  %v3719 = vadd.f32 %v3550, %v3718
  %v3720 = vpop.f32.mrf.mxu0
  %v3721 = vadd.f32 %v3552, %v3720
  %3722 = vmatmul.bf16.gmra.mxu0 %v3019
  %v3723 = vpop.f32.mrf.mxu0
  %v3724 = vadd.f32 %v3555, %v3723
  %v3725 = vpop.f32.mrf.mxu0
  %v3726 = vadd.f32 %v3557, %v3725
  %3727 = vmatmul.bf16.gmra.mxu0 %v3023
  %v3728 = vpop.f32.mrf.mxu0
  %v3729 = vadd.f32 %v3560, %v3728
  %v3730 = vpop.f32.mrf.mxu0
  %v3731 = vadd.f32 %v3562, %v3730
  %3732 = vmatmul.bf16.gmra.mxu0 %v3027
  %v3733 = vpop.f32.mrf.mxu0
  %v3734 = vadd.f32 %v3565, %v3733
  %v3735 = vpop.f32.mrf.mxu0
  %v3736 = vadd.f32 %v3567, %v3735
  %3737 = vmatmul.bf16.gmra.mxu0 %v3031
  %v3738 = vpop.f32.mrf.mxu0
  %v3739 = vadd.f32 %v3570, %v3738
  %v3740 = vpop.f32.mrf.mxu0
  %v3741 = vadd.f32 %v3572, %v3740
  %3742 = vmatmul.bf16.gmra.mxu0 %v3035
  %v3743 = vpop.f32.mrf.mxu0
  %v3744 = vadd.f32 %v3575, %v3743
  %v3745 = vpop.f32.mrf.mxu0
  %v3746 = vadd.f32 %v3577, %v3745
  %3747 = vmatmul.bf16.gmra.mxu0 %v3039
  %v3748 = vpop.f32.mrf.mxu0
  %v3749 = vadd.f32 %v3580, %v3748
  %v3750 = vpop.f32.mrf.mxu0
  %v3751 = vadd.f32 %v3582, %v3750
  %3752 = vmatmul.bf16.gmra.mxu0 %v3043
  %v3753 = vpop.f32.mrf.mxu0
  %v3754 = vadd.f32 %v3585, %v3753
  %v3755 = vpop.f32.mrf.mxu0
  %v3756 = vadd.f32 %v3587, %v3755
  %3757 = vmatmul.bf16.gmra.mxu0 %v3047
  %v3758 = vpop.f32.mrf.mxu0
  %v3759 = vadd.f32 %v3590, %v3758
  %v3760 = vpop.f32.mrf.mxu0
  %v3761 = vadd.f32 %v3592, %v3760
  %3762 = vmatmul.bf16.gmra.mxu0 %v3051
  %v3763 = vpop.f32.mrf.mxu0
  %v3764 = vadd.f32 %v3595, %v3763
  %v3765 = vpop.f32.mrf.mxu0
  %v3766 = vadd.f32 %v3597, %v3765
  %3767 = vmatmul.bf16.gmra.mxu0 %v3055
  %v3768 = vpop.f32.mrf.mxu0
  %v3769 = vadd.f32 %v3600, %v3768
  %v3770 = vpop.f32.mrf.mxu0
  %v3771 = vadd.f32 %v3602, %v3770
  %3772 = vmatmul.bf16.gmra.mxu0 %v3059
  %v3773 = vpop.f32.mrf.mxu0
  %v3774 = vadd.f32 %v3605, %v3773
  %v3775 = vpop.f32.mrf.mxu0
  %v3776 = vadd.f32 %v3607, %v3775
  %3777 = vmatmul.bf16.gmra.mxu0 %v3063
  %v3778 = vpop.f32.mrf.mxu0
  %v3779 = vadd.f32 %v3610, %v3778
  %v3780 = vpop.f32.mrf.mxu0
  %v3781 = vadd.f32 %v3612, %v3780
  %3782 = vmatmul.bf16.gmra.mxu0 %v3067
  %v3783 = vpop.f32.mrf.mxu0
  %v3784 = vadd.f32 %v3615, %v3783
  %v3785 = vpop.f32.mrf.mxu0
  %v3786 = vadd.f32 %v3617, %v3785
  %3787 = vmatmul.bf16.gmra.mxu0 %v3071
  %v3788 = vpop.f32.mrf.mxu0
  %v3789 = vadd.f32 %v3620, %v3788
  %v3790 = vpop.f32.mrf.mxu0
  %v3791 = vadd.f32 %v3622, %v3790
  %3792 = vmatmul.bf16.gmra.mxu0 %v3075
  %v3793 = vpop.f32.mrf.mxu0
  %v3794 = vadd.f32 %v3625, %v3793
  %v3795 = vpop.f32.mrf.mxu0
  %v3796 = vadd.f32 %v3627, %v3795
  %3797 = vmatmul.bf16.gmra.mxu0 %v3079
  %v3798 = vpop.f32.mrf.mxu0
  %v3799 = vadd.f32 %v3630, %v3798
  %v3800 = vpop.f32.mrf.mxu0
  %v3801 = vadd.f32 %v3632, %v3800
  %3802 = vmatmul.bf16.gmra.mxu0 %v3083
  %v3803 = vpop.f32.mrf.mxu0
  %v3804 = vadd.f32 %v3635, %v3803
  %v3805 = vpop.f32.mrf.mxu0
  %v3806 = vadd.f32 %v3637, %v3805
  %3807 = vmatmul.bf16.gmra.mxu0 %v3087
  %v3808 = vpop.f32.mrf.mxu0
  %v3809 = vadd.f32 %v3640, %v3808
  %v3810 = vpop.f32.mrf.mxu0
  %v3811 = vadd.f32 %v3642, %v3810
  %3812 = vmatmul.bf16.gmra.mxu0 %v3091
  %v3813 = vpop.f32.mrf.mxu0
  %v3814 = vadd.f32 %v3645, %v3813
  %v3815 = vpop.f32.mrf.mxu0
  %v3816 = vadd.f32 %v3647, %v3815
  %3817 = vmatmul.bf16.gmra.mxu0 %v3095
  %v3818 = vpop.f32.mrf.mxu0
  %v3819 = vadd.f32 %v3650, %v3818
  %v3820 = vpop.f32.mrf.mxu0
  %v3821 = vadd.f32 %v3652, %v3820
  %3822 = vmatmul.bf16.gmra.mxu0 %v3099
  %v3823 = vpop.f32.mrf.mxu0
  %v3824 = vadd.f32 %v3655, %v3823
  %v3825 = vpop.f32.mrf.mxu0
  %v3826 = vadd.f32 %v3657, %v3825
  %3827 = vmatmul.bf16.gmra.mxu0 %v3103
  %v3828 = vpop.f32.mrf.mxu0
  %v3829 = vadd.f32 %v3660, %v3828
  %v3830 = vpop.f32.mrf.mxu0
  %v3831 = vadd.f32 %v3662, %v3830
  %3832 = vmatmul.bf16.gmra.mxu0 %v3107
  %v3833 = vpop.f32.mrf.mxu0
  %v3834 = vadd.f32 %v3665, %v3833
  %v3835 = vpop.f32.mrf.mxu0
  %v3836 = vadd.f32 %v3667, %v3835
  %3837 = vdwg.mxu0
  %3838 = vmatpush.bf16.msra.mxu0 %v3418
  %3839 = vmatpush.bf16.msra.mxu0 %v3416
  %3840 = vmatpush.bf16.msra.mxu0 %v3414
  %3841 = vmatpush.bf16.msra.mxu0 %v3412
  %3842 = vmatpush.bf16.msra.mxu0 %v3410
  %3843 = vmatpush.bf16.msra.mxu0 %v3408
  %3844 = vmatpush.bf16.msra.mxu0 %v3406
  %3845 = vmatpush.bf16.msra.mxu0 %v3404
  %3846 = vmatmul.bf16.gmra.mxu0 %v2984
  %v3847 = vpop.f32.mrf.mxu0
  %v3848 = vadd.f32 %v3679, %v3847
  %v3849 = vpop.f32.mrf.mxu0
  %v3850 = vadd.f32 %v3681, %v3849
  %3851 = vmatmul.bf16.gmra.mxu0 %v2988
  %v3852 = vpop.f32.mrf.mxu0
  %v3853 = vadd.f32 %v3684, %v3852
  %v3854 = vpop.f32.mrf.mxu0
  %v3855 = vadd.f32 %v3686, %v3854
  %3856 = vmatmul.bf16.gmra.mxu0 %v2992
  %v3857 = vpop.f32.mrf.mxu0
  %v3858 = vadd.f32 %v3689, %v3857
  %v3859 = vpop.f32.mrf.mxu0
  %v3860 = vadd.f32 %v3691, %v3859
  %3861 = vmatmul.bf16.gmra.mxu0 %v2996
  %v3862 = vpop.f32.mrf.mxu0
  %v3863 = vadd.f32 %v3694, %v3862
  %v3864 = vpop.f32.mrf.mxu0
  %v3865 = vadd.f32 %v3696, %v3864
  %3866 = vmatmul.bf16.gmra.mxu0 %v3000
  %v3867 = vpop.f32.mrf.mxu0
  %v3868 = vadd.f32 %v3699, %v3867
  %v3869 = vpop.f32.mrf.mxu0
  %v3870 = vadd.f32 %v3701, %v3869
  %3871 = vmatmul.bf16.gmra.mxu0 %v3004
  %v3872 = vpop.f32.mrf.mxu0
  %v3873 = vadd.f32 %v3704, %v3872
  %v3874 = vpop.f32.mrf.mxu0
  %v3875 = vadd.f32 %v3706, %v3874
  %3876 = vmatmul.bf16.gmra.mxu0 %v3008
  %v3877 = vpop.f32.mrf.mxu0
  %v3878 = vadd.f32 %v3709, %v3877
  %v3879 = vpop.f32.mrf.mxu0
  %v3880 = vadd.f32 %v3711, %v3879
  %3881 = vmatmul.bf16.gmra.mxu0 %v3012
  %v3882 = vpop.f32.mrf.mxu0
  %v3883 = vadd.f32 %v3714, %v3882
  %v3884 = vpop.f32.mrf.mxu0
  %v3885 = vadd.f32 %v3716, %v3884
  %3886 = vmatmul.bf16.gmra.mxu0 %v3016
  %v3887 = vpop.f32.mrf.mxu0
  %v3888 = vadd.f32 %v3719, %v3887
  %v3889 = vpop.f32.mrf.mxu0
  %v3890 = vadd.f32 %v3721, %v3889
  %3891 = vmatmul.bf16.gmra.mxu0 %v3020
  %v3892 = vpop.f32.mrf.mxu0
  %v3893 = vadd.f32 %v3724, %v3892
  %v3894 = vpop.f32.mrf.mxu0
  %v3895 = vadd.f32 %v3726, %v3894
  %3896 = vmatmul.bf16.gmra.mxu0 %v3024
  %v3897 = vpop.f32.mrf.mxu0
  %v3898 = vadd.f32 %v3729, %v3897
  %v3899 = vpop.f32.mrf.mxu0
  %v3900 = vadd.f32 %v3731, %v3899
  %3901 = vmatmul.bf16.gmra.mxu0 %v3028
  %v3902 = vpop.f32.mrf.mxu0
  %v3903 = vadd.f32 %v3734, %v3902
  %v3904 = vpop.f32.mrf.mxu0
  %v3905 = vadd.f32 %v3736, %v3904
  %3906 = vmatmul.bf16.gmra.mxu0 %v3032
  %v3907 = vpop.f32.mrf.mxu0
  %v3908 = vadd.f32 %v3739, %v3907
  %v3909 = vpop.f32.mrf.mxu0
  %v3910 = vadd.f32 %v3741, %v3909
  %3911 = vmatmul.bf16.gmra.mxu0 %v3036
  %v3912 = vpop.f32.mrf.mxu0
  %v3913 = vadd.f32 %v3744, %v3912
  %v3914 = vpop.f32.mrf.mxu0
  %v3915 = vadd.f32 %v3746, %v3914
  %3916 = vmatmul.bf16.gmra.mxu0 %v3040
  %v3917 = vpop.f32.mrf.mxu0
  %v3918 = vadd.f32 %v3749, %v3917
  %v3919 = vpop.f32.mrf.mxu0
  %v3920 = vadd.f32 %v3751, %v3919
  %3921 = vmatmul.bf16.gmra.mxu0 %v3044
  %v3922 = vpop.f32.mrf.mxu0
  %v3923 = vadd.f32 %v3754, %v3922
  %v3924 = vpop.f32.mrf.mxu0
  %v3925 = vadd.f32 %v3756, %v3924
  %3926 = vmatmul.bf16.gmra.mxu0 %v3048
  %v3927 = vpop.f32.mrf.mxu0
  %v3928 = vadd.f32 %v3759, %v3927
  %v3929 = vpop.f32.mrf.mxu0
  %v3930 = vadd.f32 %v3761, %v3929
  %3931 = vmatmul.bf16.gmra.mxu0 %v3052
  %v3932 = vpop.f32.mrf.mxu0
  %v3933 = vadd.f32 %v3764, %v3932
  %v3934 = vpop.f32.mrf.mxu0
  %v3935 = vadd.f32 %v3766, %v3934
  %3936 = vmatmul.bf16.gmra.mxu0 %v3056
  %v3937 = vpop.f32.mrf.mxu0
  %v3938 = vadd.f32 %v3769, %v3937
  %v3939 = vpop.f32.mrf.mxu0
  %v3940 = vadd.f32 %v3771, %v3939
  %3941 = vmatmul.bf16.gmra.mxu0 %v3060
  %v3942 = vpop.f32.mrf.mxu0
  %v3943 = vadd.f32 %v3774, %v3942
  %v3944 = vpop.f32.mrf.mxu0
  %v3945 = vadd.f32 %v3776, %v3944
  %3946 = vmatmul.bf16.gmra.mxu0 %v3064
  %v3947 = vpop.f32.mrf.mxu0
  %v3948 = vadd.f32 %v3779, %v3947
  %v3949 = vpop.f32.mrf.mxu0
  %v3950 = vadd.f32 %v3781, %v3949
  %3951 = vmatmul.bf16.gmra.mxu0 %v3068
  %v3952 = vpop.f32.mrf.mxu0
  %v3953 = vadd.f32 %v3784, %v3952
  %v3954 = vpop.f32.mrf.mxu0
  %v3955 = vadd.f32 %v3786, %v3954
  %3956 = vmatmul.bf16.gmra.mxu0 %v3072
  %v3957 = vpop.f32.mrf.mxu0
  %v3958 = vadd.f32 %v3789, %v3957
  %v3959 = vpop.f32.mrf.mxu0
  %v3960 = vadd.f32 %v3791, %v3959
  %3961 = vmatmul.bf16.gmra.mxu0 %v3076
  %v3962 = vpop.f32.mrf.mxu0
  %v3963 = vadd.f32 %v3794, %v3962
  %v3964 = vpop.f32.mrf.mxu0
  %v3965 = vadd.f32 %v3796, %v3964
  %3966 = vmatmul.bf16.gmra.mxu0 %v3080
  %v3967 = vpop.f32.mrf.mxu0
  %v3968 = vadd.f32 %v3799, %v3967
  %v3969 = vpop.f32.mrf.mxu0
  %v3970 = vadd.f32 %v3801, %v3969
  %3971 = vmatmul.bf16.gmra.mxu0 %v3084
  %v3972 = vpop.f32.mrf.mxu0
  %v3973 = vadd.f32 %v3804, %v3972
  %v3974 = vpop.f32.mrf.mxu0
  %v3975 = vadd.f32 %v3806, %v3974
  %3976 = vmatmul.bf16.gmra.mxu0 %v3088
  %v3977 = vpop.f32.mrf.mxu0
  %v3978 = vadd.f32 %v3809, %v3977
  %v3979 = vpop.f32.mrf.mxu0
  %v3980 = vadd.f32 %v3811, %v3979
  %3981 = vmatmul.bf16.gmra.mxu0 %v3092
  %v3982 = vpop.f32.mrf.mxu0
  %v3983 = vadd.f32 %v3814, %v3982
  %v3984 = vpop.f32.mrf.mxu0
  %v3985 = vadd.f32 %v3816, %v3984
  %3986 = vmatmul.bf16.gmra.mxu0 %v3096
  %v3987 = vpop.f32.mrf.mxu0
  %v3988 = vadd.f32 %v3819, %v3987
  %v3989 = vpop.f32.mrf.mxu0
  %v3990 = vadd.f32 %v3821, %v3989
  %3991 = vmatmul.bf16.gmra.mxu0 %v3100
  %v3992 = vpop.f32.mrf.mxu0
  %v3993 = vadd.f32 %v3824, %v3992
  %v3994 = vpop.f32.mrf.mxu0
  %v3995 = vadd.f32 %v3826, %v3994
  %3996 = vmatmul.bf16.gmra.mxu0 %v3104
  %v3997 = vpop.f32.mrf.mxu0
  %v3998 = vadd.f32 %v3829, %v3997
  %v3999 = vpop.f32.mrf.mxu0
  %v4000 = vadd.f32 %v3831, %v3999
  %4001 = vmatmul.bf16.gmra.mxu0 %v3108
  %v4002 = vpop.f32.mrf.mxu0
  %v4003 = vadd.f32 %v3834, %v4002
  %v4004 = vpop.f32.mrf.mxu0
  %v4005 = vadd.f32 %v3836, %v4004
  %4006 = vdwg.mxu0
  %4007 = vmatpush.bf16.msra.mxu0 %v3434
  %4008 = vmatpush.bf16.msra.mxu0 %v3432
  %4009 = vmatpush.bf16.msra.mxu0 %v3430
  %4010 = vmatpush.bf16.msra.mxu0 %v3428
  %4011 = vmatpush.bf16.msra.mxu0 %v3426
  %4012 = vmatpush.bf16.msra.mxu0 %v3424
  %4013 = vmatpush.bf16.msra.mxu0 %v3422
  %4014 = vmatpush.bf16.msra.mxu0 %v3420
  %4015 = vmatmul.bf16.gmra.mxu0 %v2985
  %v4016 = vpop.f32.mrf.mxu0
  %v4017 = vadd.f32 %v3848, %v4016
  %v4018 = vpop.f32.mrf.mxu0
  %v4019 = vadd.f32 %v3850, %v4018
  %4020 = vmatmul.bf16.gmra.mxu0 %v2989
  %v4021 = vpop.f32.mrf.mxu0
  %v4022 = vadd.f32 %v3853, %v4021
  %v4023 = vpop.f32.mrf.mxu0
  %v4024 = vadd.f32 %v3855, %v4023
  %4025 = vmatmul.bf16.gmra.mxu0 %v2993
  %v4026 = vpop.f32.mrf.mxu0
  %v4027 = vadd.f32 %v3858, %v4026
  %v4028 = vpop.f32.mrf.mxu0
  %v4029 = vadd.f32 %v3860, %v4028
  %4030 = vmatmul.bf16.gmra.mxu0 %v2997
  %v4031 = vpop.f32.mrf.mxu0
  %v4032 = vadd.f32 %v3863, %v4031
  %v4033 = vpop.f32.mrf.mxu0
  %v4034 = vadd.f32 %v3865, %v4033
  %4035 = vmatmul.bf16.gmra.mxu0 %v3001
  %v4036 = vpop.f32.mrf.mxu0
  %v4037 = vadd.f32 %v3868, %v4036
  %v4038 = vpop.f32.mrf.mxu0
  %v4039 = vadd.f32 %v3870, %v4038
  %4040 = vmatmul.bf16.gmra.mxu0 %v3005
  %v4041 = vpop.f32.mrf.mxu0
  %v4042 = vadd.f32 %v3873, %v4041
  %v4043 = vpop.f32.mrf.mxu0
  %v4044 = vadd.f32 %v3875, %v4043
  %4045 = vmatmul.bf16.gmra.mxu0 %v3009
  %v4046 = vpop.f32.mrf.mxu0
  %v4047 = vadd.f32 %v3878, %v4046
  %v4048 = vpop.f32.mrf.mxu0
  %v4049 = vadd.f32 %v3880, %v4048
  %4050 = vmatmul.bf16.gmra.mxu0 %v3013
  %v4051 = vpop.f32.mrf.mxu0
  %v4052 = vadd.f32 %v3883, %v4051
  %v4053 = vpop.f32.mrf.mxu0
  %v4054 = vadd.f32 %v3885, %v4053
  %4055 = vmatmul.bf16.gmra.mxu0 %v3017
  %v4056 = vpop.f32.mrf.mxu0
  %v4057 = vadd.f32 %v3888, %v4056
  %v4058 = vpop.f32.mrf.mxu0
  %v4059 = vadd.f32 %v3890, %v4058
  %4060 = vmatmul.bf16.gmra.mxu0 %v3021
  %v4061 = vpop.f32.mrf.mxu0
  %v4062 = vadd.f32 %v3893, %v4061
  %v4063 = vpop.f32.mrf.mxu0
  %v4064 = vadd.f32 %v3895, %v4063
  %4065 = vmatmul.bf16.gmra.mxu0 %v3025
  %v4066 = vpop.f32.mrf.mxu0
  %v4067 = vadd.f32 %v3898, %v4066
  %v4068 = vpop.f32.mrf.mxu0
  %v4069 = vadd.f32 %v3900, %v4068
  %4070 = vmatmul.bf16.gmra.mxu0 %v3029
  %v4071 = vpop.f32.mrf.mxu0
  %v4072 = vadd.f32 %v3903, %v4071
  %v4073 = vpop.f32.mrf.mxu0
  %v4074 = vadd.f32 %v3905, %v4073
  %4075 = vmatmul.bf16.gmra.mxu0 %v3033
  %v4076 = vpop.f32.mrf.mxu0
  %v4077 = vadd.f32 %v3908, %v4076
  %v4078 = vpop.f32.mrf.mxu0
  %v4079 = vadd.f32 %v3910, %v4078
  %4080 = vmatmul.bf16.gmra.mxu0 %v3037
  %v4081 = vpop.f32.mrf.mxu0
  %v4082 = vadd.f32 %v3913, %v4081
  %v4083 = vpop.f32.mrf.mxu0
  %v4084 = vadd.f32 %v3915, %v4083
  %4085 = vmatmul.bf16.gmra.mxu0 %v3041
  %v4086 = vpop.f32.mrf.mxu0
  %v4087 = vadd.f32 %v3918, %v4086
  %v4088 = vpop.f32.mrf.mxu0
  %v4089 = vadd.f32 %v3920, %v4088
  %4090 = vmatmul.bf16.gmra.mxu0 %v3045
  %v4091 = vpop.f32.mrf.mxu0
  %v4092 = vadd.f32 %v3923, %v4091
  %v4093 = vpop.f32.mrf.mxu0
  %v4094 = vadd.f32 %v3925, %v4093
  %4095 = vmatmul.bf16.gmra.mxu0 %v3049
  %v4096 = vpop.f32.mrf.mxu0
  %v4097 = vadd.f32 %v3928, %v4096
  %v4098 = vpop.f32.mrf.mxu0
  %v4099 = vadd.f32 %v3930, %v4098
  %4100 = vmatmul.bf16.gmra.mxu0 %v3053
  %v4101 = vpop.f32.mrf.mxu0
  %v4102 = vadd.f32 %v3933, %v4101
  %v4103 = vpop.f32.mrf.mxu0
  %v4104 = vadd.f32 %v3935, %v4103
  %4105 = vmatmul.bf16.gmra.mxu0 %v3057
  %v4106 = vpop.f32.mrf.mxu0
  %v4107 = vadd.f32 %v3938, %v4106
  %v4108 = vpop.f32.mrf.mxu0
  %v4109 = vadd.f32 %v3940, %v4108
  %4110 = vmatmul.bf16.gmra.mxu0 %v3061
  %v4111 = vpop.f32.mrf.mxu0
  %v4112 = vadd.f32 %v3943, %v4111
  %v4113 = vpop.f32.mrf.mxu0
  %v4114 = vadd.f32 %v3945, %v4113
  %4115 = vmatmul.bf16.gmra.mxu0 %v3065
  %v4116 = vpop.f32.mrf.mxu0
  %v4117 = vadd.f32 %v3948, %v4116
  %v4118 = vpop.f32.mrf.mxu0
  %v4119 = vadd.f32 %v3950, %v4118
  %4120 = vmatmul.bf16.gmra.mxu0 %v3069
  %v4121 = vpop.f32.mrf.mxu0
  %v4122 = vadd.f32 %v3953, %v4121
  %v4123 = vpop.f32.mrf.mxu0
  %v4124 = vadd.f32 %v3955, %v4123
  %4125 = vmatmul.bf16.gmra.mxu0 %v3073
  %v4126 = vpop.f32.mrf.mxu0
  %v4127 = vadd.f32 %v3958, %v4126
  %v4128 = vpop.f32.mrf.mxu0
  %v4129 = vadd.f32 %v3960, %v4128
  %4130 = vmatmul.bf16.gmra.mxu0 %v3077
  %v4131 = vpop.f32.mrf.mxu0
  %v4132 = vadd.f32 %v3963, %v4131
  %v4133 = vpop.f32.mrf.mxu0
  %v4134 = vadd.f32 %v3965, %v4133
  %4135 = vmatmul.bf16.gmra.mxu0 %v3081
  %v4136 = vpop.f32.mrf.mxu0
  %v4137 = vadd.f32 %v3968, %v4136
  %v4138 = vpop.f32.mrf.mxu0
  %v4139 = vadd.f32 %v3970, %v4138
  %4140 = vmatmul.bf16.gmra.mxu0 %v3085
  %v4141 = vpop.f32.mrf.mxu0
  %v4142 = vadd.f32 %v3973, %v4141
  %v4143 = vpop.f32.mrf.mxu0
  %v4144 = vadd.f32 %v3975, %v4143
  %4145 = vmatmul.bf16.gmra.mxu0 %v3089
  %v4146 = vpop.f32.mrf.mxu0
  %v4147 = vadd.f32 %v3978, %v4146
  %v4148 = vpop.f32.mrf.mxu0
  %v4149 = vadd.f32 %v3980, %v4148
  %4150 = vmatmul.bf16.gmra.mxu0 %v3093
  %v4151 = vpop.f32.mrf.mxu0
  %v4152 = vadd.f32 %v3983, %v4151
  %v4153 = vpop.f32.mrf.mxu0
  %v4154 = vadd.f32 %v3985, %v4153
  %4155 = vmatmul.bf16.gmra.mxu0 %v3097
  %v4156 = vpop.f32.mrf.mxu0
  %v4157 = vadd.f32 %v3988, %v4156
  %v4158 = vpop.f32.mrf.mxu0
  %v4159 = vadd.f32 %v3990, %v4158
  %4160 = vmatmul.bf16.gmra.mxu0 %v3101
  %v4161 = vpop.f32.mrf.mxu0
  %v4162 = vadd.f32 %v3993, %v4161
  %v4163 = vpop.f32.mrf.mxu0
  %v4164 = vadd.f32 %v3995, %v4163
  %4165 = vmatmul.bf16.gmra.mxu0 %v3105
  %v4166 = vpop.f32.mrf.mxu0
  %v4167 = vadd.f32 %v3998, %v4166
  %v4168 = vpop.f32.mrf.mxu0
  %v4169 = vadd.f32 %v4000, %v4168
  %4170 = vmatmul.bf16.gmra.mxu0 %v3109
  %v4171 = vpop.f32.mrf.mxu0
  %v4172 = vadd.f32 %v4003, %v4171
  %v4173 = vpop.f32.mrf.mxu0
  %v4174 = vadd.f32 %v4005, %v4173
  %4175 = vdwg.mxu0
  %4176 = vmatpush.bf16.msra.mxu0 %v3387
  %4177 = vmatpush.bf16.msra.mxu0 %v3385
  %4178 = vmatpush.bf16.msra.mxu0 %v3383
  %4179 = vmatpush.bf16.msra.mxu0 %v3381
  %4180 = vmatpush.bf16.msra.mxu0 %v3379
  %4181 = vmatpush.bf16.msra.mxu0 %v3377
  %4182 = vmatpush.bf16.msra.mxu0 %v3375
  %4183 = vmatpush.bf16.msra.mxu0 %v3373
  %4184 = vmatmul.bf16.gmra.mxu0 %v2982
  %v4185 = vpop.f32.mrf.mxu0
  %v4186 = vadd.f32 %v3177, %v4185
  %v4187 = vpop.f32.mrf.mxu0
  %v4188 = vadd.f32 %v3177, %v4187
  %4189 = vmatmul.bf16.gmra.mxu0 %v2986
  %v4190 = vpop.f32.mrf.mxu0
  %v4191 = vadd.f32 %v3177, %v4190
  %v4192 = vpop.f32.mrf.mxu0
  %v4193 = vadd.f32 %v3177, %v4192
  %4194 = vmatmul.bf16.gmra.mxu0 %v2990
  %v4195 = vpop.f32.mrf.mxu0
  %v4196 = vadd.f32 %v3177, %v4195
  %v4197 = vpop.f32.mrf.mxu0
  %v4198 = vadd.f32 %v3177, %v4197
  %4199 = vmatmul.bf16.gmra.mxu0 %v2994
  %v4200 = vpop.f32.mrf.mxu0
  %v4201 = vadd.f32 %v3177, %v4200
  %v4202 = vpop.f32.mrf.mxu0
  %v4203 = vadd.f32 %v3177, %v4202
  %4204 = vmatmul.bf16.gmra.mxu0 %v2998
  %v4205 = vpop.f32.mrf.mxu0
  %v4206 = vadd.f32 %v3177, %v4205
  %v4207 = vpop.f32.mrf.mxu0
  %v4208 = vadd.f32 %v3177, %v4207
  %4209 = vmatmul.bf16.gmra.mxu0 %v3002
  %v4210 = vpop.f32.mrf.mxu0
  %v4211 = vadd.f32 %v3177, %v4210
  %v4212 = vpop.f32.mrf.mxu0
  %v4213 = vadd.f32 %v3177, %v4212
  %4214 = vmatmul.bf16.gmra.mxu0 %v3006
  %v4215 = vpop.f32.mrf.mxu0
  %v4216 = vadd.f32 %v3177, %v4215
  %v4217 = vpop.f32.mrf.mxu0
  %v4218 = vadd.f32 %v3177, %v4217
  %4219 = vmatmul.bf16.gmra.mxu0 %v3010
  %v4220 = vpop.f32.mrf.mxu0
  %v4221 = vadd.f32 %v3177, %v4220
  %v4222 = vpop.f32.mrf.mxu0
  %v4223 = vadd.f32 %v3177, %v4222
  %4224 = vmatmul.bf16.gmra.mxu0 %v3014
  %v4225 = vpop.f32.mrf.mxu0
  %v4226 = vadd.f32 %v3177, %v4225
  %v4227 = vpop.f32.mrf.mxu0
  %v4228 = vadd.f32 %v3177, %v4227
  %4229 = vmatmul.bf16.gmra.mxu0 %v3018
  %v4230 = vpop.f32.mrf.mxu0
  %v4231 = vadd.f32 %v3177, %v4230
  %v4232 = vpop.f32.mrf.mxu0
  %v4233 = vadd.f32 %v3177, %v4232
  %4234 = vmatmul.bf16.gmra.mxu0 %v3022
  %v4235 = vpop.f32.mrf.mxu0
  %v4236 = vadd.f32 %v3177, %v4235
  %v4237 = vpop.f32.mrf.mxu0
  %v4238 = vadd.f32 %v3177, %v4237
  %4239 = vmatmul.bf16.gmra.mxu0 %v3026
  %v4240 = vpop.f32.mrf.mxu0
  %v4241 = vadd.f32 %v3177, %v4240
  %v4242 = vpop.f32.mrf.mxu0
  %v4243 = vadd.f32 %v3177, %v4242
  %4244 = vmatmul.bf16.gmra.mxu0 %v3030
  %v4245 = vpop.f32.mrf.mxu0
  %v4246 = vadd.f32 %v3177, %v4245
  %v4247 = vpop.f32.mrf.mxu0
  %v4248 = vadd.f32 %v3177, %v4247
  %4249 = vmatmul.bf16.gmra.mxu0 %v3034
  %v4250 = vpop.f32.mrf.mxu0
  %v4251 = vadd.f32 %v3177, %v4250
  %v4252 = vpop.f32.mrf.mxu0
  %v4253 = vadd.f32 %v3177, %v4252
  %4254 = vmatmul.bf16.gmra.mxu0 %v3038
  %v4255 = vpop.f32.mrf.mxu0
  %v4256 = vadd.f32 %v3177, %v4255
  %v4257 = vpop.f32.mrf.mxu0
  %v4258 = vadd.f32 %v3177, %v4257
  %4259 = vmatmul.bf16.gmra.mxu0 %v3042
  %v4260 = vpop.f32.mrf.mxu0
  %v4261 = vadd.f32 %v3177, %v4260
  %v4262 = vpop.f32.mrf.mxu0
  %v4263 = vadd.f32 %v3177, %v4262
  %4264 = vmatmul.bf16.gmra.mxu0 %v3046
  %v4265 = vpop.f32.mrf.mxu0
  %v4266 = vadd.f32 %v3177, %v4265
  %v4267 = vpop.f32.mrf.mxu0
  %v4268 = vadd.f32 %v3177, %v4267
  %4269 = vmatmul.bf16.gmra.mxu0 %v3050
  %v4270 = vpop.f32.mrf.mxu0
  %v4271 = vadd.f32 %v3177, %v4270
  %v4272 = vpop.f32.mrf.mxu0
  %v4273 = vadd.f32 %v3177, %v4272
  %4274 = vmatmul.bf16.gmra.mxu0 %v3054
  %v4275 = vpop.f32.mrf.mxu0
  %v4276 = vadd.f32 %v3177, %v4275
  %v4277 = vpop.f32.mrf.mxu0
  %v4278 = vadd.f32 %v3177, %v4277
  %4279 = vmatmul.bf16.gmra.mxu0 %v3058
  %v4280 = vpop.f32.mrf.mxu0
  %v4281 = vadd.f32 %v3177, %v4280
  %v4282 = vpop.f32.mrf.mxu0
  %v4283 = vadd.f32 %v3177, %v4282
  %4284 = vmatmul.bf16.gmra.mxu0 %v3062
  %v4285 = vpop.f32.mrf.mxu0
  %v4286 = vadd.f32 %v3177, %v4285
  %v4287 = vpop.f32.mrf.mxu0
  %v4288 = vadd.f32 %v3177, %v4287
  %4289 = vmatmul.bf16.gmra.mxu0 %v3066
  %v4290 = vpop.f32.mrf.mxu0
  %v4291 = vadd.f32 %v3177, %v4290
  %v4292 = vpop.f32.mrf.mxu0
  %v4293 = vadd.f32 %v3177, %v4292
  %4294 = vmatmul.bf16.gmra.mxu0 %v3070
  %v4295 = vpop.f32.mrf.mxu0
  %v4296 = vadd.f32 %v3177, %v4295
  %v4297 = vpop.f32.mrf.mxu0
  %v4298 = vadd.f32 %v3177, %v4297
  %4299 = vmatmul.bf16.gmra.mxu0 %v3074
  %v4300 = vpop.f32.mrf.mxu0
  %v4301 = vadd.f32 %v3177, %v4300
  %v4302 = vpop.f32.mrf.mxu0
  %v4303 = vadd.f32 %v3177, %v4302
  %4304 = vmatmul.bf16.gmra.mxu0 %v3078
  %v4305 = vpop.f32.mrf.mxu0
  %v4306 = vadd.f32 %v3177, %v4305
  %v4307 = vpop.f32.mrf.mxu0
  %v4308 = vadd.f32 %v3177, %v4307
  %4309 = vmatmul.bf16.gmra.mxu0 %v3082
  %v4310 = vpop.f32.mrf.mxu0
  %v4311 = vadd.f32 %v3177, %v4310
  %v4312 = vpop.f32.mrf.mxu0
  %v4313 = vadd.f32 %v3177, %v4312
  %4314 = vmatmul.bf16.gmra.mxu0 %v3086
  %v4315 = vpop.f32.mrf.mxu0
  %v4316 = vadd.f32 %v3177, %v4315
  %v4317 = vpop.f32.mrf.mxu0
  %v4318 = vadd.f32 %v3177, %v4317
  %4319 = vmatmul.bf16.gmra.mxu0 %v3090
  %v4320 = vpop.f32.mrf.mxu0
  %v4321 = vadd.f32 %v3177, %v4320
  %v4322 = vpop.f32.mrf.mxu0
  %v4323 = vadd.f32 %v3177, %v4322
  %4324 = vmatmul.bf16.gmra.mxu0 %v3094
  %v4325 = vpop.f32.mrf.mxu0
  %v4326 = vadd.f32 %v3177, %v4325
  %v4327 = vpop.f32.mrf.mxu0
  %v4328 = vadd.f32 %v3177, %v4327
  %4329 = vmatmul.bf16.gmra.mxu0 %v3098
  %v4330 = vpop.f32.mrf.mxu0
  %v4331 = vadd.f32 %v3177, %v4330
  %v4332 = vpop.f32.mrf.mxu0
  %v4333 = vadd.f32 %v3177, %v4332
  %4334 = vmatmul.bf16.gmra.mxu0 %v3102
  %v4335 = vpop.f32.mrf.mxu0
  %v4336 = vadd.f32 %v3177, %v4335
  %v4337 = vpop.f32.mrf.mxu0
  %v4338 = vadd.f32 %v3177, %v4337
  %4339 = vmatmul.bf16.gmra.mxu0 %v3106
  %v4340 = vpop.f32.mrf.mxu0
  %v4341 = vadd.f32 %v3177, %v4340
  %v4342 = vpop.f32.mrf.mxu0
  %v4343 = vadd.f32 %v3177, %v4342
  %4344 = vdwg.mxu0
  %4345 = vmatpush.bf16.msra.mxu0 %v3403
  %4346 = vmatpush.bf16.msra.mxu0 %v3401
  %4347 = vmatpush.bf16.msra.mxu0 %v3399
  %4348 = vmatpush.bf16.msra.mxu0 %v3397
  %4349 = vmatpush.bf16.msra.mxu0 %v3395
  %4350 = vmatpush.bf16.msra.mxu0 %v3393
  %4351 = vmatpush.bf16.msra.mxu0 %v3391
  %4352 = vmatpush.bf16.msra.mxu0 %v3389
  %4353 = vmatmul.bf16.gmra.mxu0 %v2983
  %v4354 = vpop.f32.mrf.mxu0
  %v4355 = vadd.f32 %v4186, %v4354
  %v4356 = vpop.f32.mrf.mxu0
  %v4357 = vadd.f32 %v4188, %v4356
  %4358 = vmatmul.bf16.gmra.mxu0 %v2987
  %v4359 = vpop.f32.mrf.mxu0
  %v4360 = vadd.f32 %v4191, %v4359
  %v4361 = vpop.f32.mrf.mxu0
  %v4362 = vadd.f32 %v4193, %v4361
  %4363 = vmatmul.bf16.gmra.mxu0 %v2991
  %v4364 = vpop.f32.mrf.mxu0
  %v4365 = vadd.f32 %v4196, %v4364
  %v4366 = vpop.f32.mrf.mxu0
  %v4367 = vadd.f32 %v4198, %v4366
  %4368 = vmatmul.bf16.gmra.mxu0 %v2995
  %v4369 = vpop.f32.mrf.mxu0
  %v4370 = vadd.f32 %v4201, %v4369
  %v4371 = vpop.f32.mrf.mxu0
  %v4372 = vadd.f32 %v4203, %v4371
  %4373 = vmatmul.bf16.gmra.mxu0 %v2999
  %v4374 = vpop.f32.mrf.mxu0
  %v4375 = vadd.f32 %v4206, %v4374
  %v4376 = vpop.f32.mrf.mxu0
  %v4377 = vadd.f32 %v4208, %v4376
  %4378 = vmatmul.bf16.gmra.mxu0 %v3003
  %v4379 = vpop.f32.mrf.mxu0
  %v4380 = vadd.f32 %v4211, %v4379
  %v4381 = vpop.f32.mrf.mxu0
  %v4382 = vadd.f32 %v4213, %v4381
  %4383 = vmatmul.bf16.gmra.mxu0 %v3007
  %v4384 = vpop.f32.mrf.mxu0
  %v4385 = vadd.f32 %v4216, %v4384
  %v4386 = vpop.f32.mrf.mxu0
  %v4387 = vadd.f32 %v4218, %v4386
  %4388 = vmatmul.bf16.gmra.mxu0 %v3011
  %v4389 = vpop.f32.mrf.mxu0
  %v4390 = vadd.f32 %v4221, %v4389
  %v4391 = vpop.f32.mrf.mxu0
  %v4392 = vadd.f32 %v4223, %v4391
  %4393 = vmatmul.bf16.gmra.mxu0 %v3015
  %v4394 = vpop.f32.mrf.mxu0
  %v4395 = vadd.f32 %v4226, %v4394
  %v4396 = vpop.f32.mrf.mxu0
  %v4397 = vadd.f32 %v4228, %v4396
  %4398 = vmatmul.bf16.gmra.mxu0 %v3019
  %v4399 = vpop.f32.mrf.mxu0
  %v4400 = vadd.f32 %v4231, %v4399
  %v4401 = vpop.f32.mrf.mxu0
  %v4402 = vadd.f32 %v4233, %v4401
  %4403 = vmatmul.bf16.gmra.mxu0 %v3023
  %v4404 = vpop.f32.mrf.mxu0
  %v4405 = vadd.f32 %v4236, %v4404
  %v4406 = vpop.f32.mrf.mxu0
  %v4407 = vadd.f32 %v4238, %v4406
  %4408 = vmatmul.bf16.gmra.mxu0 %v3027
  %v4409 = vpop.f32.mrf.mxu0
  %v4410 = vadd.f32 %v4241, %v4409
  %v4411 = vpop.f32.mrf.mxu0
  %v4412 = vadd.f32 %v4243, %v4411
  %4413 = vmatmul.bf16.gmra.mxu0 %v3031
  %v4414 = vpop.f32.mrf.mxu0
  %v4415 = vadd.f32 %v4246, %v4414
  %v4416 = vpop.f32.mrf.mxu0
  %v4417 = vadd.f32 %v4248, %v4416
  %4418 = vmatmul.bf16.gmra.mxu0 %v3035
  %v4419 = vpop.f32.mrf.mxu0
  %v4420 = vadd.f32 %v4251, %v4419
  %v4421 = vpop.f32.mrf.mxu0
  %v4422 = vadd.f32 %v4253, %v4421
  %4423 = vmatmul.bf16.gmra.mxu0 %v3039
  %v4424 = vpop.f32.mrf.mxu0
  %v4425 = vadd.f32 %v4256, %v4424
  %v4426 = vpop.f32.mrf.mxu0
  %v4427 = vadd.f32 %v4258, %v4426
  %4428 = vmatmul.bf16.gmra.mxu0 %v3043
  %v4429 = vpop.f32.mrf.mxu0
  %v4430 = vadd.f32 %v4261, %v4429
  %v4431 = vpop.f32.mrf.mxu0
  %v4432 = vadd.f32 %v4263, %v4431
  %4433 = vmatmul.bf16.gmra.mxu0 %v3047
  %v4434 = vpop.f32.mrf.mxu0
  %v4435 = vadd.f32 %v4266, %v4434
  %v4436 = vpop.f32.mrf.mxu0
  %v4437 = vadd.f32 %v4268, %v4436
  %4438 = vmatmul.bf16.gmra.mxu0 %v3051
  %v4439 = vpop.f32.mrf.mxu0
  %v4440 = vadd.f32 %v4271, %v4439
  %v4441 = vpop.f32.mrf.mxu0
  %v4442 = vadd.f32 %v4273, %v4441
  %4443 = vmatmul.bf16.gmra.mxu0 %v3055
  %v4444 = vpop.f32.mrf.mxu0
  %v4445 = vadd.f32 %v4276, %v4444
  %v4446 = vpop.f32.mrf.mxu0
  %v4447 = vadd.f32 %v4278, %v4446
  %4448 = vmatmul.bf16.gmra.mxu0 %v3059
  %v4449 = vpop.f32.mrf.mxu0
  %v4450 = vadd.f32 %v4281, %v4449
  %v4451 = vpop.f32.mrf.mxu0
  %v4452 = vadd.f32 %v4283, %v4451
  %4453 = vmatmul.bf16.gmra.mxu0 %v3063
  %v4454 = vpop.f32.mrf.mxu0
  %v4455 = vadd.f32 %v4286, %v4454
  %v4456 = vpop.f32.mrf.mxu0
  %v4457 = vadd.f32 %v4288, %v4456
  %4458 = vmatmul.bf16.gmra.mxu0 %v3067
  %v4459 = vpop.f32.mrf.mxu0
  %v4460 = vadd.f32 %v4291, %v4459
  %v4461 = vpop.f32.mrf.mxu0
  %v4462 = vadd.f32 %v4293, %v4461
  %4463 = vmatmul.bf16.gmra.mxu0 %v3071
  %v4464 = vpop.f32.mrf.mxu0
  %v4465 = vadd.f32 %v4296, %v4464
  %v4466 = vpop.f32.mrf.mxu0
  %v4467 = vadd.f32 %v4298, %v4466
  %4468 = vmatmul.bf16.gmra.mxu0 %v3075
  %v4469 = vpop.f32.mrf.mxu0
  %v4470 = vadd.f32 %v4301, %v4469
  %v4471 = vpop.f32.mrf.mxu0
  %v4472 = vadd.f32 %v4303, %v4471
  %4473 = vmatmul.bf16.gmra.mxu0 %v3079
  %v4474 = vpop.f32.mrf.mxu0
  %v4475 = vadd.f32 %v4306, %v4474
  %v4476 = vpop.f32.mrf.mxu0
  %v4477 = vadd.f32 %v4308, %v4476
  %4478 = vmatmul.bf16.gmra.mxu0 %v3083
  %v4479 = vpop.f32.mrf.mxu0
  %v4480 = vadd.f32 %v4311, %v4479
  %v4481 = vpop.f32.mrf.mxu0
  %v4482 = vadd.f32 %v4313, %v4481
  %4483 = vmatmul.bf16.gmra.mxu0 %v3087
  %v4484 = vpop.f32.mrf.mxu0
  %v4485 = vadd.f32 %v4316, %v4484
  %v4486 = vpop.f32.mrf.mxu0
  %v4487 = vadd.f32 %v4318, %v4486
  %4488 = vmatmul.bf16.gmra.mxu0 %v3091
  %v4489 = vpop.f32.mrf.mxu0
  %v4490 = vadd.f32 %v4321, %v4489
  %v4491 = vpop.f32.mrf.mxu0
  %v4492 = vadd.f32 %v4323, %v4491
  %4493 = vmatmul.bf16.gmra.mxu0 %v3095
  %v4494 = vpop.f32.mrf.mxu0
  %v4495 = vadd.f32 %v4326, %v4494
  %v4496 = vpop.f32.mrf.mxu0
  %v4497 = vadd.f32 %v4328, %v4496
  %4498 = vmatmul.bf16.gmra.mxu0 %v3099
  %v4499 = vpop.f32.mrf.mxu0
  %v4500 = vadd.f32 %v4331, %v4499
  %v4501 = vpop.f32.mrf.mxu0
  %v4502 = vadd.f32 %v4333, %v4501
  %4503 = vmatmul.bf16.gmra.mxu0 %v3103
  %v4504 = vpop.f32.mrf.mxu0
  %v4505 = vadd.f32 %v4336, %v4504
  %v4506 = vpop.f32.mrf.mxu0
  %v4507 = vadd.f32 %v4338, %v4506
  %4508 = vmatmul.bf16.gmra.mxu0 %v3107
  %v4509 = vpop.f32.mrf.mxu0
  %v4510 = vadd.f32 %v4341, %v4509
  %v4511 = vpop.f32.mrf.mxu0
  %v4512 = vadd.f32 %v4343, %v4511
  %4513 = vdwg.mxu0
  %4514 = vmatpush.bf16.msra.mxu0 %v3419
  %4515 = vmatpush.bf16.msra.mxu0 %v3417
  %4516 = vmatpush.bf16.msra.mxu0 %v3415
  %4517 = vmatpush.bf16.msra.mxu0 %v3413
  %4518 = vmatpush.bf16.msra.mxu0 %v3411
  %4519 = vmatpush.bf16.msra.mxu0 %v3409
  %4520 = vmatpush.bf16.msra.mxu0 %v3407
  %4521 = vmatpush.bf16.msra.mxu0 %v3405
  %4522 = vmatmul.bf16.gmra.mxu0 %v2984
  %v4523 = vpop.f32.mrf.mxu0
  %v4524 = vadd.f32 %v4355, %v4523
  %v4525 = vpop.f32.mrf.mxu0
  %v4526 = vadd.f32 %v4357, %v4525
  %4527 = vmatmul.bf16.gmra.mxu0 %v2988
  %v4528 = vpop.f32.mrf.mxu0
  %v4529 = vadd.f32 %v4360, %v4528
  %v4530 = vpop.f32.mrf.mxu0
  %v4531 = vadd.f32 %v4362, %v4530
  %4532 = vmatmul.bf16.gmra.mxu0 %v2992
  %v4533 = vpop.f32.mrf.mxu0
  %v4534 = vadd.f32 %v4365, %v4533
  %v4535 = vpop.f32.mrf.mxu0
  %v4536 = vadd.f32 %v4367, %v4535
  %4537 = vmatmul.bf16.gmra.mxu0 %v2996
  %v4538 = vpop.f32.mrf.mxu0
  %v4539 = vadd.f32 %v4370, %v4538
  %v4540 = vpop.f32.mrf.mxu0
  %v4541 = vadd.f32 %v4372, %v4540
  %4542 = vmatmul.bf16.gmra.mxu0 %v3000
  %v4543 = vpop.f32.mrf.mxu0
  %v4544 = vadd.f32 %v4375, %v4543
  %v4545 = vpop.f32.mrf.mxu0
  %v4546 = vadd.f32 %v4377, %v4545
  %4547 = vmatmul.bf16.gmra.mxu0 %v3004
  %v4548 = vpop.f32.mrf.mxu0
  %v4549 = vadd.f32 %v4380, %v4548
  %v4550 = vpop.f32.mrf.mxu0
  %v4551 = vadd.f32 %v4382, %v4550
  %4552 = vmatmul.bf16.gmra.mxu0 %v3008
  %v4553 = vpop.f32.mrf.mxu0
  %v4554 = vadd.f32 %v4385, %v4553
  %v4555 = vpop.f32.mrf.mxu0
  %v4556 = vadd.f32 %v4387, %v4555
  %4557 = vmatmul.bf16.gmra.mxu0 %v3012
  %v4558 = vpop.f32.mrf.mxu0
  %v4559 = vadd.f32 %v4390, %v4558
  %v4560 = vpop.f32.mrf.mxu0
  %v4561 = vadd.f32 %v4392, %v4560
  %4562 = vmatmul.bf16.gmra.mxu0 %v3016
  %v4563 = vpop.f32.mrf.mxu0
  %v4564 = vadd.f32 %v4395, %v4563
  %v4565 = vpop.f32.mrf.mxu0
  %v4566 = vadd.f32 %v4397, %v4565
  %4567 = vmatmul.bf16.gmra.mxu0 %v3020
  %v4568 = vpop.f32.mrf.mxu0
  %v4569 = vadd.f32 %v4400, %v4568
  %v4570 = vpop.f32.mrf.mxu0
  %v4571 = vadd.f32 %v4402, %v4570
  %4572 = vmatmul.bf16.gmra.mxu0 %v3024
  %v4573 = vpop.f32.mrf.mxu0
  %v4574 = vadd.f32 %v4405, %v4573
  %v4575 = vpop.f32.mrf.mxu0
  %v4576 = vadd.f32 %v4407, %v4575
  %4577 = vmatmul.bf16.gmra.mxu0 %v3028
  %v4578 = vpop.f32.mrf.mxu0
  %v4579 = vadd.f32 %v4410, %v4578
  %v4580 = vpop.f32.mrf.mxu0
  %v4581 = vadd.f32 %v4412, %v4580
  %4582 = vmatmul.bf16.gmra.mxu0 %v3032
  %v4583 = vpop.f32.mrf.mxu0
  %v4584 = vadd.f32 %v4415, %v4583
  %v4585 = vpop.f32.mrf.mxu0
  %v4586 = vadd.f32 %v4417, %v4585
  %4587 = vmatmul.bf16.gmra.mxu0 %v3036
  %v4588 = vpop.f32.mrf.mxu0
  %v4589 = vadd.f32 %v4420, %v4588
  %v4590 = vpop.f32.mrf.mxu0
  %v4591 = vadd.f32 %v4422, %v4590
  %4592 = vmatmul.bf16.gmra.mxu0 %v3040
  %v4593 = vpop.f32.mrf.mxu0
  %v4594 = vadd.f32 %v4425, %v4593
  %v4595 = vpop.f32.mrf.mxu0
  %v4596 = vadd.f32 %v4427, %v4595
  %4597 = vmatmul.bf16.gmra.mxu0 %v3044
  %v4598 = vpop.f32.mrf.mxu0
  %v4599 = vadd.f32 %v4430, %v4598
  %v4600 = vpop.f32.mrf.mxu0
  %v4601 = vadd.f32 %v4432, %v4600
  %4602 = vmatmul.bf16.gmra.mxu0 %v3048
  %v4603 = vpop.f32.mrf.mxu0
  %v4604 = vadd.f32 %v4435, %v4603
  %v4605 = vpop.f32.mrf.mxu0
  %v4606 = vadd.f32 %v4437, %v4605
  %4607 = vmatmul.bf16.gmra.mxu0 %v3052
  %v4608 = vpop.f32.mrf.mxu0
  %v4609 = vadd.f32 %v4440, %v4608
  %v4610 = vpop.f32.mrf.mxu0
  %v4611 = vadd.f32 %v4442, %v4610
  %4612 = vmatmul.bf16.gmra.mxu0 %v3056
  %v4613 = vpop.f32.mrf.mxu0
  %v4614 = vadd.f32 %v4445, %v4613
  %v4615 = vpop.f32.mrf.mxu0
  %v4616 = vadd.f32 %v4447, %v4615
  %4617 = vmatmul.bf16.gmra.mxu0 %v3060
  %v4618 = vpop.f32.mrf.mxu0
  %v4619 = vadd.f32 %v4450, %v4618
  %v4620 = vpop.f32.mrf.mxu0
  %v4621 = vadd.f32 %v4452, %v4620
  %4622 = vmatmul.bf16.gmra.mxu0 %v3064
  %v4623 = vpop.f32.mrf.mxu0
  %v4624 = vadd.f32 %v4455, %v4623
  %v4625 = vpop.f32.mrf.mxu0
  %v4626 = vadd.f32 %v4457, %v4625
  %4627 = vmatmul.bf16.gmra.mxu0 %v3068
  %v4628 = vpop.f32.mrf.mxu0
  %v4629 = vadd.f32 %v4460, %v4628
  %v4630 = vpop.f32.mrf.mxu0
  %v4631 = vadd.f32 %v4462, %v4630
  %4632 = vmatmul.bf16.gmra.mxu0 %v3072
  %v4633 = vpop.f32.mrf.mxu0
  %v4634 = vadd.f32 %v4465, %v4633
  %v4635 = vpop.f32.mrf.mxu0
  %v4636 = vadd.f32 %v4467, %v4635
  %4637 = vmatmul.bf16.gmra.mxu0 %v3076
  %v4638 = vpop.f32.mrf.mxu0
  %v4639 = vadd.f32 %v4470, %v4638
  %v4640 = vpop.f32.mrf.mxu0
  %v4641 = vadd.f32 %v4472, %v4640
  %4642 = vmatmul.bf16.gmra.mxu0 %v3080
  %v4643 = vpop.f32.mrf.mxu0
  %v4644 = vadd.f32 %v4475, %v4643
  %v4645 = vpop.f32.mrf.mxu0
  %v4646 = vadd.f32 %v4477, %v4645
  %4647 = vmatmul.bf16.gmra.mxu0 %v3084
  %v4648 = vpop.f32.mrf.mxu0
  %v4649 = vadd.f32 %v4480, %v4648
  %v4650 = vpop.f32.mrf.mxu0
  %v4651 = vadd.f32 %v4482, %v4650
  %4652 = vmatmul.bf16.gmra.mxu0 %v3088
  %v4653 = vpop.f32.mrf.mxu0
  %v4654 = vadd.f32 %v4485, %v4653
  %v4655 = vpop.f32.mrf.mxu0
  %v4656 = vadd.f32 %v4487, %v4655
  %4657 = vmatmul.bf16.gmra.mxu0 %v3092
  %v4658 = vpop.f32.mrf.mxu0
  %v4659 = vadd.f32 %v4490, %v4658
  %v4660 = vpop.f32.mrf.mxu0
  %v4661 = vadd.f32 %v4492, %v4660
  %4662 = vmatmul.bf16.gmra.mxu0 %v3096
  %v4663 = vpop.f32.mrf.mxu0
  %v4664 = vadd.f32 %v4495, %v4663
  %v4665 = vpop.f32.mrf.mxu0
  %v4666 = vadd.f32 %v4497, %v4665
  %4667 = vmatmul.bf16.gmra.mxu0 %v3100
  %v4668 = vpop.f32.mrf.mxu0
  %v4669 = vadd.f32 %v4500, %v4668
  %v4670 = vpop.f32.mrf.mxu0
  %v4671 = vadd.f32 %v4502, %v4670
  %4672 = vmatmul.bf16.gmra.mxu0 %v3104
  %v4673 = vpop.f32.mrf.mxu0
  %v4674 = vadd.f32 %v4505, %v4673
  %v4675 = vpop.f32.mrf.mxu0
  %v4676 = vadd.f32 %v4507, %v4675
  %4677 = vmatmul.bf16.gmra.mxu0 %v3108
  %v4678 = vpop.f32.mrf.mxu0
  %v4679 = vadd.f32 %v4510, %v4678
  %v4680 = vpop.f32.mrf.mxu0
  %v4681 = vadd.f32 %v4512, %v4680
  %4682 = vdwg.mxu0
  %4683 = vmatpush.bf16.msra.mxu0 %v3435
  %4684 = vmatpush.bf16.msra.mxu0 %v3433
  %4685 = vmatpush.bf16.msra.mxu0 %v3431
  %4686 = vmatpush.bf16.msra.mxu0 %v3429
  %4687 = vmatpush.bf16.msra.mxu0 %v3427
  %4688 = vmatpush.bf16.msra.mxu0 %v3425
  %4689 = vmatpush.bf16.msra.mxu0 %v3423
  %4690 = vmatpush.bf16.msra.mxu0 %v3421
  %4691 = vmatmul.bf16.gmra.mxu0 %v2985
  %v4692 = vpop.f32.mrf.mxu0
  %v4693 = vadd.f32 %v4524, %v4692
  %v4694 = vpop.f32.mrf.mxu0
  %v4695 = vadd.f32 %v4526, %v4694
  %4696 = vmatmul.bf16.gmra.mxu0 %v2989
  %v4697 = vpop.f32.mrf.mxu0
  %v4698 = vadd.f32 %v4529, %v4697
  %v4699 = vpop.f32.mrf.mxu0
  %v4700 = vadd.f32 %v4531, %v4699
  %4701 = vmatmul.bf16.gmra.mxu0 %v2993
  %v4702 = vpop.f32.mrf.mxu0
  %v4703 = vadd.f32 %v4534, %v4702
  %v4704 = vpop.f32.mrf.mxu0
  %v4705 = vadd.f32 %v4536, %v4704
  %4706 = vmatmul.bf16.gmra.mxu0 %v2997
  %v4707 = vpop.f32.mrf.mxu0
  %v4708 = vadd.f32 %v4539, %v4707
  %v4709 = vpop.f32.mrf.mxu0
  %v4710 = vadd.f32 %v4541, %v4709
  %4711 = vmatmul.bf16.gmra.mxu0 %v3001
  %v4712 = vpop.f32.mrf.mxu0
  %v4713 = vadd.f32 %v4544, %v4712
  %v4714 = vpop.f32.mrf.mxu0
  %v4715 = vadd.f32 %v4546, %v4714
  %4716 = vmatmul.bf16.gmra.mxu0 %v3005
  %v4717 = vpop.f32.mrf.mxu0
  %v4718 = vadd.f32 %v4549, %v4717
  %v4719 = vpop.f32.mrf.mxu0
  %v4720 = vadd.f32 %v4551, %v4719
  %4721 = vmatmul.bf16.gmra.mxu0 %v3009
  %v4722 = vpop.f32.mrf.mxu0
  %v4723 = vadd.f32 %v4554, %v4722
  %v4724 = vpop.f32.mrf.mxu0
  %v4725 = vadd.f32 %v4556, %v4724
  %4726 = vmatmul.bf16.gmra.mxu0 %v3013
  %v4727 = vpop.f32.mrf.mxu0
  %v4728 = vadd.f32 %v4559, %v4727
  %v4729 = vpop.f32.mrf.mxu0
  %v4730 = vadd.f32 %v4561, %v4729
  %4731 = vmatmul.bf16.gmra.mxu0 %v3017
  %v4732 = vpop.f32.mrf.mxu0
  %v4733 = vadd.f32 %v4564, %v4732
  %v4734 = vpop.f32.mrf.mxu0
  %v4735 = vadd.f32 %v4566, %v4734
  %4736 = vmatmul.bf16.gmra.mxu0 %v3021
  %v4737 = vpop.f32.mrf.mxu0
  %v4738 = vadd.f32 %v4569, %v4737
  %v4739 = vpop.f32.mrf.mxu0
  %v4740 = vadd.f32 %v4571, %v4739
  %4741 = vmatmul.bf16.gmra.mxu0 %v3025
  %v4742 = vpop.f32.mrf.mxu0
  %v4743 = vadd.f32 %v4574, %v4742
  %v4744 = vpop.f32.mrf.mxu0
  %v4745 = vadd.f32 %v4576, %v4744
  %4746 = vmatmul.bf16.gmra.mxu0 %v3029
  %v4747 = vpop.f32.mrf.mxu0
  %v4748 = vadd.f32 %v4579, %v4747
  %v4749 = vpop.f32.mrf.mxu0
  %v4750 = vadd.f32 %v4581, %v4749
  %4751 = vmatmul.bf16.gmra.mxu0 %v3033
  %v4752 = vpop.f32.mrf.mxu0
  %v4753 = vadd.f32 %v4584, %v4752
  %v4754 = vpop.f32.mrf.mxu0
  %v4755 = vadd.f32 %v4586, %v4754
  %4756 = vmatmul.bf16.gmra.mxu0 %v3037
  %v4757 = vpop.f32.mrf.mxu0
  %v4758 = vadd.f32 %v4589, %v4757
  %v4759 = vpop.f32.mrf.mxu0
  %v4760 = vadd.f32 %v4591, %v4759
  %4761 = vmatmul.bf16.gmra.mxu0 %v3041
  %v4762 = vpop.f32.mrf.mxu0
  %v4763 = vadd.f32 %v4594, %v4762
  %v4764 = vpop.f32.mrf.mxu0
  %v4765 = vadd.f32 %v4596, %v4764
  %4766 = vmatmul.bf16.gmra.mxu0 %v3045
  %v4767 = vpop.f32.mrf.mxu0
  %v4768 = vadd.f32 %v4599, %v4767
  %v4769 = vpop.f32.mrf.mxu0
  %v4770 = vadd.f32 %v4601, %v4769
  %4771 = vmatmul.bf16.gmra.mxu0 %v3049
  %v4772 = vpop.f32.mrf.mxu0
  %v4773 = vadd.f32 %v4604, %v4772
  %v4774 = vpop.f32.mrf.mxu0
  %v4775 = vadd.f32 %v4606, %v4774
  %4776 = vmatmul.bf16.gmra.mxu0 %v3053
  %v4777 = vpop.f32.mrf.mxu0
  %v4778 = vadd.f32 %v4609, %v4777
  %v4779 = vpop.f32.mrf.mxu0
  %v4780 = vadd.f32 %v4611, %v4779
  %4781 = vmatmul.bf16.gmra.mxu0 %v3057
  %v4782 = vpop.f32.mrf.mxu0
  %v4783 = vadd.f32 %v4614, %v4782
  %v4784 = vpop.f32.mrf.mxu0
  %v4785 = vadd.f32 %v4616, %v4784
  %4786 = vmatmul.bf16.gmra.mxu0 %v3061
  %v4787 = vpop.f32.mrf.mxu0
  %v4788 = vadd.f32 %v4619, %v4787
  %v4789 = vpop.f32.mrf.mxu0
  %v4790 = vadd.f32 %v4621, %v4789
  %4791 = vmatmul.bf16.gmra.mxu0 %v3065
  %v4792 = vpop.f32.mrf.mxu0
  %v4793 = vadd.f32 %v4624, %v4792
  %v4794 = vpop.f32.mrf.mxu0
  %v4795 = vadd.f32 %v4626, %v4794
  %4796 = vmatmul.bf16.gmra.mxu0 %v3069
  %v4797 = vpop.f32.mrf.mxu0
  %v4798 = vadd.f32 %v4629, %v4797
  %v4799 = vpop.f32.mrf.mxu0
  %v4800 = vadd.f32 %v4631, %v4799
  %4801 = vmatmul.bf16.gmra.mxu0 %v3073
  %v4802 = vpop.f32.mrf.mxu0
  %v4803 = vadd.f32 %v4634, %v4802
  %v4804 = vpop.f32.mrf.mxu0
  %v4805 = vadd.f32 %v4636, %v4804
  %4806 = vmatmul.bf16.gmra.mxu0 %v3077
  %v4807 = vpop.f32.mrf.mxu0
  %v4808 = vadd.f32 %v4639, %v4807
  %v4809 = vpop.f32.mrf.mxu0
  %v4810 = vadd.f32 %v4641, %v4809
  %4811 = vmatmul.bf16.gmra.mxu0 %v3081
  %v4812 = vpop.f32.mrf.mxu0
  %v4813 = vadd.f32 %v4644, %v4812
  %v4814 = vpop.f32.mrf.mxu0
  %v4815 = vadd.f32 %v4646, %v4814
  %4816 = vmatmul.bf16.gmra.mxu0 %v3085
  %v4817 = vpop.f32.mrf.mxu0
  %v4818 = vadd.f32 %v4649, %v4817
  %v4819 = vpop.f32.mrf.mxu0
  %v4820 = vadd.f32 %v4651, %v4819
  %4821 = vmatmul.bf16.gmra.mxu0 %v3089
  %v4822 = vpop.f32.mrf.mxu0
  %v4823 = vadd.f32 %v4654, %v4822
  %v4824 = vpop.f32.mrf.mxu0
  %v4825 = vadd.f32 %v4656, %v4824
  %4826 = vmatmul.bf16.gmra.mxu0 %v3093
  %v4827 = vpop.f32.mrf.mxu0
  %v4828 = vadd.f32 %v4659, %v4827
  %v4829 = vpop.f32.mrf.mxu0
  %v4830 = vadd.f32 %v4661, %v4829
  %4831 = vmatmul.bf16.gmra.mxu0 %v3097
  %v4832 = vpop.f32.mrf.mxu0
  %v4833 = vadd.f32 %v4664, %v4832
  %v4834 = vpop.f32.mrf.mxu0
  %v4835 = vadd.f32 %v4666, %v4834
  %4836 = vmatmul.bf16.gmra.mxu0 %v3101
  %v4837 = vpop.f32.mrf.mxu0
  %v4838 = vadd.f32 %v4669, %v4837
  %v4839 = vpop.f32.mrf.mxu0
  %v4840 = vadd.f32 %v4671, %v4839
  %4841 = vmatmul.bf16.gmra.mxu0 %v3105
  %v4842 = vpop.f32.mrf.mxu0
  %v4843 = vadd.f32 %v4674, %v4842
  %v4844 = vpop.f32.mrf.mxu0
  %v4845 = vadd.f32 %v4676, %v4844
  %4846 = vmatmul.bf16.gmra.mxu0 %v3109
  %v4847 = vpop.f32.mrf.mxu0
  %v4848 = vadd.f32 %v4679, %v4847
  %v4849 = vpop.f32.mrf.mxu0
  %v4850 = vadd.f32 %v4681, %v4849
  %4851 = vdwg.mxu0
  %v4852 = vmax.f32 %v4017, %v4693
  %4853 = vmax.xlane.f32.xlu0 %v4852
  %v4854 = vpop.xlane.xlu0 %4853
  %v4855 = vmax.f32 %v4019, %v4695
  %4856 = vmax.xlane.f32.xlu0 %v4855
  %v4857 = vpop.xlane.xlu0 %4856
  %v4858 = vmax.f32 %v4022, %v4698
  %4859 = vmax.xlane.f32.xlu0 %v4858
  %v4860 = vpop.xlane.xlu0 %4859
  %v4861 = vmax.f32 %v4024, %v4700
  %4862 = vmax.xlane.f32.xlu0 %v4861
  %v4863 = vpop.xlane.xlu0 %4862
  %v4864 = vmax.f32 %v4027, %v4703
  %4865 = vmax.xlane.f32.xlu0 %v4864
  %v4866 = vpop.xlane.xlu0 %4865
  %v4867 = vmax.f32 %v4029, %v4705
  %4868 = vmax.xlane.f32.xlu0 %v4867
  %v4869 = vpop.xlane.xlu0 %4868
  %v4870 = vmax.f32 %v4032, %v4708
  %4871 = vmax.xlane.f32.xlu0 %v4870
  %v4872 = vpop.xlane.xlu0 %4871
  %v4873 = vmax.f32 %v4034, %v4710
  %4874 = vmax.xlane.f32.xlu0 %v4873
  %v4875 = vpop.xlane.xlu0 %4874
  %v4876 = vmax.f32 %v4037, %v4713
  %4877 = vmax.xlane.f32.xlu0 %v4876
  %v4878 = vpop.xlane.xlu0 %4877
  %v4879 = vmax.f32 %v4039, %v4715
  %4880 = vmax.xlane.f32.xlu0 %v4879
  %v4881 = vpop.xlane.xlu0 %4880
  %v4882 = vmax.f32 %v4042, %v4718
  %4883 = vmax.xlane.f32.xlu0 %v4882
  %v4884 = vpop.xlane.xlu0 %4883
  %v4885 = vmax.f32 %v4044, %v4720
  %4886 = vmax.xlane.f32.xlu0 %v4885
  %v4887 = vpop.xlane.xlu0 %4886
  %v4888 = vmax.f32 %v4047, %v4723
  %4889 = vmax.xlane.f32.xlu0 %v4888
  %v4890 = vpop.xlane.xlu0 %4889
  %v4891 = vmax.f32 %v4049, %v4725
  %4892 = vmax.xlane.f32.xlu0 %v4891
  %v4893 = vpop.xlane.xlu0 %4892
  %v4894 = vmax.f32 %v4052, %v4728
  %4895 = vmax.xlane.f32.xlu0 %v4894
  %v4896 = vpop.xlane.xlu0 %4895
  %v4897 = vmax.f32 %v4054, %v4730
  %4898 = vmax.xlane.f32.xlu0 %v4897
  %v4899 = vpop.xlane.xlu0 %4898
  %v4900 = vmax.f32 %v4057, %v4733
  %4901 = vmax.xlane.f32.xlu0 %v4900
  %v4902 = vpop.xlane.xlu0 %4901
  %v4903 = vmax.f32 %v4059, %v4735
  %4904 = vmax.xlane.f32.xlu0 %v4903
  %v4905 = vpop.xlane.xlu0 %4904
  %v4906 = vmax.f32 %v4062, %v4738
  %4907 = vmax.xlane.f32.xlu0 %v4906
  %v4908 = vpop.xlane.xlu0 %4907
  %v4909 = vmax.f32 %v4064, %v4740
  %4910 = vmax.xlane.f32.xlu0 %v4909
  %v4911 = vpop.xlane.xlu0 %4910
  %v4912 = vmax.f32 %v4067, %v4743
  %4913 = vmax.xlane.f32.xlu0 %v4912
  %v4914 = vpop.xlane.xlu0 %4913
  %v4915 = vmax.f32 %v4069, %v4745
  %4916 = vmax.xlane.f32.xlu0 %v4915
  %v4917 = vpop.xlane.xlu0 %4916
  %v4918 = vmax.f32 %v4072, %v4748
  %4919 = vmax.xlane.f32.xlu0 %v4918
  %v4920 = vpop.xlane.xlu0 %4919
  %v4921 = vmax.f32 %v4074, %v4750
  %4922 = vmax.xlane.f32.xlu0 %v4921
  %v4923 = vpop.xlane.xlu0 %4922
  %v4924 = vmax.f32 %v4077, %v4753
  %4925 = vmax.xlane.f32.xlu0 %v4924
  %v4926 = vpop.xlane.xlu0 %4925
  %v4927 = vmax.f32 %v4079, %v4755
  %4928 = vmax.xlane.f32.xlu0 %v4927
  %v4929 = vpop.xlane.xlu0 %4928
  %v4930 = vmax.f32 %v4082, %v4758
  %4931 = vmax.xlane.f32.xlu0 %v4930
  %v4932 = vpop.xlane.xlu0 %4931
  %v4933 = vmax.f32 %v4084, %v4760
  %4934 = vmax.xlane.f32.xlu0 %v4933
  %v4935 = vpop.xlane.xlu0 %4934
  %v4936 = vmax.f32 %v4087, %v4763
  %4937 = vmax.xlane.f32.xlu0 %v4936
  %v4938 = vpop.xlane.xlu0 %4937
  %v4939 = vmax.f32 %v4089, %v4765
  %4940 = vmax.xlane.f32.xlu0 %v4939
  %v4941 = vpop.xlane.xlu0 %4940
  %v4942 = vmax.f32 %v4092, %v4768
  %4943 = vmax.xlane.f32.xlu0 %v4942
  %v4944 = vpop.xlane.xlu0 %4943
  %v4945 = vmax.f32 %v4094, %v4770
  %4946 = vmax.xlane.f32.xlu0 %v4945
  %v4947 = vpop.xlane.xlu0 %4946
  %v4948 = vmax.f32 %v4097, %v4773
  %4949 = vmax.xlane.f32.xlu0 %v4948
  %v4950 = vpop.xlane.xlu0 %4949
  %v4951 = vmax.f32 %v4099, %v4775
  %4952 = vmax.xlane.f32.xlu0 %v4951
  %v4953 = vpop.xlane.xlu0 %4952
  %v4954 = vmax.f32 %v4102, %v4778
  %4955 = vmax.xlane.f32.xlu0 %v4954
  %v4956 = vpop.xlane.xlu0 %4955
  %v4957 = vmax.f32 %v4104, %v4780
  %4958 = vmax.xlane.f32.xlu0 %v4957
  %v4959 = vpop.xlane.xlu0 %4958
  %v4960 = vmax.f32 %v4107, %v4783
  %4961 = vmax.xlane.f32.xlu0 %v4960
  %v4962 = vpop.xlane.xlu0 %4961
  %v4963 = vmax.f32 %v4109, %v4785
  %4964 = vmax.xlane.f32.xlu0 %v4963
  %v4965 = vpop.xlane.xlu0 %4964
  %v4966 = vmax.f32 %v4112, %v4788
  %4967 = vmax.xlane.f32.xlu0 %v4966
  %v4968 = vpop.xlane.xlu0 %4967
  %v4969 = vmax.f32 %v4114, %v4790
  %4970 = vmax.xlane.f32.xlu0 %v4969
  %v4971 = vpop.xlane.xlu0 %4970
  %v4972 = vmax.f32 %v4117, %v4793
  %4973 = vmax.xlane.f32.xlu0 %v4972
  %v4974 = vpop.xlane.xlu0 %4973
  %v4975 = vmax.f32 %v4119, %v4795
  %4976 = vmax.xlane.f32.xlu0 %v4975
  %v4977 = vpop.xlane.xlu0 %4976
  %v4978 = vmax.f32 %v4122, %v4798
  %4979 = vmax.xlane.f32.xlu0 %v4978
  %v4980 = vpop.xlane.xlu0 %4979
  %v4981 = vmax.f32 %v4124, %v4800
  %4982 = vmax.xlane.f32.xlu0 %v4981
  %v4983 = vpop.xlane.xlu0 %4982
  %v4984 = vmax.f32 %v4127, %v4803
  %4985 = vmax.xlane.f32.xlu0 %v4984
  %v4986 = vpop.xlane.xlu0 %4985
  %v4987 = vmax.f32 %v4129, %v4805
  %4988 = vmax.xlane.f32.xlu0 %v4987
  %v4989 = vpop.xlane.xlu0 %4988
  %v4990 = vmax.f32 %v4132, %v4808
  %4991 = vmax.xlane.f32.xlu0 %v4990
  %v4992 = vpop.xlane.xlu0 %4991
  %v4993 = vmax.f32 %v4134, %v4810
  %4994 = vmax.xlane.f32.xlu0 %v4993
  %v4995 = vpop.xlane.xlu0 %4994
  %v4996 = vmax.f32 %v4137, %v4813
  %4997 = vmax.xlane.f32.xlu0 %v4996
  %v4998 = vpop.xlane.xlu0 %4997
  %v4999 = vmax.f32 %v4139, %v4815
  %5000 = vmax.xlane.f32.xlu0 %v4999
  %v5001 = vpop.xlane.xlu0 %5000
  %v5002 = vmax.f32 %v4142, %v4818
  %5003 = vmax.xlane.f32.xlu0 %v5002
  %v5004 = vpop.xlane.xlu0 %5003
  %v5005 = vmax.f32 %v4144, %v4820
  %5006 = vmax.xlane.f32.xlu0 %v5005
  %v5007 = vpop.xlane.xlu0 %5006
  %v5008 = vmax.f32 %v4147, %v4823
  %5009 = vmax.xlane.f32.xlu0 %v5008
  %v5010 = vpop.xlane.xlu0 %5009
  %v5011 = vmax.f32 %v4149, %v4825
  %5012 = vmax.xlane.f32.xlu0 %v5011
  %v5013 = vpop.xlane.xlu0 %5012
  %v5014 = vmax.f32 %v4152, %v4828
  %5015 = vmax.xlane.f32.xlu0 %v5014
  %v5016 = vpop.xlane.xlu0 %5015
  %v5017 = vmax.f32 %v4154, %v4830
  %5018 = vmax.xlane.f32.xlu0 %v5017
  %v5019 = vpop.xlane.xlu0 %5018
  %v5020 = vmax.f32 %v4157, %v4833
  %5021 = vmax.xlane.f32.xlu0 %v5020
  %v5022 = vpop.xlane.xlu0 %5021
  %v5023 = vmax.f32 %v4159, %v4835
  %5024 = vmax.xlane.f32.xlu0 %v5023
  %v5025 = vpop.xlane.xlu0 %5024
  %v5026 = vmax.f32 %v4162, %v4838
  %5027 = vmax.xlane.f32.xlu0 %v5026
  %v5028 = vpop.xlane.xlu0 %5027
  %v5029 = vmax.f32 %v4164, %v4840
  %5030 = vmax.xlane.f32.xlu0 %v5029
  %v5031 = vpop.xlane.xlu0 %5030
  %v5032 = vmax.f32 %v4167, %v4843
  %5033 = vmax.xlane.f32.xlu0 %v5032
  %v5034 = vpop.xlane.xlu0 %5033
  %v5035 = vmax.f32 %v4169, %v4845
  %5036 = vmax.xlane.f32.xlu0 %v5035
  %v5037 = vpop.xlane.xlu0 %5036
  %v5038 = vmax.f32 %v4172, %v4848
  %5039 = vmax.xlane.f32.xlu0 %v5038
  %v5040 = vpop.xlane.xlu0 %5039
  %v5041 = vmax.f32 %v4174, %v4850
  %5042 = vmax.xlane.f32.xlu0 %v5041
  %v5043 = vpop.xlane.xlu0 %5042
  %v5044 = vsub.f32 %v4017, %v4854
  %v5045 = vsub.f32 %v4693, %v4854
  %v5046 = vsub.f32 %v4019, %v4857
  %v5047 = vsub.f32 %v4695, %v4857
  %v5048 = vsub.f32 %v4022, %v4860
  %v5049 = vsub.f32 %v4698, %v4860
  %v5050 = vsub.f32 %v4024, %v4863
  %v5051 = vsub.f32 %v4700, %v4863
  %v5052 = vsub.f32 %v4027, %v4866
  %v5053 = vsub.f32 %v4703, %v4866
  %v5054 = vsub.f32 %v4029, %v4869
  %v5055 = vsub.f32 %v4705, %v4869
  %v5056 = vsub.f32 %v4032, %v4872
  %v5057 = vsub.f32 %v4708, %v4872
  %v5058 = vsub.f32 %v4034, %v4875
  %v5059 = vsub.f32 %v4710, %v4875
  %v5060 = vsub.f32 %v4037, %v4878
  %v5061 = vsub.f32 %v4713, %v4878
  %v5062 = vsub.f32 %v4039, %v4881
  %v5063 = vsub.f32 %v4715, %v4881
  %v5064 = vsub.f32 %v4042, %v4884
  %v5065 = vsub.f32 %v4718, %v4884
  %v5066 = vsub.f32 %v4044, %v4887
  %v5067 = vsub.f32 %v4720, %v4887
  %v5068 = vsub.f32 %v4047, %v4890
  %v5069 = vsub.f32 %v4723, %v4890
  %v5070 = vsub.f32 %v4049, %v4893
  %v5071 = vsub.f32 %v4725, %v4893
  %v5072 = vsub.f32 %v4052, %v4896
  %v5073 = vsub.f32 %v4728, %v4896
  %v5074 = vsub.f32 %v4054, %v4899
  %v5075 = vsub.f32 %v4730, %v4899
  %v5076 = vsub.f32 %v4057, %v4902
  %v5077 = vsub.f32 %v4733, %v4902
  %v5078 = vsub.f32 %v4059, %v4905
  %v5079 = vsub.f32 %v4735, %v4905
  %v5080 = vsub.f32 %v4062, %v4908
  %v5081 = vsub.f32 %v4738, %v4908
  %v5082 = vsub.f32 %v4064, %v4911
  %v5083 = vsub.f32 %v4740, %v4911
  %v5084 = vsub.f32 %v4067, %v4914
  %v5085 = vsub.f32 %v4743, %v4914
  %v5086 = vsub.f32 %v4069, %v4917
  %v5087 = vsub.f32 %v4745, %v4917
  %v5088 = vsub.f32 %v4072, %v4920
  %v5089 = vsub.f32 %v4748, %v4920
  %v5090 = vsub.f32 %v4074, %v4923
  %v5091 = vsub.f32 %v4750, %v4923
  %v5092 = vsub.f32 %v4077, %v4926
  %v5093 = vsub.f32 %v4753, %v4926
  %v5094 = vsub.f32 %v4079, %v4929
  %v5095 = vsub.f32 %v4755, %v4929
  %v5096 = vsub.f32 %v4082, %v4932
  %v5097 = vsub.f32 %v4758, %v4932
  %v5098 = vsub.f32 %v4084, %v4935
  %v5099 = vsub.f32 %v4760, %v4935
  %v5100 = vsub.f32 %v4087, %v4938
  %v5101 = vsub.f32 %v4763, %v4938
  %v5102 = vsub.f32 %v4089, %v4941
  %v5103 = vsub.f32 %v4765, %v4941
  %v5104 = vsub.f32 %v4092, %v4944
  %v5105 = vsub.f32 %v4768, %v4944
  %v5106 = vsub.f32 %v4094, %v4947
  %v5107 = vsub.f32 %v4770, %v4947
  %v5108 = vsub.f32 %v4097, %v4950
  %v5109 = vsub.f32 %v4773, %v4950
  %v5110 = vsub.f32 %v4099, %v4953
  %v5111 = vsub.f32 %v4775, %v4953
  %v5112 = vsub.f32 %v4102, %v4956
  %v5113 = vsub.f32 %v4778, %v4956
  %v5114 = vsub.f32 %v4104, %v4959
  %v5115 = vsub.f32 %v4780, %v4959
  %v5116 = vsub.f32 %v4107, %v4962
  %v5117 = vsub.f32 %v4783, %v4962
  %v5118 = vsub.f32 %v4109, %v4965
  %v5119 = vsub.f32 %v4785, %v4965
  %v5120 = vsub.f32 %v4112, %v4968
  %v5121 = vsub.f32 %v4788, %v4968
  %v5122 = vsub.f32 %v4114, %v4971
  %v5123 = vsub.f32 %v4790, %v4971
  %v5124 = vsub.f32 %v4117, %v4974
  %v5125 = vsub.f32 %v4793, %v4974
  %v5126 = vsub.f32 %v4119, %v4977
  %v5127 = vsub.f32 %v4795, %v4977
  %v5128 = vsub.f32 %v4122, %v4980
  %v5129 = vsub.f32 %v4798, %v4980
  %v5130 = vsub.f32 %v4124, %v4983
  %v5131 = vsub.f32 %v4800, %v4983
  %v5132 = vsub.f32 %v4127, %v4986
  %v5133 = vsub.f32 %v4803, %v4986
  %v5134 = vsub.f32 %v4129, %v4989
  %v5135 = vsub.f32 %v4805, %v4989
  %v5136 = vsub.f32 %v4132, %v4992
  %v5137 = vsub.f32 %v4808, %v4992
  %v5138 = vsub.f32 %v4134, %v4995
  %v5139 = vsub.f32 %v4810, %v4995
  %v5140 = vsub.f32 %v4137, %v4998
  %v5141 = vsub.f32 %v4813, %v4998
  %v5142 = vsub.f32 %v4139, %v5001
  %v5143 = vsub.f32 %v4815, %v5001
  %v5144 = vsub.f32 %v4142, %v5004
  %v5145 = vsub.f32 %v4818, %v5004
  %v5146 = vsub.f32 %v4144, %v5007
  %v5147 = vsub.f32 %v4820, %v5007
  %v5148 = vsub.f32 %v4147, %v5010
  %v5149 = vsub.f32 %v4823, %v5010
  %v5150 = vsub.f32 %v4149, %v5013
  %v5151 = vsub.f32 %v4825, %v5013
  %v5152 = vsub.f32 %v4152, %v5016
  %v5153 = vsub.f32 %v4828, %v5016
  %v5154 = vsub.f32 %v4154, %v5019
  %v5155 = vsub.f32 %v4830, %v5019
  %v5156 = vsub.f32 %v4157, %v5022
  %v5157 = vsub.f32 %v4833, %v5022
  %v5158 = vsub.f32 %v4159, %v5025
  %v5159 = vsub.f32 %v4835, %v5025
  %v5160 = vsub.f32 %v4162, %v5028
  %v5161 = vsub.f32 %v4838, %v5028
  %v5162 = vsub.f32 %v4164, %v5031
  %v5163 = vsub.f32 %v4840, %v5031
  %v5164 = vsub.f32 %v4167, %v5034
  %v5165 = vsub.f32 %v4843, %v5034
  %v5166 = vsub.f32 %v4169, %v5037
  %v5167 = vsub.f32 %v4845, %v5037
  %v5168 = vsub.f32 %v4172, %v5040
  %v5169 = vsub.f32 %v4848, %v5040
  %v5170 = vsub.f32 %v4174, %v5043
  %v5171 = vsub.f32 %v4850, %v5043
  %v5172 = vmul.f32 %v5044, 1.442695
  %v5173 = vpow.pop %v5172
  %v5174 = vmul.f32 %v5045, 1.442695
  %v5175 = vpow.pop %v5174
  %v5176 = vmul.f32 %v5046, 1.442695
  %v5177 = vpow.pop %v5176
  %v5178 = vmul.f32 %v5047, 1.442695
  %v5179 = vpow.pop %v5178
  %v5180 = vmul.f32 %v5048, 1.442695
  %v5181 = vpow.pop %v5180
  %v5182 = vmul.f32 %v5049, 1.442695
  %v5183 = vpow.pop %v5182
  %v5184 = vmul.f32 %v5050, 1.442695
  %v5185 = vpow.pop %v5184
  %v5186 = vmul.f32 %v5051, 1.442695
  %v5187 = vpow.pop %v5186
  %v5188 = vmul.f32 %v5052, 1.442695
  %v5189 = vpow.pop %v5188
  %v5190 = vmul.f32 %v5053, 1.442695
  %v5191 = vpow.pop %v5190
  %v5192 = vmul.f32 %v5054, 1.442695
  %v5193 = vpow.pop %v5192
  %v5194 = vmul.f32 %v5055, 1.442695
  %v5195 = vpow.pop %v5194
  %v5196 = vmul.f32 %v5056, 1.442695
  %v5197 = vpow.pop %v5196
  %v5198 = vmul.f32 %v5057, 1.442695
  %v5199 = vpow.pop %v5198
  %v5200 = vmul.f32 %v5058, 1.442695
  %v5201 = vpow.pop %v5200
  %v5202 = vmul.f32 %v5059, 1.442695
  %v5203 = vpow.pop %v5202
  %v5204 = vmul.f32 %v5060, 1.442695
  %v5205 = vpow.pop %v5204
  %v5206 = vmul.f32 %v5061, 1.442695
  %v5207 = vpow.pop %v5206
  %v5208 = vmul.f32 %v5062, 1.442695
  %v5209 = vpow.pop %v5208
  %v5210 = vmul.f32 %v5063, 1.442695
  %v5211 = vpow.pop %v5210
  %v5212 = vmul.f32 %v5064, 1.442695
  %v5213 = vpow.pop %v5212
  %v5214 = vmul.f32 %v5065, 1.442695
  %v5215 = vpow.pop %v5214
  %v5216 = vmul.f32 %v5066, 1.442695
  %v5217 = vpow.pop %v5216
  %v5218 = vmul.f32 %v5067, 1.442695
  %v5219 = vpow.pop %v5218
  %v5220 = vmul.f32 %v5068, 1.442695
  %v5221 = vpow.pop %v5220
  %v5222 = vmul.f32 %v5069, 1.442695
  %v5223 = vpow.pop %v5222
  %v5224 = vmul.f32 %v5070, 1.442695
  %v5225 = vpow.pop %v5224
  %v5226 = vmul.f32 %v5071, 1.442695
  %v5227 = vpow.pop %v5226
  %v5228 = vmul.f32 %v5072, 1.442695
  %v5229 = vpow.pop %v5228
  %v5230 = vmul.f32 %v5073, 1.442695
  %v5231 = vpow.pop %v5230
  %v5232 = vmul.f32 %v5074, 1.442695
  %v5233 = vpow.pop %v5232
  %v5234 = vmul.f32 %v5075, 1.442695
  %v5235 = vpow.pop %v5234
  %v5236 = vmul.f32 %v5076, 1.442695
  %v5237 = vpow.pop %v5236
  %v5238 = vmul.f32 %v5077, 1.442695
  %v5239 = vpow.pop %v5238
  %v5240 = vmul.f32 %v5078, 1.442695
  %v5241 = vpow.pop %v5240
  %v5242 = vmul.f32 %v5079, 1.442695
  %v5243 = vpow.pop %v5242
  %v5244 = vmul.f32 %v5080, 1.442695
  %v5245 = vpow.pop %v5244
  %v5246 = vmul.f32 %v5081, 1.442695
  %v5247 = vpow.pop %v5246
  %v5248 = vmul.f32 %v5082, 1.442695
  %v5249 = vpow.pop %v5248
  %v5250 = vmul.f32 %v5083, 1.442695
  %v5251 = vpow.pop %v5250
  %v5252 = vmul.f32 %v5084, 1.442695
  %v5253 = vpow.pop %v5252
  %v5254 = vmul.f32 %v5085, 1.442695
  %v5255 = vpow.pop %v5254
  %v5256 = vmul.f32 %v5086, 1.442695
  %v5257 = vpow.pop %v5256
  %v5258 = vmul.f32 %v5087, 1.442695
  %v5259 = vpow.pop %v5258
  %v5260 = vmul.f32 %v5088, 1.442695
  %v5261 = vpow.pop %v5260
  %v5262 = vmul.f32 %v5089, 1.442695
  %v5263 = vpow.pop %v5262
  %v5264 = vmul.f32 %v5090, 1.442695
  %v5265 = vpow.pop %v5264
  %v5266 = vmul.f32 %v5091, 1.442695
  %v5267 = vpow.pop %v5266
  %v5268 = vmul.f32 %v5092, 1.442695
  %v5269 = vpow.pop %v5268
  %v5270 = vmul.f32 %v5093, 1.442695
  %v5271 = vpow.pop %v5270
  %v5272 = vmul.f32 %v5094, 1.442695
  %v5273 = vpow.pop %v5272
  %v5274 = vmul.f32 %v5095, 1.442695
  %v5275 = vpow.pop %v5274
  %v5276 = vmul.f32 %v5096, 1.442695
  %v5277 = vpow.pop %v5276
  %v5278 = vmul.f32 %v5097, 1.442695
  %v5279 = vpow.pop %v5278
  %v5280 = vmul.f32 %v5098, 1.442695
  %v5281 = vpow.pop %v5280
  %v5282 = vmul.f32 %v5099, 1.442695
  %v5283 = vpow.pop %v5282
  %v5284 = vmul.f32 %v5100, 1.442695
  %v5285 = vpow.pop %v5284
  %v5286 = vmul.f32 %v5101, 1.442695
  %v5287 = vpow.pop %v5286
  %v5288 = vmul.f32 %v5102, 1.442695
  %v5289 = vpow.pop %v5288
  %v5290 = vmul.f32 %v5103, 1.442695
  %v5291 = vpow.pop %v5290
  %v5292 = vmul.f32 %v5104, 1.442695
  %v5293 = vpow.pop %v5292
  %v5294 = vmul.f32 %v5105, 1.442695
  %v5295 = vpow.pop %v5294
  %v5296 = vmul.f32 %v5106, 1.442695
  %v5297 = vpow.pop %v5296
  %v5298 = vmul.f32 %v5107, 1.442695
  %v5299 = vpow.pop %v5298
  %v5300 = vmul.f32 %v5108, 1.442695
  %v5301 = vpow.pop %v5300
  %v5302 = vmul.f32 %v5109, 1.442695
  %v5303 = vpow.pop %v5302
  %v5304 = vmul.f32 %v5110, 1.442695
  %v5305 = vpow.pop %v5304
  %v5306 = vmul.f32 %v5111, 1.442695
  %v5307 = vpow.pop %v5306
  %v5308 = vmul.f32 %v5112, 1.442695
  %v5309 = vpow.pop %v5308
  %v5310 = vmul.f32 %v5113, 1.442695
  %v5311 = vpow.pop %v5310
  %v5312 = vmul.f32 %v5114, 1.442695
  %v5313 = vpow.pop %v5312
  %v5314 = vmul.f32 %v5115, 1.442695
  %v5315 = vpow.pop %v5314
  %v5316 = vmul.f32 %v5116, 1.442695
  %v5317 = vpow.pop %v5316
  %v5318 = vmul.f32 %v5117, 1.442695
  %v5319 = vpow.pop %v5318
  %v5320 = vmul.f32 %v5118, 1.442695
  %v5321 = vpow.pop %v5320
  %v5322 = vmul.f32 %v5119, 1.442695
  %v5323 = vpow.pop %v5322
  %v5324 = vmul.f32 %v5120, 1.442695
  %v5325 = vpow.pop %v5324
  %v5326 = vmul.f32 %v5121, 1.442695
  %v5327 = vpow.pop %v5326
  %v5328 = vmul.f32 %v5122, 1.442695
  %v5329 = vpow.pop %v5328
  %v5330 = vmul.f32 %v5123, 1.442695
  %v5331 = vpow.pop %v5330
  %v5332 = vmul.f32 %v5124, 1.442695
  %v5333 = vpow.pop %v5332
  %v5334 = vmul.f32 %v5125, 1.442695
  %v5335 = vpow.pop %v5334
  %v5336 = vmul.f32 %v5126, 1.442695
  %v5337 = vpow.pop %v5336
  %v5338 = vmul.f32 %v5127, 1.442695
  %v5339 = vpow.pop %v5338
  %v5340 = vmul.f32 %v5128, 1.442695
  %v5341 = vpow.pop %v5340
  %v5342 = vmul.f32 %v5129, 1.442695
  %v5343 = vpow.pop %v5342
  %v5344 = vmul.f32 %v5130, 1.442695
  %v5345 = vpow.pop %v5344
  %v5346 = vmul.f32 %v5131, 1.442695
  %v5347 = vpow.pop %v5346
  %v5348 = vmul.f32 %v5132, 1.442695
  %v5349 = vpow.pop %v5348
  %v5350 = vmul.f32 %v5133, 1.442695
  %v5351 = vpow.pop %v5350
  %v5352 = vmul.f32 %v5134, 1.442695
  %v5353 = vpow.pop %v5352
  %v5354 = vmul.f32 %v5135, 1.442695
  %v5355 = vpow.pop %v5354
  %v5356 = vmul.f32 %v5136, 1.442695
  %v5357 = vpow.pop %v5356
  %v5358 = vmul.f32 %v5137, 1.442695
  %v5359 = vpow.pop %v5358
  %v5360 = vmul.f32 %v5138, 1.442695
  %v5361 = vpow.pop %v5360
  %v5362 = vmul.f32 %v5139, 1.442695
  %v5363 = vpow.pop %v5362
  %v5364 = vmul.f32 %v5140, 1.442695
  %v5365 = vpow.pop %v5364
  %v5366 = vmul.f32 %v5141, 1.442695
  %v5367 = vpow.pop %v5366
  %v5368 = vmul.f32 %v5142, 1.442695
  %v5369 = vpow.pop %v5368
  %v5370 = vmul.f32 %v5143, 1.442695
  %v5371 = vpow.pop %v5370
  %v5372 = vmul.f32 %v5144, 1.442695
  %v5373 = vpow.pop %v5372
  %v5374 = vmul.f32 %v5145, 1.442695
  %v5375 = vpow.pop %v5374
  %v5376 = vmul.f32 %v5146, 1.442695
  %v5377 = vpow.pop %v5376
  %v5378 = vmul.f32 %v5147, 1.442695
  %v5379 = vpow.pop %v5378
  %v5380 = vmul.f32 %v5148, 1.442695
  %v5381 = vpow.pop %v5380
  %v5382 = vmul.f32 %v5149, 1.442695
  %v5383 = vpow.pop %v5382
  %v5384 = vmul.f32 %v5150, 1.442695
  %v5385 = vpow.pop %v5384
  %v5386 = vmul.f32 %v5151, 1.442695
  %v5387 = vpow.pop %v5386
  %v5388 = vmul.f32 %v5152, 1.442695
  %v5389 = vpow.pop %v5388
  %v5390 = vmul.f32 %v5153, 1.442695
  %v5391 = vpow.pop %v5390
  %v5392 = vmul.f32 %v5154, 1.442695
  %v5393 = vpow.pop %v5392
  %v5394 = vmul.f32 %v5155, 1.442695
  %v5395 = vpow.pop %v5394
  %v5396 = vmul.f32 %v5156, 1.442695
  %v5397 = vpow.pop %v5396
  %v5398 = vmul.f32 %v5157, 1.442695
  %v5399 = vpow.pop %v5398
  %v5400 = vmul.f32 %v5158, 1.442695
  %v5401 = vpow.pop %v5400
  %v5402 = vmul.f32 %v5159, 1.442695
  %v5403 = vpow.pop %v5402
  %v5404 = vmul.f32 %v5160, 1.442695
  %v5405 = vpow.pop %v5404
  %v5406 = vmul.f32 %v5161, 1.442695
  %v5407 = vpow.pop %v5406
  %v5408 = vmul.f32 %v5162, 1.442695
  %v5409 = vpow.pop %v5408
  %v5410 = vmul.f32 %v5163, 1.442695
  %v5411 = vpow.pop %v5410
  %v5412 = vmul.f32 %v5164, 1.442695
  %v5413 = vpow.pop %v5412
  %v5414 = vmul.f32 %v5165, 1.442695
  %v5415 = vpow.pop %v5414
  %v5416 = vmul.f32 %v5166, 1.442695
  %v5417 = vpow.pop %v5416
  %v5418 = vmul.f32 %v5167, 1.442695
  %v5419 = vpow.pop %v5418
  %v5420 = vmul.f32 %v5168, 1.442695
  %v5421 = vpow.pop %v5420
  %v5422 = vmul.f32 %v5169, 1.442695
  %v5423 = vpow.pop %v5422
  %v5424 = vmul.f32 %v5170, 1.442695
  %v5425 = vpow.pop %v5424
  %v5426 = vmul.f32 %v5171, 1.442695
  %v5427 = vpow.pop %v5426
  %v5428 = vadd.f32 %v5173, %v5175
  %5429 = vadd.xlane.f32.xlu0 %v5428
  %v5430 = vpop.xlane.xlu0 %5429
  %v5431 = vadd.f32 %v5177, %v5179
  %5432 = vadd.xlane.f32.xlu0 %v5431
  %v5433 = vpop.xlane.xlu0 %5432
  %v5434 = vadd.f32 %v5181, %v5183
  %5435 = vadd.xlane.f32.xlu0 %v5434
  %v5436 = vpop.xlane.xlu0 %5435
  %v5437 = vadd.f32 %v5185, %v5187
  %5438 = vadd.xlane.f32.xlu0 %v5437
  %v5439 = vpop.xlane.xlu0 %5438
  %v5440 = vadd.f32 %v5189, %v5191
  %5441 = vadd.xlane.f32.xlu0 %v5440
  %v5442 = vpop.xlane.xlu0 %5441
  %v5443 = vadd.f32 %v5193, %v5195
  %5444 = vadd.xlane.f32.xlu0 %v5443
  %v5445 = vpop.xlane.xlu0 %5444
  %v5446 = vadd.f32 %v5197, %v5199
  %5447 = vadd.xlane.f32.xlu0 %v5446
  %v5448 = vpop.xlane.xlu0 %5447
  %v5449 = vadd.f32 %v5201, %v5203
  %5450 = vadd.xlane.f32.xlu0 %v5449
  %v5451 = vpop.xlane.xlu0 %5450
  %v5452 = vadd.f32 %v5205, %v5207
  %5453 = vadd.xlane.f32.xlu0 %v5452
  %v5454 = vpop.xlane.xlu0 %5453
  %v5455 = vadd.f32 %v5209, %v5211
  %5456 = vadd.xlane.f32.xlu0 %v5455
  %v5457 = vpop.xlane.xlu0 %5456
  %v5458 = vadd.f32 %v5213, %v5215
  %5459 = vadd.xlane.f32.xlu0 %v5458
  %v5460 = vpop.xlane.xlu0 %5459
  %v5461 = vadd.f32 %v5217, %v5219
  %5462 = vadd.xlane.f32.xlu0 %v5461
  %v5463 = vpop.xlane.xlu0 %5462
  %v5464 = vadd.f32 %v5221, %v5223
  %5465 = vadd.xlane.f32.xlu0 %v5464
  %v5466 = vpop.xlane.xlu0 %5465
  %v5467 = vadd.f32 %v5225, %v5227
  %5468 = vadd.xlane.f32.xlu0 %v5467
  %v5469 = vpop.xlane.xlu0 %5468
  %v5470 = vadd.f32 %v5229, %v5231
  %5471 = vadd.xlane.f32.xlu0 %v5470
  %v5472 = vpop.xlane.xlu0 %5471
  %v5473 = vadd.f32 %v5233, %v5235
  %5474 = vadd.xlane.f32.xlu0 %v5473
  %v5475 = vpop.xlane.xlu0 %5474
  %v5476 = vadd.f32 %v5237, %v5239
  %5477 = vadd.xlane.f32.xlu0 %v5476
  %v5478 = vpop.xlane.xlu0 %5477
  %v5479 = vadd.f32 %v5241, %v5243
  %5480 = vadd.xlane.f32.xlu0 %v5479
  %v5481 = vpop.xlane.xlu0 %5480
  %v5482 = vadd.f32 %v5245, %v5247
  %5483 = vadd.xlane.f32.xlu0 %v5482
  %v5484 = vpop.xlane.xlu0 %5483
  %v5485 = vadd.f32 %v5249, %v5251
  %5486 = vadd.xlane.f32.xlu0 %v5485
  %v5487 = vpop.xlane.xlu0 %5486
  %v5488 = vadd.f32 %v5253, %v5255
  %5489 = vadd.xlane.f32.xlu0 %v5488
  %v5490 = vpop.xlane.xlu0 %5489
  %v5491 = vadd.f32 %v5257, %v5259
  %5492 = vadd.xlane.f32.xlu0 %v5491
  %v5493 = vpop.xlane.xlu0 %5492
  %v5494 = vadd.f32 %v5261, %v5263
  %5495 = vadd.xlane.f32.xlu0 %v5494
  %v5496 = vpop.xlane.xlu0 %5495
  %v5497 = vadd.f32 %v5265, %v5267
  %5498 = vadd.xlane.f32.xlu0 %v5497
  %v5499 = vpop.xlane.xlu0 %5498
  %v5500 = vadd.f32 %v5269, %v5271
  %5501 = vadd.xlane.f32.xlu0 %v5500
  %v5502 = vpop.xlane.xlu0 %5501
  %v5503 = vadd.f32 %v5273, %v5275
  %5504 = vadd.xlane.f32.xlu0 %v5503
  %v5505 = vpop.xlane.xlu0 %5504
  %v5506 = vadd.f32 %v5277, %v5279
  %5507 = vadd.xlane.f32.xlu0 %v5506
  %v5508 = vpop.xlane.xlu0 %5507
  %v5509 = vadd.f32 %v5281, %v5283
  %5510 = vadd.xlane.f32.xlu0 %v5509
  %v5511 = vpop.xlane.xlu0 %5510
  %v5512 = vadd.f32 %v5285, %v5287
  %5513 = vadd.xlane.f32.xlu0 %v5512
  %v5514 = vpop.xlane.xlu0 %5513
  %v5515 = vadd.f32 %v5289, %v5291
  %5516 = vadd.xlane.f32.xlu0 %v5515
  %v5517 = vpop.xlane.xlu0 %5516
  %v5518 = vadd.f32 %v5293, %v5295
  %5519 = vadd.xlane.f32.xlu0 %v5518
  %v5520 = vpop.xlane.xlu0 %5519
  %v5521 = vadd.f32 %v5297, %v5299
  %5522 = vadd.xlane.f32.xlu0 %v5521
  %v5523 = vpop.xlane.xlu0 %5522
  %v5524 = vadd.f32 %v5301, %v5303
  %5525 = vadd.xlane.f32.xlu0 %v5524
  %v5526 = vpop.xlane.xlu0 %5525
  %v5527 = vadd.f32 %v5305, %v5307
  %5528 = vadd.xlane.f32.xlu0 %v5527
  %v5529 = vpop.xlane.xlu0 %5528
  %v5530 = vadd.f32 %v5309, %v5311
  %5531 = vadd.xlane.f32.xlu0 %v5530
  %v5532 = vpop.xlane.xlu0 %5531
  %v5533 = vadd.f32 %v5313, %v5315
  %5534 = vadd.xlane.f32.xlu0 %v5533
  %v5535 = vpop.xlane.xlu0 %5534
  %v5536 = vadd.f32 %v5317, %v5319
  %5537 = vadd.xlane.f32.xlu0 %v5536
  %v5538 = vpop.xlane.xlu0 %5537
  %v5539 = vadd.f32 %v5321, %v5323
  %5540 = vadd.xlane.f32.xlu0 %v5539
  %v5541 = vpop.xlane.xlu0 %5540
  %v5542 = vadd.f32 %v5325, %v5327
  %5543 = vadd.xlane.f32.xlu0 %v5542
  %v5544 = vpop.xlane.xlu0 %5543
  %v5545 = vadd.f32 %v5329, %v5331
  %5546 = vadd.xlane.f32.xlu0 %v5545
  %v5547 = vpop.xlane.xlu0 %5546
  %v5548 = vadd.f32 %v5333, %v5335
  %5549 = vadd.xlane.f32.xlu0 %v5548
  %v5550 = vpop.xlane.xlu0 %5549
  %v5551 = vadd.f32 %v5337, %v5339
  %5552 = vadd.xlane.f32.xlu0 %v5551
  %v5553 = vpop.xlane.xlu0 %5552
  %v5554 = vadd.f32 %v5341, %v5343
  %5555 = vadd.xlane.f32.xlu0 %v5554
  %v5556 = vpop.xlane.xlu0 %5555
  %v5557 = vadd.f32 %v5345, %v5347
  %5558 = vadd.xlane.f32.xlu0 %v5557
  %v5559 = vpop.xlane.xlu0 %5558
  %v5560 = vadd.f32 %v5349, %v5351
  %5561 = vadd.xlane.f32.xlu0 %v5560
  %v5562 = vpop.xlane.xlu0 %5561
  %v5563 = vadd.f32 %v5353, %v5355
  %5564 = vadd.xlane.f32.xlu0 %v5563
  %v5565 = vpop.xlane.xlu0 %5564
  %v5566 = vadd.f32 %v5357, %v5359
  %5567 = vadd.xlane.f32.xlu0 %v5566
  %v5568 = vpop.xlane.xlu0 %5567
  %v5569 = vadd.f32 %v5361, %v5363
  %5570 = vadd.xlane.f32.xlu0 %v5569
  %v5571 = vpop.xlane.xlu0 %5570
  %v5572 = vadd.f32 %v5365, %v5367
  %5573 = vadd.xlane.f32.xlu0 %v5572
  %v5574 = vpop.xlane.xlu0 %5573
  %v5575 = vadd.f32 %v5369, %v5371
  %5576 = vadd.xlane.f32.xlu0 %v5575
  %v5577 = vpop.xlane.xlu0 %5576
  %v5578 = vadd.f32 %v5373, %v5375
  %5579 = vadd.xlane.f32.xlu0 %v5578
  %v5580 = vpop.xlane.xlu0 %5579
  %v5581 = vadd.f32 %v5377, %v5379
  %5582 = vadd.xlane.f32.xlu0 %v5581
  %v5583 = vpop.xlane.xlu0 %5582
  %v5584 = vadd.f32 %v5381, %v5383
  %5585 = vadd.xlane.f32.xlu0 %v5584
  %v5586 = vpop.xlane.xlu0 %5585
  %v5587 = vadd.f32 %v5385, %v5387
  %5588 = vadd.xlane.f32.xlu0 %v5587
  %v5589 = vpop.xlane.xlu0 %5588
  %v5590 = vadd.f32 %v5389, %v5391
  %5591 = vadd.xlane.f32.xlu0 %v5590
  %v5592 = vpop.xlane.xlu0 %5591
  %v5593 = vadd.f32 %v5393, %v5395
  %5594 = vadd.xlane.f32.xlu0 %v5593
  %v5595 = vpop.xlane.xlu0 %5594
  %v5596 = vadd.f32 %v5397, %v5399
  %5597 = vadd.xlane.f32.xlu0 %v5596
  %v5598 = vpop.xlane.xlu0 %5597
  %v5599 = vadd.f32 %v5401, %v5403
  %5600 = vadd.xlane.f32.xlu0 %v5599
  %v5601 = vpop.xlane.xlu0 %5600
  %v5602 = vadd.f32 %v5405, %v5407
  %5603 = vadd.xlane.f32.xlu0 %v5602
  %v5604 = vpop.xlane.xlu0 %5603
  %v5605 = vadd.f32 %v5409, %v5411
  %5606 = vadd.xlane.f32.xlu0 %v5605
  %v5607 = vpop.xlane.xlu0 %5606
  %v5608 = vadd.f32 %v5413, %v5415
  %5609 = vadd.xlane.f32.xlu0 %v5608
  %v5610 = vpop.xlane.xlu0 %5609
  %v5611 = vadd.f32 %v5417, %v5419
  %5612 = vadd.xlane.f32.xlu0 %v5611
  %v5613 = vpop.xlane.xlu0 %5612
  %v5614 = vadd.f32 %v5421, %v5423
  %5615 = vadd.xlane.f32.xlu0 %v5614
  %v5616 = vpop.xlane.xlu0 %5615
  %v5617 = vadd.f32 %v5425, %v5427
  %5618 = vadd.xlane.f32.xlu0 %v5617
  %v5619 = vpop.xlane.xlu0 %5618
  %v5620 = vrcp.pop %v5430
  %v5621 = vmul.f32 %v5430, %v5620
  %v5622 = vsub.f32 1.0, %v5621
  %v5623 = vmul.f32 %v5620, %v5622
  %v5624 = vadd.f32 %v5620, %v5623
  %vm5625 = vweird.f32 %v5430
  %vm5626 = vweird.f32 %v5620
  %vm5627 = vmor %vm5625, %vm5626
  %v5628 = vsel %vm5627, %v5620, %v5624
  %v5629 = vand.u32 2147483647, %v5430
  %vm5630 = vcmp.eq.f32.partialorder %v5629, 8.507059e+37
  %v5631 = vand.u32 %v5430, 2147483648
  %v5632 = vor.u32 1.1754944e-38, %v5631
  %v5633 = vsel %vm5630, %v5632, %v5628
  %v5634 = vrcp.pop %v5433
  %v5635 = vmul.f32 %v5433, %v5634
  %v5636 = vsub.f32 1.0, %v5635
  %v5637 = vmul.f32 %v5634, %v5636
  %v5638 = vadd.f32 %v5634, %v5637
  %vm5639 = vweird.f32 %v5433
  %vm5640 = vweird.f32 %v5634
  %vm5641 = vmor %vm5639, %vm5640
  %v5642 = vsel %vm5641, %v5634, %v5638
  %v5643 = vand.u32 2147483647, %v5433
  %vm5644 = vcmp.eq.f32.partialorder %v5643, 8.507059e+37
  %v5645 = vand.u32 %v5433, 2147483648
  %v5646 = vor.u32 1.1754944e-38, %v5645
  %v5647 = vsel %vm5644, %v5646, %v5642
  %v5648 = vrcp.pop %v5436
  %v5649 = vmul.f32 %v5436, %v5648
  %v5650 = vsub.f32 1.0, %v5649
  %v5651 = vmul.f32 %v5648, %v5650
  %v5652 = vadd.f32 %v5648, %v5651
  %vm5653 = vweird.f32 %v5436
  %vm5654 = vweird.f32 %v5648
  %vm5655 = vmor %vm5653, %vm5654
  %v5656 = vsel %vm5655, %v5648, %v5652
  %v5657 = vand.u32 2147483647, %v5436
  %vm5658 = vcmp.eq.f32.partialorder %v5657, 8.507059e+37
  %v5659 = vand.u32 %v5436, 2147483648
  %v5660 = vor.u32 1.1754944e-38, %v5659
  %v5661 = vsel %vm5658, %v5660, %v5656
  %v5662 = vrcp.pop %v5439
  %v5663 = vmul.f32 %v5439, %v5662
  %v5664 = vsub.f32 1.0, %v5663
  %v5665 = vmul.f32 %v5662, %v5664
  %v5666 = vadd.f32 %v5662, %v5665
  %vm5667 = vweird.f32 %v5439
  %vm5668 = vweird.f32 %v5662
  %vm5669 = vmor %vm5667, %vm5668
  %v5670 = vsel %vm5669, %v5662, %v5666
  %v5671 = vand.u32 2147483647, %v5439
  %vm5672 = vcmp.eq.f32.partialorder %v5671, 8.507059e+37
  %v5673 = vand.u32 %v5439, 2147483648
  %v5674 = vor.u32 1.1754944e-38, %v5673
  %v5675 = vsel %vm5672, %v5674, %v5670
  %v5676 = vrcp.pop %v5442
  %v5677 = vmul.f32 %v5442, %v5676
  %v5678 = vsub.f32 1.0, %v5677
  %v5679 = vmul.f32 %v5676, %v5678
  %v5680 = vadd.f32 %v5676, %v5679
  %vm5681 = vweird.f32 %v5442
  %vm5682 = vweird.f32 %v5676
  %vm5683 = vmor %vm5681, %vm5682
  %v5684 = vsel %vm5683, %v5676, %v5680
  %v5685 = vand.u32 2147483647, %v5442
  %vm5686 = vcmp.eq.f32.partialorder %v5685, 8.507059e+37
  %v5687 = vand.u32 %v5442, 2147483648
  %v5688 = vor.u32 1.1754944e-38, %v5687
  %v5689 = vsel %vm5686, %v5688, %v5684
  %v5690 = vrcp.pop %v5445
  %v5691 = vmul.f32 %v5445, %v5690
  %v5692 = vsub.f32 1.0, %v5691
  %v5693 = vmul.f32 %v5690, %v5692
  %v5694 = vadd.f32 %v5690, %v5693
  %vm5695 = vweird.f32 %v5445
  %vm5696 = vweird.f32 %v5690
  %vm5697 = vmor %vm5695, %vm5696
  %v5698 = vsel %vm5697, %v5690, %v5694
  %v5699 = vand.u32 2147483647, %v5445
  %vm5700 = vcmp.eq.f32.partialorder %v5699, 8.507059e+37
  %v5701 = vand.u32 %v5445, 2147483648
  %v5702 = vor.u32 1.1754944e-38, %v5701
  %v5703 = vsel %vm5700, %v5702, %v5698
  %v5704 = vrcp.pop %v5448
  %v5705 = vmul.f32 %v5448, %v5704
  %v5706 = vsub.f32 1.0, %v5705
  %v5707 = vmul.f32 %v5704, %v5706
  %v5708 = vadd.f32 %v5704, %v5707
  %vm5709 = vweird.f32 %v5448
  %vm5710 = vweird.f32 %v5704
  %vm5711 = vmor %vm5709, %vm5710
  %v5712 = vsel %vm5711, %v5704, %v5708
  %v5713 = vand.u32 2147483647, %v5448
  %vm5714 = vcmp.eq.f32.partialorder %v5713, 8.507059e+37
  %v5715 = vand.u32 %v5448, 2147483648
  %v5716 = vor.u32 1.1754944e-38, %v5715
  %v5717 = vsel %vm5714, %v5716, %v5712
  %v5718 = vrcp.pop %v5451
  %v5719 = vmul.f32 %v5451, %v5718
  %v5720 = vsub.f32 1.0, %v5719
  %v5721 = vmul.f32 %v5718, %v5720
  %v5722 = vadd.f32 %v5718, %v5721
  %vm5723 = vweird.f32 %v5451
  %vm5724 = vweird.f32 %v5718
  %vm5725 = vmor %vm5723, %vm5724
  %v5726 = vsel %vm5725, %v5718, %v5722
  %v5727 = vand.u32 2147483647, %v5451
  %vm5728 = vcmp.eq.f32.partialorder %v5727, 8.507059e+37
  %v5729 = vand.u32 %v5451, 2147483648
  %v5730 = vor.u32 1.1754944e-38, %v5729
  %v5731 = vsel %vm5728, %v5730, %v5726
  %v5732 = vrcp.pop %v5454
  %v5733 = vmul.f32 %v5454, %v5732
  %v5734 = vsub.f32 1.0, %v5733
  %v5735 = vmul.f32 %v5732, %v5734
  %v5736 = vadd.f32 %v5732, %v5735
  %vm5737 = vweird.f32 %v5454
  %vm5738 = vweird.f32 %v5732
  %vm5739 = vmor %vm5737, %vm5738
  %v5740 = vsel %vm5739, %v5732, %v5736
  %v5741 = vand.u32 2147483647, %v5454
  %vm5742 = vcmp.eq.f32.partialorder %v5741, 8.507059e+37
  %v5743 = vand.u32 %v5454, 2147483648
  %v5744 = vor.u32 1.1754944e-38, %v5743
  %v5745 = vsel %vm5742, %v5744, %v5740
  %v5746 = vrcp.pop %v5457
  %v5747 = vmul.f32 %v5457, %v5746
  %v5748 = vsub.f32 1.0, %v5747
  %v5749 = vmul.f32 %v5746, %v5748
  %v5750 = vadd.f32 %v5746, %v5749
  %vm5751 = vweird.f32 %v5457
  %vm5752 = vweird.f32 %v5746
  %vm5753 = vmor %vm5751, %vm5752
  %v5754 = vsel %vm5753, %v5746, %v5750
  %v5755 = vand.u32 2147483647, %v5457
  %vm5756 = vcmp.eq.f32.partialorder %v5755, 8.507059e+37
  %v5757 = vand.u32 %v5457, 2147483648
  %v5758 = vor.u32 1.1754944e-38, %v5757
  %v5759 = vsel %vm5756, %v5758, %v5754
  %v5760 = vrcp.pop %v5460
  %v5761 = vmul.f32 %v5460, %v5760
  %v5762 = vsub.f32 1.0, %v5761
  %v5763 = vmul.f32 %v5760, %v5762
  %v5764 = vadd.f32 %v5760, %v5763
  %vm5765 = vweird.f32 %v5460
  %vm5766 = vweird.f32 %v5760
  %vm5767 = vmor %vm5765, %vm5766
  %v5768 = vsel %vm5767, %v5760, %v5764
  %v5769 = vand.u32 2147483647, %v5460
  %vm5770 = vcmp.eq.f32.partialorder %v5769, 8.507059e+37
  %v5771 = vand.u32 %v5460, 2147483648
  %v5772 = vor.u32 1.1754944e-38, %v5771
  %v5773 = vsel %vm5770, %v5772, %v5768
  %v5774 = vrcp.pop %v5463
  %v5775 = vmul.f32 %v5463, %v5774
  %v5776 = vsub.f32 1.0, %v5775
  %v5777 = vmul.f32 %v5774, %v5776
  %v5778 = vadd.f32 %v5774, %v5777
  %vm5779 = vweird.f32 %v5463
  %vm5780 = vweird.f32 %v5774
  %vm5781 = vmor %vm5779, %vm5780
  %v5782 = vsel %vm5781, %v5774, %v5778
  %v5783 = vand.u32 2147483647, %v5463
  %vm5784 = vcmp.eq.f32.partialorder %v5783, 8.507059e+37
  %v5785 = vand.u32 %v5463, 2147483648
  %v5786 = vor.u32 1.1754944e-38, %v5785
  %v5787 = vsel %vm5784, %v5786, %v5782
  %v5788 = vrcp.pop %v5466
  %v5789 = vmul.f32 %v5466, %v5788
  %v5790 = vsub.f32 1.0, %v5789
  %v5791 = vmul.f32 %v5788, %v5790
  %v5792 = vadd.f32 %v5788, %v5791
  %vm5793 = vweird.f32 %v5466
  %vm5794 = vweird.f32 %v5788
  %vm5795 = vmor %vm5793, %vm5794
  %v5796 = vsel %vm5795, %v5788, %v5792
  %v5797 = vand.u32 2147483647, %v5466
  %vm5798 = vcmp.eq.f32.partialorder %v5797, 8.507059e+37
  %v5799 = vand.u32 %v5466, 2147483648
  %v5800 = vor.u32 1.1754944e-38, %v5799
  %v5801 = vsel %vm5798, %v5800, %v5796
  %v5802 = vrcp.pop %v5469
  %v5803 = vmul.f32 %v5469, %v5802
  %v5804 = vsub.f32 1.0, %v5803
  %v5805 = vmul.f32 %v5802, %v5804
  %v5806 = vadd.f32 %v5802, %v5805
  %vm5807 = vweird.f32 %v5469
  %vm5808 = vweird.f32 %v5802
  %vm5809 = vmor %vm5807, %vm5808
  %v5810 = vsel %vm5809, %v5802, %v5806
  %v5811 = vand.u32 2147483647, %v5469
  %vm5812 = vcmp.eq.f32.partialorder %v5811, 8.507059e+37
  %v5813 = vand.u32 %v5469, 2147483648
  %v5814 = vor.u32 1.1754944e-38, %v5813
  %v5815 = vsel %vm5812, %v5814, %v5810
  %v5816 = vrcp.pop %v5472
  %v5817 = vmul.f32 %v5472, %v5816
  %v5818 = vsub.f32 1.0, %v5817
  %v5819 = vmul.f32 %v5816, %v5818
  %v5820 = vadd.f32 %v5816, %v5819
  %vm5821 = vweird.f32 %v5472
  %vm5822 = vweird.f32 %v5816
  %vm5823 = vmor %vm5821, %vm5822
  %v5824 = vsel %vm5823, %v5816, %v5820
  %v5825 = vand.u32 2147483647, %v5472
  %vm5826 = vcmp.eq.f32.partialorder %v5825, 8.507059e+37
  %v5827 = vand.u32 %v5472, 2147483648
  %v5828 = vor.u32 1.1754944e-38, %v5827
  %v5829 = vsel %vm5826, %v5828, %v5824
  %v5830 = vrcp.pop %v5475
  %v5831 = vmul.f32 %v5475, %v5830
  %v5832 = vsub.f32 1.0, %v5831
  %v5833 = vmul.f32 %v5830, %v5832
  %v5834 = vadd.f32 %v5830, %v5833
  %vm5835 = vweird.f32 %v5475
  %vm5836 = vweird.f32 %v5830
  %vm5837 = vmor %vm5835, %vm5836
  %v5838 = vsel %vm5837, %v5830, %v5834
  %v5839 = vand.u32 2147483647, %v5475
  %vm5840 = vcmp.eq.f32.partialorder %v5839, 8.507059e+37
  %v5841 = vand.u32 %v5475, 2147483648
  %v5842 = vor.u32 1.1754944e-38, %v5841
  %v5843 = vsel %vm5840, %v5842, %v5838
  %v5844 = vrcp.pop %v5478
  %v5845 = vmul.f32 %v5478, %v5844
  %v5846 = vsub.f32 1.0, %v5845
  %v5847 = vmul.f32 %v5844, %v5846
  %v5848 = vadd.f32 %v5844, %v5847
  %vm5849 = vweird.f32 %v5478
  %vm5850 = vweird.f32 %v5844
  %vm5851 = vmor %vm5849, %vm5850
  %v5852 = vsel %vm5851, %v5844, %v5848
  %v5853 = vand.u32 2147483647, %v5478
  %vm5854 = vcmp.eq.f32.partialorder %v5853, 8.507059e+37
  %v5855 = vand.u32 %v5478, 2147483648
  %v5856 = vor.u32 1.1754944e-38, %v5855
  %v5857 = vsel %vm5854, %v5856, %v5852
  %v5858 = vrcp.pop %v5481
  %v5859 = vmul.f32 %v5481, %v5858
  %v5860 = vsub.f32 1.0, %v5859
  %v5861 = vmul.f32 %v5858, %v5860
  %v5862 = vadd.f32 %v5858, %v5861
  %vm5863 = vweird.f32 %v5481
  %vm5864 = vweird.f32 %v5858
  %vm5865 = vmor %vm5863, %vm5864
  %v5866 = vsel %vm5865, %v5858, %v5862
  %v5867 = vand.u32 2147483647, %v5481
  %vm5868 = vcmp.eq.f32.partialorder %v5867, 8.507059e+37
  %v5869 = vand.u32 %v5481, 2147483648
  %v5870 = vor.u32 1.1754944e-38, %v5869
  %v5871 = vsel %vm5868, %v5870, %v5866
  %v5872 = vrcp.pop %v5484
  %v5873 = vmul.f32 %v5484, %v5872
  %v5874 = vsub.f32 1.0, %v5873
  %v5875 = vmul.f32 %v5872, %v5874
  %v5876 = vadd.f32 %v5872, %v5875
  %vm5877 = vweird.f32 %v5484
  %vm5878 = vweird.f32 %v5872
  %vm5879 = vmor %vm5877, %vm5878
  %v5880 = vsel %vm5879, %v5872, %v5876
  %v5881 = vand.u32 2147483647, %v5484
  %vm5882 = vcmp.eq.f32.partialorder %v5881, 8.507059e+37
  %v5883 = vand.u32 %v5484, 2147483648
  %v5884 = vor.u32 1.1754944e-38, %v5883
  %v5885 = vsel %vm5882, %v5884, %v5880
  %v5886 = vrcp.pop %v5487
  %v5887 = vmul.f32 %v5487, %v5886
  %v5888 = vsub.f32 1.0, %v5887
  %v5889 = vmul.f32 %v5886, %v5888
  %v5890 = vadd.f32 %v5886, %v5889
  %vm5891 = vweird.f32 %v5487
  %vm5892 = vweird.f32 %v5886
  %vm5893 = vmor %vm5891, %vm5892
  %v5894 = vsel %vm5893, %v5886, %v5890
  %v5895 = vand.u32 2147483647, %v5487
  %vm5896 = vcmp.eq.f32.partialorder %v5895, 8.507059e+37
  %v5897 = vand.u32 %v5487, 2147483648
  %v5898 = vor.u32 1.1754944e-38, %v5897
  %v5899 = vsel %vm5896, %v5898, %v5894
  %v5900 = vrcp.pop %v5490
  %v5901 = vmul.f32 %v5490, %v5900
  %v5902 = vsub.f32 1.0, %v5901
  %v5903 = vmul.f32 %v5900, %v5902
  %v5904 = vadd.f32 %v5900, %v5903
  %vm5905 = vweird.f32 %v5490
  %vm5906 = vweird.f32 %v5900
  %vm5907 = vmor %vm5905, %vm5906
  %v5908 = vsel %vm5907, %v5900, %v5904
  %v5909 = vand.u32 2147483647, %v5490
  %vm5910 = vcmp.eq.f32.partialorder %v5909, 8.507059e+37
  %v5911 = vand.u32 %v5490, 2147483648
  %v5912 = vor.u32 1.1754944e-38, %v5911
  %v5913 = vsel %vm5910, %v5912, %v5908
  %v5914 = vrcp.pop %v5493
  %v5915 = vmul.f32 %v5493, %v5914
  %v5916 = vsub.f32 1.0, %v5915
  %v5917 = vmul.f32 %v5914, %v5916
  %v5918 = vadd.f32 %v5914, %v5917
  %vm5919 = vweird.f32 %v5493
  %vm5920 = vweird.f32 %v5914
  %vm5921 = vmor %vm5919, %vm5920
  %v5922 = vsel %vm5921, %v5914, %v5918
  %v5923 = vand.u32 2147483647, %v5493
  %vm5924 = vcmp.eq.f32.partialorder %v5923, 8.507059e+37
  %v5925 = vand.u32 %v5493, 2147483648
  %v5926 = vor.u32 1.1754944e-38, %v5925
  %v5927 = vsel %vm5924, %v5926, %v5922
  %v5928 = vrcp.pop %v5496
  %v5929 = vmul.f32 %v5496, %v5928
  %v5930 = vsub.f32 1.0, %v5929
  %v5931 = vmul.f32 %v5928, %v5930
  %v5932 = vadd.f32 %v5928, %v5931
  %vm5933 = vweird.f32 %v5496
  %vm5934 = vweird.f32 %v5928
  %vm5935 = vmor %vm5933, %vm5934
  %v5936 = vsel %vm5935, %v5928, %v5932
  %v5937 = vand.u32 2147483647, %v5496
  %vm5938 = vcmp.eq.f32.partialorder %v5937, 8.507059e+37
  %v5939 = vand.u32 %v5496, 2147483648
  %v5940 = vor.u32 1.1754944e-38, %v5939
  %v5941 = vsel %vm5938, %v5940, %v5936
  %v5942 = vrcp.pop %v5499
  %v5943 = vmul.f32 %v5499, %v5942
  %v5944 = vsub.f32 1.0, %v5943
  %v5945 = vmul.f32 %v5942, %v5944
  %v5946 = vadd.f32 %v5942, %v5945
  %vm5947 = vweird.f32 %v5499
  %vm5948 = vweird.f32 %v5942
  %vm5949 = vmor %vm5947, %vm5948
  %v5950 = vsel %vm5949, %v5942, %v5946
  %v5951 = vand.u32 2147483647, %v5499
  %vm5952 = vcmp.eq.f32.partialorder %v5951, 8.507059e+37
  %v5953 = vand.u32 %v5499, 2147483648
  %v5954 = vor.u32 1.1754944e-38, %v5953
  %v5955 = vsel %vm5952, %v5954, %v5950
  %v5956 = vrcp.pop %v5502
  %v5957 = vmul.f32 %v5502, %v5956
  %v5958 = vsub.f32 1.0, %v5957
  %v5959 = vmul.f32 %v5956, %v5958
  %v5960 = vadd.f32 %v5956, %v5959
  %vm5961 = vweird.f32 %v5502
  %vm5962 = vweird.f32 %v5956
  %vm5963 = vmor %vm5961, %vm5962
  %v5964 = vsel %vm5963, %v5956, %v5960
  %v5965 = vand.u32 2147483647, %v5502
  %vm5966 = vcmp.eq.f32.partialorder %v5965, 8.507059e+37
  %v5967 = vand.u32 %v5502, 2147483648
  %v5968 = vor.u32 1.1754944e-38, %v5967
  %v5969 = vsel %vm5966, %v5968, %v5964
  %v5970 = vrcp.pop %v5505
  %v5971 = vmul.f32 %v5505, %v5970
  %v5972 = vsub.f32 1.0, %v5971
  %v5973 = vmul.f32 %v5970, %v5972
  %v5974 = vadd.f32 %v5970, %v5973
  %vm5975 = vweird.f32 %v5505
  %vm5976 = vweird.f32 %v5970
  %vm5977 = vmor %vm5975, %vm5976
  %v5978 = vsel %vm5977, %v5970, %v5974
  %v5979 = vand.u32 2147483647, %v5505
  %vm5980 = vcmp.eq.f32.partialorder %v5979, 8.507059e+37
  %v5981 = vand.u32 %v5505, 2147483648
  %v5982 = vor.u32 1.1754944e-38, %v5981
  %v5983 = vsel %vm5980, %v5982, %v5978
  %v5984 = vrcp.pop %v5508
  %v5985 = vmul.f32 %v5508, %v5984
  %v5986 = vsub.f32 1.0, %v5985
  %v5987 = vmul.f32 %v5984, %v5986
  %v5988 = vadd.f32 %v5984, %v5987
  %vm5989 = vweird.f32 %v5508
  %vm5990 = vweird.f32 %v5984
  %vm5991 = vmor %vm5989, %vm5990
  %v5992 = vsel %vm5991, %v5984, %v5988
  %v5993 = vand.u32 2147483647, %v5508
  %vm5994 = vcmp.eq.f32.partialorder %v5993, 8.507059e+37
  %v5995 = vand.u32 %v5508, 2147483648
  %v5996 = vor.u32 1.1754944e-38, %v5995
  %v5997 = vsel %vm5994, %v5996, %v5992
  %v5998 = vrcp.pop %v5511
  %v5999 = vmul.f32 %v5511, %v5998
  %v6000 = vsub.f32 1.0, %v5999
  %v6001 = vmul.f32 %v5998, %v6000
  %v6002 = vadd.f32 %v5998, %v6001
  %vm6003 = vweird.f32 %v5511
  %vm6004 = vweird.f32 %v5998
  %vm6005 = vmor %vm6003, %vm6004
  %v6006 = vsel %vm6005, %v5998, %v6002
  %v6007 = vand.u32 2147483647, %v5511
  %vm6008 = vcmp.eq.f32.partialorder %v6007, 8.507059e+37
  %v6009 = vand.u32 %v5511, 2147483648
  %v6010 = vor.u32 1.1754944e-38, %v6009
  %v6011 = vsel %vm6008, %v6010, %v6006
  %v6012 = vrcp.pop %v5514
  %v6013 = vmul.f32 %v5514, %v6012
  %v6014 = vsub.f32 1.0, %v6013
  %v6015 = vmul.f32 %v6012, %v6014
  %v6016 = vadd.f32 %v6012, %v6015
  %vm6017 = vweird.f32 %v5514
  %vm6018 = vweird.f32 %v6012
  %vm6019 = vmor %vm6017, %vm6018
  %v6020 = vsel %vm6019, %v6012, %v6016
  %v6021 = vand.u32 2147483647, %v5514
  %vm6022 = vcmp.eq.f32.partialorder %v6021, 8.507059e+37
  %v6023 = vand.u32 %v5514, 2147483648
  %v6024 = vor.u32 1.1754944e-38, %v6023
  %v6025 = vsel %vm6022, %v6024, %v6020
  %v6026 = vrcp.pop %v5517
  %v6027 = vmul.f32 %v5517, %v6026
  %v6028 = vsub.f32 1.0, %v6027
  %v6029 = vmul.f32 %v6026, %v6028
  %v6030 = vadd.f32 %v6026, %v6029
  %vm6031 = vweird.f32 %v5517
  %vm6032 = vweird.f32 %v6026
  %vm6033 = vmor %vm6031, %vm6032
  %v6034 = vsel %vm6033, %v6026, %v6030
  %v6035 = vand.u32 2147483647, %v5517
  %vm6036 = vcmp.eq.f32.partialorder %v6035, 8.507059e+37
  %v6037 = vand.u32 %v5517, 2147483648
  %v6038 = vor.u32 1.1754944e-38, %v6037
  %v6039 = vsel %vm6036, %v6038, %v6034
  %v6040 = vrcp.pop %v5520
  %v6041 = vmul.f32 %v5520, %v6040
  %v6042 = vsub.f32 1.0, %v6041
  %v6043 = vmul.f32 %v6040, %v6042
  %v6044 = vadd.f32 %v6040, %v6043
  %vm6045 = vweird.f32 %v5520
  %vm6046 = vweird.f32 %v6040
  %vm6047 = vmor %vm6045, %vm6046
  %v6048 = vsel %vm6047, %v6040, %v6044
  %v6049 = vand.u32 2147483647, %v5520
  %vm6050 = vcmp.eq.f32.partialorder %v6049, 8.507059e+37
  %v6051 = vand.u32 %v5520, 2147483648
  %v6052 = vor.u32 1.1754944e-38, %v6051
  %v6053 = vsel %vm6050, %v6052, %v6048
  %v6054 = vrcp.pop %v5523
  %v6055 = vmul.f32 %v5523, %v6054
  %v6056 = vsub.f32 1.0, %v6055
  %v6057 = vmul.f32 %v6054, %v6056
  %v6058 = vadd.f32 %v6054, %v6057
  %vm6059 = vweird.f32 %v5523
  %vm6060 = vweird.f32 %v6054
  %vm6061 = vmor %vm6059, %vm6060
  %v6062 = vsel %vm6061, %v6054, %v6058
  %v6063 = vand.u32 2147483647, %v5523
  %vm6064 = vcmp.eq.f32.partialorder %v6063, 8.507059e+37
  %v6065 = vand.u32 %v5523, 2147483648
  %v6066 = vor.u32 1.1754944e-38, %v6065
  %v6067 = vsel %vm6064, %v6066, %v6062
  %v6068 = vrcp.pop %v5526
  %v6069 = vmul.f32 %v5526, %v6068
  %v6070 = vsub.f32 1.0, %v6069
  %v6071 = vmul.f32 %v6068, %v6070
  %v6072 = vadd.f32 %v6068, %v6071
  %vm6073 = vweird.f32 %v5526
  %vm6074 = vweird.f32 %v6068
  %vm6075 = vmor %vm6073, %vm6074
  %v6076 = vsel %vm6075, %v6068, %v6072
  %v6077 = vand.u32 2147483647, %v5526
  %vm6078 = vcmp.eq.f32.partialorder %v6077, 8.507059e+37
  %v6079 = vand.u32 %v5526, 2147483648
  %v6080 = vor.u32 1.1754944e-38, %v6079
  %v6081 = vsel %vm6078, %v6080, %v6076
  %v6082 = vrcp.pop %v5529
  %v6083 = vmul.f32 %v5529, %v6082
  %v6084 = vsub.f32 1.0, %v6083
  %v6085 = vmul.f32 %v6082, %v6084
  %v6086 = vadd.f32 %v6082, %v6085
  %vm6087 = vweird.f32 %v5529
  %vm6088 = vweird.f32 %v6082
  %vm6089 = vmor %vm6087, %vm6088
  %v6090 = vsel %vm6089, %v6082, %v6086
  %v6091 = vand.u32 2147483647, %v5529
  %vm6092 = vcmp.eq.f32.partialorder %v6091, 8.507059e+37
  %v6093 = vand.u32 %v5529, 2147483648
  %v6094 = vor.u32 1.1754944e-38, %v6093
  %v6095 = vsel %vm6092, %v6094, %v6090
  %v6096 = vrcp.pop %v5532
  %v6097 = vmul.f32 %v5532, %v6096
  %v6098 = vsub.f32 1.0, %v6097
  %v6099 = vmul.f32 %v6096, %v6098
  %v6100 = vadd.f32 %v6096, %v6099
  %vm6101 = vweird.f32 %v5532
  %vm6102 = vweird.f32 %v6096
  %vm6103 = vmor %vm6101, %vm6102
  %v6104 = vsel %vm6103, %v6096, %v6100
  %v6105 = vand.u32 2147483647, %v5532
  %vm6106 = vcmp.eq.f32.partialorder %v6105, 8.507059e+37
  %v6107 = vand.u32 %v5532, 2147483648
  %v6108 = vor.u32 1.1754944e-38, %v6107
  %v6109 = vsel %vm6106, %v6108, %v6104
  %v6110 = vrcp.pop %v5535
  %v6111 = vmul.f32 %v5535, %v6110
  %v6112 = vsub.f32 1.0, %v6111
  %v6113 = vmul.f32 %v6110, %v6112
  %v6114 = vadd.f32 %v6110, %v6113
  %vm6115 = vweird.f32 %v5535
  %vm6116 = vweird.f32 %v6110
  %vm6117 = vmor %vm6115, %vm6116
  %v6118 = vsel %vm6117, %v6110, %v6114
  %v6119 = vand.u32 2147483647, %v5535
  %vm6120 = vcmp.eq.f32.partialorder %v6119, 8.507059e+37
  %v6121 = vand.u32 %v5535, 2147483648
  %v6122 = vor.u32 1.1754944e-38, %v6121
  %v6123 = vsel %vm6120, %v6122, %v6118
  %v6124 = vrcp.pop %v5538
  %v6125 = vmul.f32 %v5538, %v6124
  %v6126 = vsub.f32 1.0, %v6125
  %v6127 = vmul.f32 %v6124, %v6126
  %v6128 = vadd.f32 %v6124, %v6127
  %vm6129 = vweird.f32 %v5538
  %vm6130 = vweird.f32 %v6124
  %vm6131 = vmor %vm6129, %vm6130
  %v6132 = vsel %vm6131, %v6124, %v6128
  %v6133 = vand.u32 2147483647, %v5538
  %vm6134 = vcmp.eq.f32.partialorder %v6133, 8.507059e+37
  %v6135 = vand.u32 %v5538, 2147483648
  %v6136 = vor.u32 1.1754944e-38, %v6135
  %v6137 = vsel %vm6134, %v6136, %v6132
  %v6138 = vrcp.pop %v5541
  %v6139 = vmul.f32 %v5541, %v6138
  %v6140 = vsub.f32 1.0, %v6139
  %v6141 = vmul.f32 %v6138, %v6140
  %v6142 = vadd.f32 %v6138, %v6141
  %vm6143 = vweird.f32 %v5541
  %vm6144 = vweird.f32 %v6138
  %vm6145 = vmor %vm6143, %vm6144
  %v6146 = vsel %vm6145, %v6138, %v6142
  %v6147 = vand.u32 2147483647, %v5541
  %vm6148 = vcmp.eq.f32.partialorder %v6147, 8.507059e+37
  %v6149 = vand.u32 %v5541, 2147483648
  %v6150 = vor.u32 1.1754944e-38, %v6149
  %v6151 = vsel %vm6148, %v6150, %v6146
  %v6152 = vrcp.pop %v5544
  %v6153 = vmul.f32 %v5544, %v6152
  %v6154 = vsub.f32 1.0, %v6153
  %v6155 = vmul.f32 %v6152, %v6154
  %v6156 = vadd.f32 %v6152, %v6155
  %vm6157 = vweird.f32 %v5544
  %vm6158 = vweird.f32 %v6152
  %vm6159 = vmor %vm6157, %vm6158
  %v6160 = vsel %vm6159, %v6152, %v6156
  %v6161 = vand.u32 2147483647, %v5544
  %vm6162 = vcmp.eq.f32.partialorder %v6161, 8.507059e+37
  %v6163 = vand.u32 %v5544, 2147483648
  %v6164 = vor.u32 1.1754944e-38, %v6163
  %v6165 = vsel %vm6162, %v6164, %v6160
  %v6166 = vrcp.pop %v5547
  %v6167 = vmul.f32 %v5547, %v6166
  %v6168 = vsub.f32 1.0, %v6167
  %v6169 = vmul.f32 %v6166, %v6168
  %v6170 = vadd.f32 %v6166, %v6169
  %vm6171 = vweird.f32 %v5547
  %vm6172 = vweird.f32 %v6166
  %vm6173 = vmor %vm6171, %vm6172
  %v6174 = vsel %vm6173, %v6166, %v6170
  %v6175 = vand.u32 2147483647, %v5547
  %vm6176 = vcmp.eq.f32.partialorder %v6175, 8.507059e+37
  %v6177 = vand.u32 %v5547, 2147483648
  %v6178 = vor.u32 1.1754944e-38, %v6177
  %v6179 = vsel %vm6176, %v6178, %v6174
  %v6180 = vrcp.pop %v5550
  %v6181 = vmul.f32 %v5550, %v6180
  %v6182 = vsub.f32 1.0, %v6181
  %v6183 = vmul.f32 %v6180, %v6182
  %v6184 = vadd.f32 %v6180, %v6183
  %vm6185 = vweird.f32 %v5550
  %vm6186 = vweird.f32 %v6180
  %vm6187 = vmor %vm6185, %vm6186
  %v6188 = vsel %vm6187, %v6180, %v6184
  %v6189 = vand.u32 2147483647, %v5550
  %vm6190 = vcmp.eq.f32.partialorder %v6189, 8.507059e+37
  %v6191 = vand.u32 %v5550, 2147483648
  %v6192 = vor.u32 1.1754944e-38, %v6191
  %v6193 = vsel %vm6190, %v6192, %v6188
  %v6194 = vrcp.pop %v5553
  %v6195 = vmul.f32 %v5553, %v6194
  %v6196 = vsub.f32 1.0, %v6195
  %v6197 = vmul.f32 %v6194, %v6196
  %v6198 = vadd.f32 %v6194, %v6197
  %vm6199 = vweird.f32 %v5553
  %vm6200 = vweird.f32 %v6194
  %vm6201 = vmor %vm6199, %vm6200
  %v6202 = vsel %vm6201, %v6194, %v6198
  %v6203 = vand.u32 2147483647, %v5553
  %vm6204 = vcmp.eq.f32.partialorder %v6203, 8.507059e+37
  %v6205 = vand.u32 %v5553, 2147483648
  %v6206 = vor.u32 1.1754944e-38, %v6205
  %v6207 = vsel %vm6204, %v6206, %v6202
  %v6208 = vrcp.pop %v5556
  %v6209 = vmul.f32 %v5556, %v6208
  %v6210 = vsub.f32 1.0, %v6209
  %v6211 = vmul.f32 %v6208, %v6210
  %v6212 = vadd.f32 %v6208, %v6211
  %vm6213 = vweird.f32 %v5556
  %vm6214 = vweird.f32 %v6208
  %vm6215 = vmor %vm6213, %vm6214
  %v6216 = vsel %vm6215, %v6208, %v6212
  %v6217 = vand.u32 2147483647, %v5556
  %vm6218 = vcmp.eq.f32.partialorder %v6217, 8.507059e+37
  %v6219 = vand.u32 %v5556, 2147483648
  %v6220 = vor.u32 1.1754944e-38, %v6219
  %v6221 = vsel %vm6218, %v6220, %v6216
  %v6222 = vrcp.pop %v5559
  %v6223 = vmul.f32 %v5559, %v6222
  %v6224 = vsub.f32 1.0, %v6223
  %v6225 = vmul.f32 %v6222, %v6224
  %v6226 = vadd.f32 %v6222, %v6225
  %vm6227 = vweird.f32 %v5559
  %vm6228 = vweird.f32 %v6222
  %vm6229 = vmor %vm6227, %vm6228
  %v6230 = vsel %vm6229, %v6222, %v6226
  %v6231 = vand.u32 2147483647, %v5559
  %vm6232 = vcmp.eq.f32.partialorder %v6231, 8.507059e+37
  %v6233 = vand.u32 %v5559, 2147483648
  %v6234 = vor.u32 1.1754944e-38, %v6233
  %v6235 = vsel %vm6232, %v6234, %v6230
  %v6236 = vrcp.pop %v5562
  %v6237 = vmul.f32 %v5562, %v6236
  %v6238 = vsub.f32 1.0, %v6237
  %v6239 = vmul.f32 %v6236, %v6238
  %v6240 = vadd.f32 %v6236, %v6239
  %vm6241 = vweird.f32 %v5562
  %vm6242 = vweird.f32 %v6236
  %vm6243 = vmor %vm6241, %vm6242
  %v6244 = vsel %vm6243, %v6236, %v6240
  %v6245 = vand.u32 2147483647, %v5562
  %vm6246 = vcmp.eq.f32.partialorder %v6245, 8.507059e+37
  %v6247 = vand.u32 %v5562, 2147483648
  %v6248 = vor.u32 1.1754944e-38, %v6247
  %v6249 = vsel %vm6246, %v6248, %v6244
  %v6250 = vrcp.pop %v5565
  %v6251 = vmul.f32 %v5565, %v6250
  %v6252 = vsub.f32 1.0, %v6251
  %v6253 = vmul.f32 %v6250, %v6252
  %v6254 = vadd.f32 %v6250, %v6253
  %vm6255 = vweird.f32 %v5565
  %vm6256 = vweird.f32 %v6250
  %vm6257 = vmor %vm6255, %vm6256
  %v6258 = vsel %vm6257, %v6250, %v6254
  %v6259 = vand.u32 2147483647, %v5565
  %vm6260 = vcmp.eq.f32.partialorder %v6259, 8.507059e+37
  %v6261 = vand.u32 %v5565, 2147483648
  %v6262 = vor.u32 1.1754944e-38, %v6261
  %v6263 = vsel %vm6260, %v6262, %v6258
  %v6264 = vrcp.pop %v5568
  %v6265 = vmul.f32 %v5568, %v6264
  %v6266 = vsub.f32 1.0, %v6265
  %v6267 = vmul.f32 %v6264, %v6266
  %v6268 = vadd.f32 %v6264, %v6267
  %vm6269 = vweird.f32 %v5568
  %vm6270 = vweird.f32 %v6264
  %vm6271 = vmor %vm6269, %vm6270
  %v6272 = vsel %vm6271, %v6264, %v6268
  %v6273 = vand.u32 2147483647, %v5568
  %vm6274 = vcmp.eq.f32.partialorder %v6273, 8.507059e+37
  %v6275 = vand.u32 %v5568, 2147483648
  %v6276 = vor.u32 1.1754944e-38, %v6275
  %v6277 = vsel %vm6274, %v6276, %v6272
  %v6278 = vrcp.pop %v5571
  %v6279 = vmul.f32 %v5571, %v6278
  %v6280 = vsub.f32 1.0, %v6279
  %v6281 = vmul.f32 %v6278, %v6280
  %v6282 = vadd.f32 %v6278, %v6281
  %vm6283 = vweird.f32 %v5571
  %vm6284 = vweird.f32 %v6278
  %vm6285 = vmor %vm6283, %vm6284
  %v6286 = vsel %vm6285, %v6278, %v6282
  %v6287 = vand.u32 2147483647, %v5571
  %vm6288 = vcmp.eq.f32.partialorder %v6287, 8.507059e+37
  %v6289 = vand.u32 %v5571, 2147483648
  %v6290 = vor.u32 1.1754944e-38, %v6289
  %v6291 = vsel %vm6288, %v6290, %v6286
  %v6292 = vrcp.pop %v5574
  %v6293 = vmul.f32 %v5574, %v6292
  %v6294 = vsub.f32 1.0, %v6293
  %v6295 = vmul.f32 %v6292, %v6294
  %v6296 = vadd.f32 %v6292, %v6295
  %vm6297 = vweird.f32 %v5574
  %vm6298 = vweird.f32 %v6292
  %vm6299 = vmor %vm6297, %vm6298
  %v6300 = vsel %vm6299, %v6292, %v6296
  %v6301 = vand.u32 2147483647, %v5574
  %vm6302 = vcmp.eq.f32.partialorder %v6301, 8.507059e+37
  %v6303 = vand.u32 %v5574, 2147483648
  %v6304 = vor.u32 1.1754944e-38, %v6303
  %v6305 = vsel %vm6302, %v6304, %v6300
  %v6306 = vrcp.pop %v5577
  %v6307 = vmul.f32 %v5577, %v6306
  %v6308 = vsub.f32 1.0, %v6307
  %v6309 = vmul.f32 %v6306, %v6308
  %v6310 = vadd.f32 %v6306, %v6309
  %vm6311 = vweird.f32 %v5577
  %vm6312 = vweird.f32 %v6306
  %vm6313 = vmor %vm6311, %vm6312
  %v6314 = vsel %vm6313, %v6306, %v6310
  %v6315 = vand.u32 2147483647, %v5577
  %vm6316 = vcmp.eq.f32.partialorder %v6315, 8.507059e+37
  %v6317 = vand.u32 %v5577, 2147483648
  %v6318 = vor.u32 1.1754944e-38, %v6317
  %v6319 = vsel %vm6316, %v6318, %v6314
  %v6320 = vrcp.pop %v5580
  %v6321 = vmul.f32 %v5580, %v6320
  %v6322 = vsub.f32 1.0, %v6321
  %v6323 = vmul.f32 %v6320, %v6322
  %v6324 = vadd.f32 %v6320, %v6323
  %vm6325 = vweird.f32 %v5580
  %vm6326 = vweird.f32 %v6320
  %vm6327 = vmor %vm6325, %vm6326
  %v6328 = vsel %vm6327, %v6320, %v6324
  %v6329 = vand.u32 2147483647, %v5580
  %vm6330 = vcmp.eq.f32.partialorder %v6329, 8.507059e+37
  %v6331 = vand.u32 %v5580, 2147483648
  %v6332 = vor.u32 1.1754944e-38, %v6331
  %v6333 = vsel %vm6330, %v6332, %v6328
  %v6334 = vrcp.pop %v5583
  %v6335 = vmul.f32 %v5583, %v6334
  %v6336 = vsub.f32 1.0, %v6335
  %v6337 = vmul.f32 %v6334, %v6336
  %v6338 = vadd.f32 %v6334, %v6337
  %vm6339 = vweird.f32 %v5583
  %vm6340 = vweird.f32 %v6334
  %vm6341 = vmor %vm6339, %vm6340
  %v6342 = vsel %vm6341, %v6334, %v6338
  %v6343 = vand.u32 2147483647, %v5583
  %vm6344 = vcmp.eq.f32.partialorder %v6343, 8.507059e+37
  %v6345 = vand.u32 %v5583, 2147483648
  %v6346 = vor.u32 1.1754944e-38, %v6345
  %v6347 = vsel %vm6344, %v6346, %v6342
  %v6348 = vrcp.pop %v5586
  %v6349 = vmul.f32 %v5586, %v6348
  %v6350 = vsub.f32 1.0, %v6349
  %v6351 = vmul.f32 %v6348, %v6350
  %v6352 = vadd.f32 %v6348, %v6351
  %vm6353 = vweird.f32 %v5586
  %vm6354 = vweird.f32 %v6348
  %vm6355 = vmor %vm6353, %vm6354
  %v6356 = vsel %vm6355, %v6348, %v6352
  %v6357 = vand.u32 2147483647, %v5586
  %vm6358 = vcmp.eq.f32.partialorder %v6357, 8.507059e+37
  %v6359 = vand.u32 %v5586, 2147483648
  %v6360 = vor.u32 1.1754944e-38, %v6359
  %v6361 = vsel %vm6358, %v6360, %v6356
  %v6362 = vrcp.pop %v5589
  %v6363 = vmul.f32 %v5589, %v6362
  %v6364 = vsub.f32 1.0, %v6363
  %v6365 = vmul.f32 %v6362, %v6364
  %v6366 = vadd.f32 %v6362, %v6365
  %vm6367 = vweird.f32 %v5589
  %vm6368 = vweird.f32 %v6362
  %vm6369 = vmor %vm6367, %vm6368
  %v6370 = vsel %vm6369, %v6362, %v6366
  %v6371 = vand.u32 2147483647, %v5589
  %vm6372 = vcmp.eq.f32.partialorder %v6371, 8.507059e+37
  %v6373 = vand.u32 %v5589, 2147483648
  %v6374 = vor.u32 1.1754944e-38, %v6373
  %v6375 = vsel %vm6372, %v6374, %v6370
  %v6376 = vrcp.pop %v5592
  %v6377 = vmul.f32 %v5592, %v6376
  %v6378 = vsub.f32 1.0, %v6377
  %v6379 = vmul.f32 %v6376, %v6378
  %v6380 = vadd.f32 %v6376, %v6379
  %vm6381 = vweird.f32 %v5592
  %vm6382 = vweird.f32 %v6376
  %vm6383 = vmor %vm6381, %vm6382
  %v6384 = vsel %vm6383, %v6376, %v6380
  %v6385 = vand.u32 2147483647, %v5592
  %vm6386 = vcmp.eq.f32.partialorder %v6385, 8.507059e+37
  %v6387 = vand.u32 %v5592, 2147483648
  %v6388 = vor.u32 1.1754944e-38, %v6387
  %v6389 = vsel %vm6386, %v6388, %v6384
  %v6390 = vrcp.pop %v5595
  %v6391 = vmul.f32 %v5595, %v6390
  %v6392 = vsub.f32 1.0, %v6391
  %v6393 = vmul.f32 %v6390, %v6392
  %v6394 = vadd.f32 %v6390, %v6393
  %vm6395 = vweird.f32 %v5595
  %vm6396 = vweird.f32 %v6390
  %vm6397 = vmor %vm6395, %vm6396
  %v6398 = vsel %vm6397, %v6390, %v6394
  %v6399 = vand.u32 2147483647, %v5595
  %vm6400 = vcmp.eq.f32.partialorder %v6399, 8.507059e+37
  %v6401 = vand.u32 %v5595, 2147483648
  %v6402 = vor.u32 1.1754944e-38, %v6401
  %v6403 = vsel %vm6400, %v6402, %v6398
  %v6404 = vrcp.pop %v5598
  %v6405 = vmul.f32 %v5598, %v6404
  %v6406 = vsub.f32 1.0, %v6405
  %v6407 = vmul.f32 %v6404, %v6406
  %v6408 = vadd.f32 %v6404, %v6407
  %vm6409 = vweird.f32 %v5598
  %vm6410 = vweird.f32 %v6404
  %vm6411 = vmor %vm6409, %vm6410
  %v6412 = vsel %vm6411, %v6404, %v6408
  %v6413 = vand.u32 2147483647, %v5598
  %vm6414 = vcmp.eq.f32.partialorder %v6413, 8.507059e+37
  %v6415 = vand.u32 %v5598, 2147483648
  %v6416 = vor.u32 1.1754944e-38, %v6415
  %v6417 = vsel %vm6414, %v6416, %v6412
  %v6418 = vrcp.pop %v5601
  %v6419 = vmul.f32 %v5601, %v6418
  %v6420 = vsub.f32 1.0, %v6419
  %v6421 = vmul.f32 %v6418, %v6420
  %v6422 = vadd.f32 %v6418, %v6421
  %vm6423 = vweird.f32 %v5601
  %vm6424 = vweird.f32 %v6418
  %vm6425 = vmor %vm6423, %vm6424
  %v6426 = vsel %vm6425, %v6418, %v6422
  %v6427 = vand.u32 2147483647, %v5601
  %vm6428 = vcmp.eq.f32.partialorder %v6427, 8.507059e+37
  %v6429 = vand.u32 %v5601, 2147483648
  %v6430 = vor.u32 1.1754944e-38, %v6429
  %v6431 = vsel %vm6428, %v6430, %v6426
  %v6432 = vrcp.pop %v5604
  %v6433 = vmul.f32 %v5604, %v6432
  %v6434 = vsub.f32 1.0, %v6433
  %v6435 = vmul.f32 %v6432, %v6434
  %v6436 = vadd.f32 %v6432, %v6435
  %vm6437 = vweird.f32 %v5604
  %vm6438 = vweird.f32 %v6432
  %vm6439 = vmor %vm6437, %vm6438
  %v6440 = vsel %vm6439, %v6432, %v6436
  %v6441 = vand.u32 2147483647, %v5604
  %vm6442 = vcmp.eq.f32.partialorder %v6441, 8.507059e+37
  %v6443 = vand.u32 %v5604, 2147483648
  %v6444 = vor.u32 1.1754944e-38, %v6443
  %v6445 = vsel %vm6442, %v6444, %v6440
  %v6446 = vrcp.pop %v5607
  %v6447 = vmul.f32 %v5607, %v6446
  %v6448 = vsub.f32 1.0, %v6447
  %v6449 = vmul.f32 %v6446, %v6448
  %v6450 = vadd.f32 %v6446, %v6449
  %vm6451 = vweird.f32 %v5607
  %vm6452 = vweird.f32 %v6446
  %vm6453 = vmor %vm6451, %vm6452
  %v6454 = vsel %vm6453, %v6446, %v6450
  %v6455 = vand.u32 2147483647, %v5607
  %vm6456 = vcmp.eq.f32.partialorder %v6455, 8.507059e+37
  %v6457 = vand.u32 %v5607, 2147483648
  %v6458 = vor.u32 1.1754944e-38, %v6457
  %v6459 = vsel %vm6456, %v6458, %v6454
  %v6460 = vrcp.pop %v5610
  %v6461 = vmul.f32 %v5610, %v6460
  %v6462 = vsub.f32 1.0, %v6461
  %v6463 = vmul.f32 %v6460, %v6462
  %v6464 = vadd.f32 %v6460, %v6463
  %vm6465 = vweird.f32 %v5610
  %vm6466 = vweird.f32 %v6460
  %vm6467 = vmor %vm6465, %vm6466
  %v6468 = vsel %vm6467, %v6460, %v6464
  %v6469 = vand.u32 2147483647, %v5610
  %vm6470 = vcmp.eq.f32.partialorder %v6469, 8.507059e+37
  %v6471 = vand.u32 %v5610, 2147483648
  %v6472 = vor.u32 1.1754944e-38, %v6471
  %v6473 = vsel %vm6470, %v6472, %v6468
  %v6474 = vrcp.pop %v5613
  %v6475 = vmul.f32 %v5613, %v6474
  %v6476 = vsub.f32 1.0, %v6475
  %v6477 = vmul.f32 %v6474, %v6476
  %v6478 = vadd.f32 %v6474, %v6477
  %vm6479 = vweird.f32 %v5613
  %vm6480 = vweird.f32 %v6474
  %vm6481 = vmor %vm6479, %vm6480
  %v6482 = vsel %vm6481, %v6474, %v6478
  %v6483 = vand.u32 2147483647, %v5613
  %vm6484 = vcmp.eq.f32.partialorder %v6483, 8.507059e+37
  %v6485 = vand.u32 %v5613, 2147483648
  %v6486 = vor.u32 1.1754944e-38, %v6485
  %v6487 = vsel %vm6484, %v6486, %v6482
  %v6488 = vrcp.pop %v5616
  %v6489 = vmul.f32 %v5616, %v6488
  %v6490 = vsub.f32 1.0, %v6489
  %v6491 = vmul.f32 %v6488, %v6490
  %v6492 = vadd.f32 %v6488, %v6491
  %vm6493 = vweird.f32 %v5616
  %vm6494 = vweird.f32 %v6488
  %vm6495 = vmor %vm6493, %vm6494
  %v6496 = vsel %vm6495, %v6488, %v6492
  %v6497 = vand.u32 2147483647, %v5616
  %vm6498 = vcmp.eq.f32.partialorder %v6497, 8.507059e+37
  %v6499 = vand.u32 %v5616, 2147483648
  %v6500 = vor.u32 1.1754944e-38, %v6499
  %v6501 = vsel %vm6498, %v6500, %v6496
  %v6502 = vrcp.pop %v5619
  %v6503 = vmul.f32 %v5619, %v6502
  %v6504 = vsub.f32 1.0, %v6503
  %v6505 = vmul.f32 %v6502, %v6504
  %v6506 = vadd.f32 %v6502, %v6505
  %vm6507 = vweird.f32 %v5619
  %vm6508 = vweird.f32 %v6502
  %vm6509 = vmor %vm6507, %vm6508
  %v6510 = vsel %vm6509, %v6502, %v6506
  %v6511 = vand.u32 2147483647, %v5619
  %vm6512 = vcmp.eq.f32.partialorder %v6511, 8.507059e+37
  %v6513 = vand.u32 %v5619, 2147483648
  %v6514 = vor.u32 1.1754944e-38, %v6513
  %v6515 = vsel %vm6512, %v6514, %v6510
  %v6516 = vmul.f32 %v5173, %v5633
  %v6517 = vmul.f32 %v5175, %v5633
  %v6518 = vmul.f32 %v5177, %v5647
  %v6519 = vmul.f32 %v5179, %v5647
  %v6520 = vmul.f32 %v5181, %v5661
  %v6521 = vmul.f32 %v5183, %v5661
  %v6522 = vmul.f32 %v5185, %v5675
  %v6523 = vmul.f32 %v5187, %v5675
  %v6524 = vmul.f32 %v5189, %v5689
  %v6525 = vmul.f32 %v5191, %v5689
  %v6526 = vmul.f32 %v5193, %v5703
  %v6527 = vmul.f32 %v5195, %v5703
  %v6528 = vmul.f32 %v5197, %v5717
  %v6529 = vmul.f32 %v5199, %v5717
  %v6530 = vmul.f32 %v5201, %v5731
  %v6531 = vmul.f32 %v5203, %v5731
  %v6532 = vmul.f32 %v5205, %v5745
  %v6533 = vmul.f32 %v5207, %v5745
  %v6534 = vmul.f32 %v5209, %v5759
  %v6535 = vmul.f32 %v5211, %v5759
  %v6536 = vmul.f32 %v5213, %v5773
  %v6537 = vmul.f32 %v5215, %v5773
  %v6538 = vmul.f32 %v5217, %v5787
  %v6539 = vmul.f32 %v5219, %v5787
  %v6540 = vmul.f32 %v5221, %v5801
  %v6541 = vmul.f32 %v5223, %v5801
  %v6542 = vmul.f32 %v5225, %v5815
  %v6543 = vmul.f32 %v5227, %v5815
  %v6544 = vmul.f32 %v5229, %v5829
  %v6545 = vmul.f32 %v5231, %v5829
  %v6546 = vmul.f32 %v5233, %v5843
  %v6547 = vmul.f32 %v5235, %v5843
  %v6548 = vmul.f32 %v5237, %v5857
  %v6549 = vmul.f32 %v5239, %v5857
  %v6550 = vmul.f32 %v5241, %v5871
  %v6551 = vmul.f32 %v5243, %v5871
  %v6552 = vmul.f32 %v5245, %v5885
  %v6553 = vmul.f32 %v5247, %v5885
  %v6554 = vmul.f32 %v5249, %v5899
  %v6555 = vmul.f32 %v5251, %v5899
  %v6556 = vmul.f32 %v5253, %v5913
  %v6557 = vmul.f32 %v5255, %v5913
  %v6558 = vmul.f32 %v5257, %v5927
  %v6559 = vmul.f32 %v5259, %v5927
  %v6560 = vmul.f32 %v5261, %v5941
  %v6561 = vmul.f32 %v5263, %v5941
  %v6562 = vmul.f32 %v5265, %v5955
  %v6563 = vmul.f32 %v5267, %v5955
  %v6564 = vmul.f32 %v5269, %v5969
  %v6565 = vmul.f32 %v5271, %v5969
  %v6566 = vmul.f32 %v5273, %v5983
  %v6567 = vmul.f32 %v5275, %v5983
  %v6568 = vmul.f32 %v5277, %v5997
  %v6569 = vmul.f32 %v5279, %v5997
  %v6570 = vmul.f32 %v5281, %v6011
  %v6571 = vmul.f32 %v5283, %v6011
  %v6572 = vmul.f32 %v5285, %v6025
  %v6573 = vmul.f32 %v5287, %v6025
  %v6574 = vmul.f32 %v5289, %v6039
  %v6575 = vmul.f32 %v5291, %v6039
  %v6576 = vmul.f32 %v5293, %v6053
  %v6577 = vmul.f32 %v5295, %v6053
  %v6578 = vmul.f32 %v5297, %v6067
  %v6579 = vmul.f32 %v5299, %v6067
  %v6580 = vmul.f32 %v5301, %v6081
  %v6581 = vmul.f32 %v5303, %v6081
  %v6582 = vmul.f32 %v5305, %v6095
  %v6583 = vmul.f32 %v5307, %v6095
  %v6584 = vmul.f32 %v5309, %v6109
  %v6585 = vmul.f32 %v5311, %v6109
  %v6586 = vmul.f32 %v5313, %v6123
  %v6587 = vmul.f32 %v5315, %v6123
  %v6588 = vmul.f32 %v5317, %v6137
  %v6589 = vmul.f32 %v5319, %v6137
  %v6590 = vmul.f32 %v5321, %v6151
  %v6591 = vmul.f32 %v5323, %v6151
  %v6592 = vmul.f32 %v5325, %v6165
  %v6593 = vmul.f32 %v5327, %v6165
  %v6594 = vmul.f32 %v5329, %v6179
  %v6595 = vmul.f32 %v5331, %v6179
  %v6596 = vmul.f32 %v5333, %v6193
  %v6597 = vmul.f32 %v5335, %v6193
  %v6598 = vmul.f32 %v5337, %v6207
  %v6599 = vmul.f32 %v5339, %v6207
  %v6600 = vmul.f32 %v5341, %v6221
  %v6601 = vmul.f32 %v5343, %v6221
  %v6602 = vmul.f32 %v5345, %v6235
  %v6603 = vmul.f32 %v5347, %v6235
  %v6604 = vmul.f32 %v5349, %v6249
  %v6605 = vmul.f32 %v5351, %v6249
  %v6606 = vmul.f32 %v5353, %v6263
  %v6607 = vmul.f32 %v5355, %v6263
  %v6608 = vmul.f32 %v5357, %v6277
  %v6609 = vmul.f32 %v5359, %v6277
  %v6610 = vmul.f32 %v5361, %v6291
  %v6611 = vmul.f32 %v5363, %v6291
  %v6612 = vmul.f32 %v5365, %v6305
  %v6613 = vmul.f32 %v5367, %v6305
  %v6614 = vmul.f32 %v5369, %v6319
  %v6615 = vmul.f32 %v5371, %v6319
  %v6616 = vmul.f32 %v5373, %v6333
  %v6617 = vmul.f32 %v5375, %v6333
  %v6618 = vmul.f32 %v5377, %v6347
  %v6619 = vmul.f32 %v5379, %v6347
  %v6620 = vmul.f32 %v5381, %v6361
  %v6621 = vmul.f32 %v5383, %v6361
  %v6622 = vmul.f32 %v5385, %v6375
  %v6623 = vmul.f32 %v5387, %v6375
  %v6624 = vmul.f32 %v5389, %v6389
  %v6625 = vmul.f32 %v5391, %v6389
  %v6626 = vmul.f32 %v5393, %v6403
  %v6627 = vmul.f32 %v5395, %v6403
  %v6628 = vmul.f32 %v5397, %v6417
  %v6629 = vmul.f32 %v5399, %v6417
  %v6630 = vmul.f32 %v5401, %v6431
  %v6631 = vmul.f32 %v5403, %v6431
  %v6632 = vmul.f32 %v5405, %v6445
  %v6633 = vmul.f32 %v5407, %v6445
  %v6634 = vmul.f32 %v5409, %v6459
  %v6635 = vmul.f32 %v5411, %v6459
  %v6636 = vmul.f32 %v5413, %v6473
  %v6637 = vmul.f32 %v5415, %v6473
  %v6638 = vmul.f32 %v5417, %v6487
  %v6639 = vmul.f32 %v5419, %v6487
  %v6640 = vmul.f32 %v5421, %v6501
  %v6641 = vmul.f32 %v5423, %v6501
  %v6642 = vmul.f32 %v5425, %v6515
  %v6643 = vmul.f32 %v5427, %v6515
  %v6644 = vpack.c.bf16 %v6517, %v6516
  %v6645 = vpack.c.bf16 %v6519, %v6518
  %v6646 = vpack.c.bf16 %v6521, %v6520
  %v6647 = vpack.c.bf16 %v6523, %v6522
  %v6648 = vpack.c.bf16 %v6525, %v6524
  %v6649 = vpack.c.bf16 %v6527, %v6526
  %v6650 = vpack.c.bf16 %v6529, %v6528
  %v6651 = vpack.c.bf16 %v6531, %v6530
  %v6652 = vpack.c.bf16 %v6533, %v6532
  %v6653 = vpack.c.bf16 %v6535, %v6534
  %v6654 = vpack.c.bf16 %v6537, %v6536
  %v6655 = vpack.c.bf16 %v6539, %v6538
  %v6656 = vpack.c.bf16 %v6541, %v6540
  %v6657 = vpack.c.bf16 %v6543, %v6542
  %v6658 = vpack.c.bf16 %v6545, %v6544
  %v6659 = vpack.c.bf16 %v6547, %v6546
  %v6660 = vpack.c.bf16 %v6549, %v6548
  %v6661 = vpack.c.bf16 %v6551, %v6550
  %v6662 = vpack.c.bf16 %v6553, %v6552
  %v6663 = vpack.c.bf16 %v6555, %v6554
  %v6664 = vpack.c.bf16 %v6557, %v6556
  %v6665 = vpack.c.bf16 %v6559, %v6558
  %v6666 = vpack.c.bf16 %v6561, %v6560
  %v6667 = vpack.c.bf16 %v6563, %v6562
  %v6668 = vpack.c.bf16 %v6565, %v6564
  %v6669 = vpack.c.bf16 %v6567, %v6566
  %v6670 = vpack.c.bf16 %v6569, %v6568
  %v6671 = vpack.c.bf16 %v6571, %v6570
  %v6672 = vpack.c.bf16 %v6573, %v6572
  %v6673 = vpack.c.bf16 %v6575, %v6574
  %v6674 = vpack.c.bf16 %v6577, %v6576
  %v6675 = vpack.c.bf16 %v6579, %v6578
  %v6676 = vpack.c.bf16 %v6581, %v6580
  %v6677 = vpack.c.bf16 %v6583, %v6582
  %v6678 = vpack.c.bf16 %v6585, %v6584
  %v6679 = vpack.c.bf16 %v6587, %v6586
  %v6680 = vpack.c.bf16 %v6589, %v6588
  %v6681 = vpack.c.bf16 %v6591, %v6590
  %v6682 = vpack.c.bf16 %v6593, %v6592
  %v6683 = vpack.c.bf16 %v6595, %v6594
  %v6684 = vpack.c.bf16 %v6597, %v6596
  %v6685 = vpack.c.bf16 %v6599, %v6598
  %v6686 = vpack.c.bf16 %v6601, %v6600
  %v6687 = vpack.c.bf16 %v6603, %v6602
  %v6688 = vpack.c.bf16 %v6605, %v6604
  %v6689 = vpack.c.bf16 %v6607, %v6606
  %v6690 = vpack.c.bf16 %v6609, %v6608
  %v6691 = vpack.c.bf16 %v6611, %v6610
  %v6692 = vpack.c.bf16 %v6613, %v6612
  %v6693 = vpack.c.bf16 %v6615, %v6614
  %v6694 = vpack.c.bf16 %v6617, %v6616
  %v6695 = vpack.c.bf16 %v6619, %v6618
  %v6696 = vpack.c.bf16 %v6621, %v6620
  %v6697 = vpack.c.bf16 %v6623, %v6622
  %v6698 = vpack.c.bf16 %v6625, %v6624
  %v6699 = vpack.c.bf16 %v6627, %v6626
  %v6700 = vpack.c.bf16 %v6629, %v6628
  %v6701 = vpack.c.bf16 %v6631, %v6630
  %v6702 = vpack.c.bf16 %v6633, %v6632
  %v6703 = vpack.c.bf16 %v6635, %v6634
  %v6704 = vpack.c.bf16 %v6637, %v6636
  %v6705 = vpack.c.bf16 %v6639, %v6638
  %v6706 = vpack.c.bf16 %v6641, %v6640
  %v6707 = vpack.c.bf16 %v6643, %v6642
  %6708 = vst [vmem:[%s5] sm:$0xff] %v6644
  %6709 = vst [vmem:[%s5 + $0x8] sm:$0xff] %v6645
  %6710 = vst [vmem:[%s5 + $0x10] sm:$0xff] %v6646
  %6711 = vst [vmem:[%s5 + $0x18] sm:$0xff] %v6647
  %6712 = vst [vmem:[%s5 + $0x20] sm:$0xff] %v6648
  %6713 = vst [vmem:[%s5 + $0x28] sm:$0xff] %v6649
  %6714 = vst [vmem:[%s5 + $0x30] sm:$0xff] %v6650
  %6715 = vst [vmem:[%s5 + $0x38] sm:$0xff] %v6651
  %6716 = vst [vmem:[%s5 + $0x40] sm:$0xff] %v6652
  %6717 = vst [vmem:[%s5 + $0x48] sm:$0xff] %v6653
  %6718 = vst [vmem:[%s5 + $0x50] sm:$0xff] %v6654
  %6719 = vst [vmem:[%s5 + $0x58] sm:$0xff] %v6655
  %6720 = vst [vmem:[%s5 + $0x60] sm:$0xff] %v6656
  %6721 = vst [vmem:[%s5 + $0x68] sm:$0xff] %v6657
  %6722 = vst [vmem:[%s5 + $0x70] sm:$0xff] %v6658
  %6723 = vst [vmem:[%s5 + $0x78] sm:$0xff] %v6659
  %6724 = vst [vmem:[%s5 + $0x80] sm:$0xff] %v6660
  %6725 = vst [vmem:[%s5 + $0x88] sm:$0xff] %v6661
  %6726 = vst [vmem:[%s5 + $0x90] sm:$0xff] %v6662
  %6727 = vst [vmem:[%s5 + $0x98] sm:$0xff] %v6663
  %6728 = vst [vmem:[%s5 + $0xa0] sm:$0xff] %v6664
  %6729 = vst [vmem:[%s5 + $0xa8] sm:$0xff] %v6665
  %6730 = vst [vmem:[%s5 + $0xb0] sm:$0xff] %v6666
  %6731 = vst [vmem:[%s5 + $0xb8] sm:$0xff] %v6667
  %6732 = vst [vmem:[%s5 + $0xc0] sm:$0xff] %v6668
  %6733 = vst [vmem:[%s5 + $0xc8] sm:$0xff] %v6669
  %6734 = vst [vmem:[%s5 + $0xd0] sm:$0xff] %v6670
  %6735 = vst [vmem:[%s5 + $0xd8] sm:$0xff] %v6671
  %6736 = vst [vmem:[%s5 + $0xe0] sm:$0xff] %v6672
  %6737 = vst [vmem:[%s5 + $0xe8] sm:$0xff] %v6673
  %6738 = vst [vmem:[%s5 + $0xf0] sm:$0xff] %v6674
  %6739 = vst [vmem:[%s5 + $0xf8] sm:$0xff] %v6675
  %6740 = vst [vmem:[%s5 + $0x100] sm:$0xff] %v6676
  %6741 = vst [vmem:[%s5 + $0x108] sm:$0xff] %v6677
  %6742 = vst [vmem:[%s5 + $0x110] sm:$0xff] %v6678
  %6743 = vst [vmem:[%s5 + $0x118] sm:$0xff] %v6679
  %6744 = vst [vmem:[%s5 + $0x120] sm:$0xff] %v6680
  %6745 = vst [vmem:[%s5 + $0x128] sm:$0xff] %v6681
  %6746 = vst [vmem:[%s5 + $0x130] sm:$0xff] %v6682
  %6747 = vst [vmem:[%s5 + $0x138] sm:$0xff] %v6683
  %6748 = vst [vmem:[%s5 + $0x140] sm:$0xff] %v6684
  %6749 = vst [vmem:[%s5 + $0x148] sm:$0xff] %v6685
  %6750 = vst [vmem:[%s5 + $0x150] sm:$0xff] %v6686
  %6751 = vst [vmem:[%s5 + $0x158] sm:$0xff] %v6687
  %6752 = vst [vmem:[%s5 + $0x160] sm:$0xff] %v6688
  %6753 = vst [vmem:[%s5 + $0x168] sm:$0xff] %v6689
  %6754 = vst [vmem:[%s5 + $0x170] sm:$0xff] %v6690
  %6755 = vst [vmem:[%s5 + $0x178] sm:$0xff] %v6691
  %6756 = vst [vmem:[%s5 + $0x180] sm:$0xff] %v6692
  %6757 = vst [vmem:[%s5 + $0x188] sm:$0xff] %v6693
  %6758 = vst [vmem:[%s5 + $0x190] sm:$0xff] %v6694
  %6759 = vst [vmem:[%s5 + $0x198] sm:$0xff] %v6695
  %6760 = vst [vmem:[%s5 + $0x1a0] sm:$0xff] %v6696
  %6761 = vst [vmem:[%s5 + $0x1a8] sm:$0xff] %v6697
  %6762 = vst [vmem:[%s5 + $0x1b0] sm:$0xff] %v6698
  %6763 = vst [vmem:[%s5 + $0x1b8] sm:$0xff] %v6699
  %6764 = vst [vmem:[%s5 + $0x1c0] sm:$0xff] %v6700
  %6765 = vst [vmem:[%s5 + $0x1c8] sm:$0xff] %v6701
  %6766 = vst [vmem:[%s5 + $0x1d0] sm:$0xff] %v6702
  %6767 = vst [vmem:[%s5 + $0x1d8] sm:$0xff] %v6703
  %6768 = vst [vmem:[%s5 + $0x1e0] sm:$0xff] %v6704
  %6769 = vst [vmem:[%s5 + $0x1e8] sm:$0xff] %v6705
  %6770 = vst [vmem:[%s5 + $0x1f0] sm:$0xff] %v6706
  %6771 = vst [vmem:[%s5 + $0x1f8] sm:$0xff] %v6707
  // Predicated region
  $region22: #{_forward.1} parent=0 // pred_check
    _
  $region23: #{_forward.1} parent=0 // pred_check_branch
    %6773 = sbr.rel (0) target = $region25
  $region24: #{_forward.1} parent=0 // pred_region
    _
  $region25: #{_forward.1} parent=0 // pred_fallthru
    _
  // Predicated region
  $region26: #{_forward.1} parent=0 // pred_check
    _
  $region27: #{_forward.1} parent=0 // pred_check_branch
    %6775 = sbr.rel (0) target = $region29
  $region28: #{_forward.1} parent=0 // pred_region
    _
  $region29: #{_forward.1} parent=0 // pred_fallthru
    _

</llo_original>
